<compile_context>
chip_gen: v7x
topology: tpu7x:2x2x1
jax: 0.10.0
libtpu: 0.0.40
codegen_flags: <defaults>
</compile_context>

<pallas_src>
import math
from functools import partial

import jax
import jax.numpy as jnp
from jax.experimental import pallas as pl
from jax.experimental.pallas import tpu as pltpu


# ----------------------------------------------------------------------------
# Fused decoder-stack kernel: grid=(B, L); per program one (batch, layer) step.
# The residual stream for batch b is carried across the L axis in VMEM scratch.
# ----------------------------------------------------------------------------

def _decoder_stack_kernel(
    x_ref, enc_ref, gln_ref, ln_ref,
    wqkv_ref, bqkv_ref, wo_sa_ref, bo_sa_ref,
    wq_ca_ref, bq_ca_ref, wkv_ca_ref, bkv_ca_ref, wo_ca_ref, bo_ca_ref,
    wfc1_ref, bfc1_ref, wfc2_ref, bfc2_ref,
    o_ref,
    x_sc,
    *, n_heads, eps,
):
    l = pl.program_id(1)
    n_layers = pl.num_programs(1)
    C = x_ref.shape[2]
    d = C // n_heads
    scale = 1.0 / math.sqrt(d)

    def layer_norm(h, g, b):
        mu = jnp.mean(h, axis=-1, keepdims=True)
        var = jnp.mean((h - mu) ** 2, axis=-1, keepdims=True)
        return (h - mu) * jax.lax.rsqrt(var + eps) * g + b

    def matmul(a, w_ref, b_ref):
        # bf16 MXU inputs, f32 accumulation, bias fused in the epilogue.
        return jnp.dot(a.astype(jnp.bfloat16), w_ref[0],
                       preferred_element_type=jnp.float32) + b_ref[0]

    def mha(q, k, v, causal):
        # q: [T, C], k/v: [S_kv, C]; heads are contiguous d-wide lane slices.
        tq, skv = q.shape[0], k.shape[0]
        bias = None
        if causal:
            row = jax.lax.broadcasted_iota(jnp.int32, (tq, skv), 0)
            col = jax.lax.broadcasted_iota(jnp.int32, (tq, skv), 1)
            bias = jnp.where(col > row, -1e9, 0.0).astype(jnp.float32)
        q = q * scale  # single VPU mul for all heads (hoisted out of the loop)
        heads = []
        for h in range(n_heads):
            qh = q[:, h * d:(h + 1) * d].astype(jnp.bfloat16)
            kh = k[:, h * d:(h + 1) * d].astype(jnp.bfloat16)
            vh = v[:, h * d:(h + 1) * d].astype(jnp.bfloat16)
            # q @ k^T without an explicit transpose (MXU-native contraction).
            s = jax.lax.dot_general(qh, kh, (((1,), (1,)), ((), ())),
                                    preferred_element_type=jnp.float32)
            if causal:
                s = s + bias
            m = jnp.max(s, axis=-1, keepdims=True)
            p = jnp.exp(s - m)
            p = p * pl.reciprocal(jnp.sum(p, axis=-1, keepdims=True), approx=True)
            heads.append(jnp.dot(p.astype(jnp.bfloat16), vh,
                                 preferred_element_type=jnp.float32))
        return jnp.concatenate(heads, axis=-1)  # [T, C]

    # ---- layer 0: load embedded input, apply layernorm_embedding ------------
    @pl.when(l == 0)
    def _():
        x_in = x_ref[0].astype(jnp.float32)
        x_sc[...] = layer_norm(x_in, gln_ref[0:1, :], gln_ref[1:2, :])

    x = x_sc[...]                           # [T, C] residual stream (f32, VMEM)
    enc = enc_ref[0].astype(jnp.float32)    # [S, C]
    ln_w = ln_ref[0]                        # [6, C]  (sa_g, sa_b, ca_g, ca_b, ff_g, ff_b)

    # ---- self attention (pre-norm) + residual --------------------------------
    h = layer_norm(x, ln_w[0:1, :], ln_w[1:2, :])
    qkv = matmul(h, wqkv_ref, bqkv_ref)                          # [T, 3C] fused QKV
    a = mha(qkv[:, :C], qkv[:, C:2 * C], qkv[:, 2 * C:], causal=True)
    x = x + matmul(a, wo_sa_ref, bo_sa_ref)

    # ---- cross attention (pre-norm) + residual -------------------------------
    h = layer_norm(x, ln_w[2:3, :], ln_w[3:4, :])
    q = matmul(h, wq_ca_ref, bq_ca_ref)                          # [T, C]
    kv = matmul(enc, wkv_ca_ref, bkv_ca_ref)                     # [S, 2C] fused KV
    a = mha(q, kv[:, :C], kv[:, C:], causal=False)
    x = x + matmul(a, wo_ca_ref, bo_ca_ref)

    # ---- feed forward (pre-norm) + residual -----------------------------------
    h = layer_norm(x, ln_w[4:5, :], ln_w[5:6, :])
    h = jnp.maximum(matmul(h, wfc1_ref, bfc1_ref), 0.0)
    x = x + matmul(h, wfc2_ref, bfc2_ref)

    x_sc[...] = x  # carry residual stream to the next layer (stays in VMEM)

    # ---- last layer: final decoder LayerNorm + writeback ----------------------
    @pl.when(l == n_layers - 1)
    def _():
        y = layer_norm(x, gln_ref[2:3, :], gln_ref[3:4, :])
        o_ref[0] = y.astype(o_ref.dtype)


def decoder_stack_pallas(x_btc, enc_bsc, p, n_heads):
    B, T, C = x_btc.shape
    S = enc_bsc.shape[1]
    L = p["w_qkv"].shape[0]

    def per_layer(arr):
        # One layer's slab per grid step along the (innermost) layer axis.
        return pl.BlockSpec((1,) + arr.shape[1:], lambda b, l: (l, 0, 0))

    return pl.pallas_call(
        partial(_decoder_stack_kernel, n_heads=n_heads, eps=1e-5),
        out_shape=jax.ShapeDtypeStruct((B, T, C), jnp.float32),
        grid=(B, L),
        in_specs=[
            pl.BlockSpec((1, T, C), lambda b, l: (b, 0, 0)),   # embedded input
            pl.BlockSpec((1, S, C), lambda b, l: (b, 0, 0)),   # encoder states
            pl.BlockSpec((4, C), lambda b, l: (0, 0)),         # emb-LN + final-LN params
            per_layer(p["ln"]),                                 # per-layer LN params
            per_layer(p["w_qkv"]), per_layer(p["b_qkv"]),       # fused self QKV
            per_layer(p["w_o_sa"]), per_layer(p["b_o_sa"]),     # self out-proj
            per_layer(p["w_q_ca"]), per_layer(p["b_q_ca"]),     # cross Q
            per_layer(p["w_kv_ca"]), per_layer(p["b_kv_ca"]),   # fused cross KV
            per_layer(p["w_o_ca"]), per_layer(p["b_o_ca"]),     # cross out-proj
            per_layer(p["w_fc1"]), per_layer(p["b_fc1"]),       # fc1
            per_layer(p["w_fc2"]), per_layer(p["b_fc2"]),       # fc2
        ],
        out_specs=pl.BlockSpec((1, T, C), lambda b, l: (b, 0, 0)),
        scratch_shapes=[pltpu.VMEM((T, C), jnp.float32)],       # residual-stream carry
        compiler_params=pltpu.CompilerParams(
            dimension_semantics=("parallel", "arbitrary"),
            vmem_limit_bytes=32 * 1024 * 1024,
        ),
    )(
        x_btc, enc_bsc, p["gln"], p["ln"],
        p["w_qkv"], p["b_qkv"], p["w_o_sa"], p["b_o_sa"],
        p["w_q_ca"], p["b_q_ca"], p["w_kv_ca"], p["b_kv_ca"],
        p["w_o_ca"], p["b_o_ca"],
        p["w_fc1"], p["b_fc1"], p["w_fc2"], p["b_fc2"],
    )


# ----------------------------------------------------------------------------
# Decoder forward (mirrors TransformerDecoderBase.forward, non-fast-MHA, eval)
# ----------------------------------------------------------------------------

def make_positions(input_ids, padding_idx):
    """fairseq utils.make_positions: pad positions get padding_idx, others count up."""
    mask = (input_ids != padding_idx).astype(jnp.int32)
    return jnp.cumsum(mask, axis=1) * mask + padding_idx


def transformer_decoder_forward(params, input_ids, encoder_hidden_states, cfg):
    """input_ids: [B, T] int32; encoder_hidden_states: [S, B, C] (seq-first).

    Returns (x [T, B, C], attns list) exactly like the PyTorch module.
    """
    B, T = input_ids.shape
    C = cfg["embed_dim"]
    embed_scale = math.sqrt(C)

    # Token embedding gather + learned positional embedding (XLA glue).
    x = embed_scale * jnp.take(params["embed_tokens"], input_ids, axis=0)  # [B, T, C]
    pos = make_positions(input_ids, cfg["padding_idx"])
    x = x + jnp.take(params["embed_positions"], pos, axis=0)

    # Encoder states transposed once to batch-first; hidden state stays [B, T, C]
    # through the fused stack (mathematically identical to the module's [T, B, C]
    # processing); dropout is identity in eval.
    enc_bsc = jnp.transpose(encoder_hidden_states, (1, 0, 2))  # [B, S, C]

    # One fused kernel: layernorm_embedding -> L decoder layers -> final LayerNorm.
    x = decoder_stack_pallas(x, enc_bsc, params, cfg["n_heads"])

    attns = [None] * cfg["num_layers"]  # fairseq need_attn=False -> attn weights None

    # Produce the module's seq-first [T, B, C] output layout once, at the end.
    x = jnp.transpose(x, (1, 0, 2))

    # TODO(synk): fast_bert_mha varlen repacking / adapters / layerdrop /
    # encoder_attention_mask paths not exercised (None / 0 / eval in this config).
    return x, attns


# ----------------------------------------------------------------------------
# Deterministic parameter construction (weights stacked along a leading L axis,
# stored bf16 for the MXU; LN params / biases / embeddings in f32).
# ----------------------------------------------------------------------------

def init_params(key, cfg):
    C = cfg["embed_dim"]
    F = cfg["ffn_dim"]
    V = cfg["vocab_size"]
    L = cfg["num_layers"]
    P = cfg["max_target_positions"] + cfg["padding_idx"] + 1

    def nrm(k, shape, s=0.02):
        return s * jax.random.normal(k, shape, dtype=jnp.float32)

    def bf16(a):
        return a.astype(jnp.bfloat16)

    keys = iter(jax.random.split(key, 2 + L * 10))

    embed_tokens = nrm(next(keys), (V, C)).at[cfg["padding_idx"]].set(0.0)
    embed_positions = nrm(next(keys), (P, C)).at[cfg["padding_idx"]].set(0.0)

    w_qkv, w_o_sa, w_q_ca, w_kv_ca, w_o_ca, w_fc1, w_fc2 = ([] for _ in range(7))
    for _ in range(L):
        wq_s = nrm(next(keys), (C, C))
        wk_s = nrm(next(keys), (C, C))
        wv_s = nrm(next(keys), (C, C))
        wo_s = nrm(next(keys), (C, C))
        wq_c = nrm(next(keys), (C, C))
        wk_c = nrm(next(keys), (C, C))
        wv_c = nrm(next(keys), (C, C))
        wo_c = nrm(next(keys), (C, C))
        wfc1 = nrm(next(keys), (C, F))
        wfc2 = nrm(next(keys), (F, C))
        w_qkv.append(jnp.concatenate([wq_s, wk_s, wv_s], axis=1))
        w_o_sa.append(wo_s)
        w_q_ca.append(wq_c)
        w_kv_ca.append(jnp.concatenate([wk_c, wv_c], axis=1))
        w_o_ca.append(wo_c)
        w_fc1.append(wfc1)
        w_fc2.append(wfc2)

    # Per-layer LN params packed [L, 6, C]: (sa_g, sa_b, ca_g, ca_b, ff_g, ff_b).
    ln_one = jnp.concatenate(
        [jnp.ones((1, C)), jnp.zeros((1, C))] * 3, axis=0).astype(jnp.float32)
    ln = jnp.tile(ln_one[None], (L, 1, 1))
    # Global LN params packed [4, C]: (emb_g, emb_b, final_g, final_b).
    gln = jnp.concatenate(
        [jnp.ones((1, C)), jnp.zeros((1, C)),
         jnp.ones((1, C)), jnp.zeros((1, C))], axis=0).astype(jnp.float32)

    return {
        "embed_tokens": embed_tokens,
        "embed_positions": embed_positions,
        "gln": gln,
        "ln": ln,
        "w_qkv": bf16(jnp.stack(w_qkv)), "b_qkv": jnp.zeros((L, 1, 3 * C), jnp.float32),
        "w_o_sa": bf16(jnp.stack(w_o_sa)), "b_o_sa": jnp.zeros((L, 1, C), jnp.float32),
        "w_q_ca": bf16(jnp.stack(w_q_ca)), "b_q_ca": jnp.zeros((L, 1, C), jnp.float32),
        "w_kv_ca": bf16(jnp.stack(w_kv_ca)), "b_kv_ca": jnp.zeros((L, 1, 2 * C), jnp.float32),
        "w_o_ca": bf16(jnp.stack(w_o_ca)), "b_o_ca": jnp.zeros((L, 1, C), jnp.float32),
        "w_fc1": bf16(jnp.stack(w_fc1)), "b_fc1": jnp.zeros((L, 1, F), jnp.float32),
        "w_fc2": bf16(jnp.stack(w_fc2)), "b_fc2": jnp.zeros((L, 1, C), jnp.float32),
    }


# ----------------------------------------------------------------------------
# Main
# ----------------------------------------------------------------------------

if __name__ == "__main__":
    cfg = {
        "embed_dim": 32,
        "n_heads": 4,
        "ffn_dim": 64,
        "num_layers": 2,
        "vocab_size": 50,
        "padding_idx": 1,
        "max_target_positions": 64,
    }
    B, T, S = 2, 8, 10

    key = jax.random.PRNGKey(0)
    k_par, k_ids, k_enc = jax.random.split(key, 3)

    params = init_params(k_par, cfg)
    input_ids = jax.random.randint(k_ids, (B, T), 2, cfg["vocab_size"], dtype=jnp.int32)
    encoder_hidden_states = jax.random.normal(
        k_enc, (S, B, cfg["embed_dim"]), dtype=jnp.float32
    )

    fwd = jax.jit(partial(transformer_decoder_forward, cfg=cfg))
    x, attns = fwd(params, input_ids, encoder_hidden_states)
    x = jax.block_until_ready(x)

    assert x.shape == (T, B, cfg["embed_dim"])
    assert len(attns) == cfg["num_layers"]
    assert bool(jnp.all(jnp.isfinite(x)))
    print("KERNEL_OK")
</pallas_src>

<mosaic_0001>
module attributes {stable_mosaic.version = 11 : i64} {
  func.func @_decoder_stack_kernel(%arg0: i32, %arg1: i32, %arg2: memref<1x8x32xf32, #tpu.memory_space<vmem>>, %arg3: memref<1x10x32xf32, #tpu.memory_space<vmem>>, %arg4: memref<4x32xf32, #tpu.memory_space<vmem>>, %arg5: memref<1x6x32xf32, #tpu.memory_space<vmem>>, %arg6: memref<1x32x96xbf16, #tpu.memory_space<vmem>>, %arg7: memref<1x1x96xf32, #tpu.memory_space<vmem>>, %arg8: memref<1x32x32xbf16, #tpu.memory_space<vmem>>, %arg9: memref<1x1x32xf32, #tpu.memory_space<vmem>>, %arg10: memref<1x32x32xbf16, #tpu.memory_space<vmem>>, %arg11: memref<1x1x32xf32, #tpu.memory_space<vmem>>, %arg12: memref<1x32x64xbf16, #tpu.memory_space<vmem>>, %arg13: memref<1x1x64xf32, #tpu.memory_space<vmem>>, %arg14: memref<1x32x32xbf16, #tpu.memory_space<vmem>>, %arg15: memref<1x1x32xf32, #tpu.memory_space<vmem>>, %arg16: memref<1x32x64xbf16, #tpu.memory_space<vmem>>, %arg17: memref<1x1x64xf32, #tpu.memory_space<vmem>>, %arg18: memref<1x64x32xbf16, #tpu.memory_space<vmem>>, %arg19: memref<1x1x32xf32, #tpu.memory_space<vmem>>, %arg20: memref<1x8x32xf32, #tpu.memory_space<vmem>>, %arg21: memref<8x32xf32, #tpu.memory_space<vmem>>) attributes {dimension_semantics = [#tpu.dimension_semantics<parallel>, #tpu.dimension_semantics<arbitrary>], iteration_bounds = array<i64: 2, 2>, scalar_prefetch = 0 : i64, scratch_operands = 1 : i64, tpu.core_type = #tpu.core_type<tc>, window_params = [{transform_indices = @transform_0, window_bounds = array<i64: 1, 8, 32>}, {transform_indices = @transform_1, window_bounds = array<i64: 1, 10, 32>}, {pipeline_mode = #tpu.pipeline_mode<synchronous>, transform_indices = @transform_2, window_bounds = array<i64: 4, 32>}, {transform_indices = @transform_3, window_bounds = array<i64: 1, 6, 32>}, {transform_indices = @transform_4, window_bounds = array<i64: 1, 32, 96>}, {transform_indices = @transform_5, window_bounds = array<i64: 1, 1, 96>}, {transform_indices = @transform_6, window_bounds = array<i64: 1, 32, 32>}, {transform_indices = @transform_7, window_bounds = array<i64: 1, 1, 32>}, {transform_indices = @transform_8, window_bounds = array<i64: 1, 32, 32>}, {transform_indices = @transform_9, window_bounds = array<i64: 1, 1, 32>}, {transform_indices = @transform_10, window_bounds = array<i64: 1, 32, 64>}, {transform_indices = @transform_11, window_bounds = array<i64: 1, 1, 64>}, {transform_indices = @transform_12, window_bounds = array<i64: 1, 32, 32>}, {transform_indices = @transform_13, window_bounds = array<i64: 1, 1, 32>}, {transform_indices = @transform_14, window_bounds = array<i64: 1, 32, 64>}, {transform_indices = @transform_15, window_bounds = array<i64: 1, 1, 64>}, {transform_indices = @transform_16, window_bounds = array<i64: 1, 64, 32>}, {transform_indices = @transform_17, window_bounds = array<i64: 1, 1, 32>}, {transform_indices = @transform_18, window_bounds = array<i64: 1, 8, 32>}]} {
    %c0_i32 = arith.constant 0 : i32
    %0 = arith.cmpi eq, %arg1, %c0_i32 : i32
    %1 = arith.extui %0 : i1 to i32
    %c0_i32_0 = arith.constant 0 : i32
    %2 = arith.cmpi ne, %1, %c0_i32_0 : i32
    scf.if %2 {
      %c0_111 = arith.constant 0 : index
      %c0_112 = arith.constant 0 : index
      %c0_113 = arith.constant 0 : index
      %318 = vector.load %arg2[%c0_111, %c0_112, %c0_113] : memref<1x8x32xf32, #tpu.memory_space<vmem>>, vector<1x8x32xf32>
      %319 = vector.shape_cast %318 : vector<1x8x32xf32> to vector<8x32xf32>
      %c0_114 = arith.constant 0 : index
      %c0_115 = arith.constant 0 : index
      %320 = vector.load %arg4[%c0_114, %c0_115] : memref<4x32xf32, #tpu.memory_space<vmem>>, vector<1x32xf32>
      %c1 = arith.constant 1 : index
      %c0_116 = arith.constant 0 : index
      %321 = vector.load %arg4[%c1, %c0_116] : memref<4x32xf32, #tpu.memory_space<vmem>>, vector<1x32xf32>
      %cst_117 = arith.constant dense<0.000000e+00> : vector<8xf32>
      %322 = vector.multi_reduction <add>, %319, %cst_117 [1] : vector<8x32xf32> to vector<8xf32>
      %323 = vector.shape_cast %322 : vector<8xf32> to vector<8x1xf32>
      %cst_118 = arith.constant 3.200000e+01 : f32
      %324 = vector.broadcast %cst_118 : f32 to vector<8x1xf32>
      %325 = arith.divf %323, %324 : vector<8x1xf32>
      %326 = vector.broadcast %325 : vector<8x1xf32> to vector<8x32xf32>
      %327 = arith.subf %319, %326 : vector<8x32xf32>
      %328 = arith.mulf %327, %327 : vector<8x32xf32>
      %cst_119 = arith.constant dense<0.000000e+00> : vector<8xf32>
      %329 = vector.multi_reduction <add>, %328, %cst_119 [1] : vector<8x32xf32> to vector<8xf32>
      %330 = vector.shape_cast %329 : vector<8xf32> to vector<8x1xf32>
      %cst_120 = arith.constant 3.200000e+01 : f32
      %331 = vector.broadcast %cst_120 : f32 to vector<8x1xf32>
      %332 = arith.divf %330, %331 : vector<8x1xf32>
      %333 = vector.broadcast %325 : vector<8x1xf32> to vector<8x32xf32>
      %334 = arith.subf %319, %333 : vector<8x32xf32>
      %cst_121 = arith.constant 9.99999974E-6 : f32
      %335 = vector.broadcast %cst_121 : f32 to vector<8x1xf32>
      %336 = arith.addf %332, %335 : vector<8x1xf32>
      %337 = math.rsqrt %336 : vector<8x1xf32>
      %338 = vector.broadcast %337 : vector<8x1xf32> to vector<8x32xf32>
      %339 = arith.mulf %334, %338 : vector<8x32xf32>
      %340 = vector.broadcast %320 : vector<1x32xf32> to vector<8x32xf32>
      %341 = arith.mulf %339, %340 : vector<8x32xf32>
      %342 = vector.broadcast %321 : vector<1x32xf32> to vector<8x32xf32>
      %343 = arith.addf %341, %342 : vector<8x32xf32>
      %c0_122 = arith.constant 0 : index
      %c0_123 = arith.constant 0 : index
      %344 = vector.load %arg21[%c0_122, %c0_123] : memref<8x32xf32, #tpu.memory_space<vmem>>, vector<8x32xf32>
      tpu.vector_store %arg21[%c0_122, %c0_123], %343 {strides = array<i32>} : memref<8x32xf32, #tpu.memory_space<vmem>>, vector<8x32xf32>,
    } else {
    }
    %c0 = arith.constant 0 : index
    %c0_1 = arith.constant 0 : index
    %3 = vector.load %arg21[%c0, %c0_1] : memref<8x32xf32, #tpu.memory_space<vmem>>, vector<8x32xf32>
    %c0_2 = arith.constant 0 : index
    %c0_3 = arith.constant 0 : index
    %c0_4 = arith.constant 0 : index
    %4 = vector.load %arg3[%c0_2, %c0_3, %c0_4] : memref<1x10x32xf32, #tpu.memory_space<vmem>>, vector<1x10x32xf32>
    %5 = vector.shape_cast %4 : vector<1x10x32xf32> to vector<10x32xf32>
    %c0_5 = arith.constant 0 : index
    %c0_6 = arith.constant 0 : index
    %c0_7 = arith.constant 0 : index
    %6 = vector.load %arg5[%c0_5, %c0_6, %c0_7] : memref<1x6x32xf32, #tpu.memory_space<vmem>>, vector<1x6x32xf32>
    %7 = vector.shape_cast %6 : vector<1x6x32xf32> to vector<6x32xf32>
    %8 = vector.extract_strided_slice %7 {offsets = [0, 0], sizes = [1, 32], strides = [1, 1]} : vector<6x32xf32> to vector<1x32xf32>
    %9 = vector.extract_strided_slice %7 {offsets = [1, 0], sizes = [1, 32], strides = [1, 1]} : vector<6x32xf32> to vector<1x32xf32>
    %cst = arith.constant dense<0.000000e+00> : vector<8xf32>
    %10 = vector.multi_reduction <add>, %3, %cst [1] : vector<8x32xf32> to vector<8xf32>
    %11 = vector.shape_cast %10 : vector<8xf32> to vector<8x1xf32>
    %cst_8 = arith.constant 3.200000e+01 : f32
    %12 = vector.broadcast %cst_8 : f32 to vector<8x1xf32>
    %13 = arith.divf %11, %12 : vector<8x1xf32>
    %14 = vector.broadcast %13 : vector<8x1xf32> to vector<8x32xf32>
    %15 = arith.subf %3, %14 : vector<8x32xf32>
    %16 = arith.mulf %15, %15 : vector<8x32xf32>
    %cst_9 = arith.constant dense<0.000000e+00> : vector<8xf32>
    %17 = vector.multi_reduction <add>, %16, %cst_9 [1] : vector<8x32xf32> to vector<8xf32>
    %18 = vector.shape_cast %17 : vector<8xf32> to vector<8x1xf32>
    %cst_10 = arith.constant 3.200000e+01 : f32
    %19 = vector.broadcast %cst_10 : f32 to vector<8x1xf32>
    %20 = arith.divf %18, %19 : vector<8x1xf32>
    %21 = vector.broadcast %13 : vector<8x1xf32> to vector<8x32xf32>
    %22 = arith.subf %3, %21 : vector<8x32xf32>
    %cst_11 = arith.constant 9.99999974E-6 : f32
    %23 = vector.broadcast %cst_11 : f32 to vector<8x1xf32>
    %24 = arith.addf %20, %23 : vector<8x1xf32>
    %25 = math.rsqrt %24 : vector<8x1xf32>
    %26 = vector.broadcast %25 : vector<8x1xf32> to vector<8x32xf32>
    %27 = arith.mulf %22, %26 : vector<8x32xf32>
    %28 = vector.broadcast %8 : vector<1x32xf32> to vector<8x32xf32>
    %29 = arith.mulf %27, %28 : vector<8x32xf32>
    %30 = vector.broadcast %9 : vector<1x32xf32> to vector<8x32xf32>
    %31 = arith.addf %29, %30 : vector<8x32xf32>
    %32 = arith.truncf %31 : vector<8x32xf32> to vector<8x32xbf16>
    %c0_12 = arith.constant 0 : index
    %c0_13 = arith.constant 0 : index
    %c0_14 = arith.constant 0 : index
    %33 = vector.load %arg6[%c0_12, %c0_13, %c0_14] : memref<1x32x96xbf16, #tpu.memory_space<vmem>>, vector<1x32x96xbf16>
    %34 = vector.shape_cast %33 : vector<1x32x96xbf16> to vector<32x96xbf16>
    %cst_15 = arith.constant dense<0.000000e+00> : vector<8x96xf32>
    %35 = tpu.matmul %32, %34, %cst_15 {dimension_numbers = #tpu.dot_dimension_numbers<[1], [0], [0], [1], [0, 0, 1, 1], [], []>} : vector<8x32xbf16>, vector<32x96xbf16>, vector<8x96xf32> -> vector<8x96xf32>
    %c0_16 = arith.constant 0 : index
    %c0_17 = arith.constant 0 : index
    %c0_18 = arith.constant 0 : index
    %36 = vector.load %arg7[%c0_16, %c0_17, %c0_18] : memref<1x1x96xf32, #tpu.memory_space<vmem>>, vector<1x1x96xf32>
    %37 = vector.shape_cast %36 : vector<1x1x96xf32> to vector<1x96xf32>
    %38 = vector.broadcast %37 : vector<1x96xf32> to vector<8x96xf32>
    %39 = arith.addf %35, %38 : vector<8x96xf32>
    %40 = vector.extract_strided_slice %39 {offsets = [0, 0], sizes = [8, 32], strides = [1, 1]} : vector<8x96xf32> to vector<8x32xf32>
    %41 = vector.extract_strided_slice %39 {offsets = [0, 32], sizes = [8, 32], strides = [1, 1]} : vector<8x96xf32> to vector<8x32xf32>
    %42 = vector.extract_strided_slice %39 {offsets = [0, 64], sizes = [8, 32], strides = [1, 1]} : vector<8x96xf32> to vector<8x32xf32>
    %43 = tpu.iota {dimensions = array<i32: 0>} : vector<8x8xi32>
    %44 = tpu.iota {dimensions = array<i32: 1>} : vector<8x8xi32>
    %45 = arith.cmpi sgt, %44, %43 : vector<8x8xi32>
    %cst_19 = arith.constant -1.000000e+09 : f32
    %cst_20 = arith.constant 0.000000e+00 : f32
    %46 = vector.broadcast %cst_19 : f32 to vector<8x8xf32>
    %47 = vector.broadcast %cst_20 : f32 to vector<8x8xf32>
    %48 = arith.select %45, %46, %47 : vector<8x8xi1>, vector<8x8xf32>
    %cst_21 = arith.constant 0.353553385 : f32
    %49 = vector.broadcast %cst_21 : f32 to vector<8x32xf32>
    %50 = arith.mulf %40, %49 : vector<8x32xf32>
    %51 = vector.extract_strided_slice %50 {offsets = [0, 0], sizes = [8, 8], strides = [1, 1]} : vector<8x32xf32> to vector<8x8xf32>
    %52 = arith.truncf %51 : vector<8x8xf32> to vector<8x8xbf16>
    %53 = vector.extract_strided_slice %41 {offsets = [0, 0], sizes = [8, 8], strides = [1, 1]} : vector<8x32xf32> to vector<8x8xf32>
    %54 = arith.truncf %53 : vector<8x8xf32> to vector<8x8xbf16>
    %55 = vector.extract_strided_slice %42 {offsets = [0, 0], sizes = [8, 8], strides = [1, 1]} : vector<8x32xf32> to vector<8x8xf32>
    %56 = arith.truncf %55 : vector<8x8xf32> to vector<8x8xbf16>
    %cst_22 = arith.constant dense<0.000000e+00> : vector<8x8xf32>
    %57 = tpu.matmul %52, %54, %cst_22 {dimension_numbers = #tpu.dot_dimension_numbers<[1], [1], [0], [0], [0, 0, 1, 0], [], []>} : vector<8x8xbf16>, vector<8x8xbf16>, vector<8x8xf32> -> vector<8x8xf32>
    %58 = arith.addf %57, %48 : vector<8x8xf32>
    %cst_23 = arith.constant dense<0xFF800000> : vector<8xf32>
    %59 = vector.multi_reduction <maximumf>, %58, %cst_23 [1] : vector<8x8xf32> to vector<8xf32>
    %60 = vector.shape_cast %59 : vector<8xf32> to vector<8x1xf32>
    %61 = vector.broadcast %60 : vector<8x1xf32> to vector<8x8xf32>
    %62 = arith.subf %58, %61 : vector<8x8xf32>
    %63 = math.exp %62 : vector<8x8xf32>
    %cst_24 = arith.constant dense<0.000000e+00> : vector<8xf32>
    %64 = vector.multi_reduction <add>, %63, %cst_24 [1] : vector<8x8xf32> to vector<8xf32>
    %65 = vector.shape_cast %64 : vector<8xf32> to vector<8x1xf32>
    %66 = tpu.reciprocal %65 {approx = true} : vector<8x1xf32> -> vector<8x1xf32>
    %67 = vector.broadcast %66 : vector<8x1xf32> to vector<8x8xf32>
    %68 = arith.mulf %63, %67 : vector<8x8xf32>
    %69 = arith.truncf %68 : vector<8x8xf32> to vector<8x8xbf16>
    %cst_25 = arith.constant dense<0.000000e+00> : vector<8x8xf32>
    %70 = tpu.matmul %69, %56, %cst_25 {dimension_numbers = #tpu.dot_dimension_numbers<[1], [0], [0], [1], [0, 0, 1, 1], [], []>} : vector<8x8xbf16>, vector<8x8xbf16>, vector<8x8xf32> -> vector<8x8xf32>
    %71 = vector.extract_strided_slice %50 {offsets = [0, 8], sizes = [8, 8], strides = [1, 1]} : vector<8x32xf32> to vector<8x8xf32>
    %72 = arith.truncf %71 : vector<8x8xf32> to vector<8x8xbf16>
    %73 = vector.extract_strided_slice %41 {offsets = [0, 8], sizes = [8, 8], strides = [1, 1]} : vector<8x32xf32> to vector<8x8xf32>
    %74 = arith.truncf %73 : vector<8x8xf32> to vector<8x8xbf16>
    %75 = vector.extract_strided_slice %42 {offsets = [0, 8], sizes = [8, 8], strides = [1, 1]} : vector<8x32xf32> to vector<8x8xf32>
    %76 = arith.truncf %75 : vector<8x8xf32> to vector<8x8xbf16>
    %cst_26 = arith.constant dense<0.000000e+00> : vector<8x8xf32>
    %77 = tpu.matmul %72, %74, %cst_26 {dimension_numbers = #tpu.dot_dimension_numbers<[1], [1], [0], [0], [0, 0, 1, 0], [], []>} : vector<8x8xbf16>, vector<8x8xbf16>, vector<8x8xf32> -> vector<8x8xf32>
    %78 = arith.addf %77, %48 : vector<8x8xf32>
    %cst_27 = arith.constant dense<0xFF800000> : vector<8xf32>
    %79 = vector.multi_reduction <maximumf>, %78, %cst_27 [1] : vector<8x8xf32> to vector<8xf32>
    %80 = vector.shape_cast %79 : vector<8xf32> to vector<8x1xf32>
    %81 = vector.broadcast %80 : vector<8x1xf32> to vector<8x8xf32>
    %82 = arith.subf %78, %81 : vector<8x8xf32>
    %83 = math.exp %82 : vector<8x8xf32>
    %cst_28 = arith.constant dense<0.000000e+00> : vector<8xf32>
    %84 = vector.multi_reduction <add>, %83, %cst_28 [1] : vector<8x8xf32> to vector<8xf32>
    %85 = vector.shape_cast %84 : vector<8xf32> to vector<8x1xf32>
    %86 = tpu.reciprocal %85 {approx = true} : vector<8x1xf32> -> vector<8x1xf32>
    %87 = vector.broadcast %86 : vector<8x1xf32> to vector<8x8xf32>
    %88 = arith.mulf %83, %87 : vector<8x8xf32>
    %89 = arith.truncf %88 : vector<8x8xf32> to vector<8x8xbf16>
    %cst_29 = arith.constant dense<0.000000e+00> : vector<8x8xf32>
    %90 = tpu.matmul %89, %76, %cst_29 {dimension_numbers = #tpu.dot_dimension_numbers<[1], [0], [0], [1], [0, 0, 1, 1], [], []>} : vector<8x8xbf16>, vector<8x8xbf16>, vector<8x8xf32> -> vector<8x8xf32>
    %91 = vector.extract_strided_slice %50 {offsets = [0, 16], sizes = [8, 8], strides = [1, 1]} : vector<8x32xf32> to vector<8x8xf32>
    %92 = arith.truncf %91 : vector<8x8xf32> to vector<8x8xbf16>
    %93 = vector.extract_strided_slice %41 {offsets = [0, 16], sizes = [8, 8], strides = [1, 1]} : vector<8x32xf32> to vector<8x8xf32>
    %94 = arith.truncf %93 : vector<8x8xf32> to vector<8x8xbf16>
    %95 = vector.extract_strided_slice %42 {offsets = [0, 16], sizes = [8, 8], strides = [1, 1]} : vector<8x32xf32> to vector<8x8xf32>
    %96 = arith.truncf %95 : vector<8x8xf32> to vector<8x8xbf16>
    %cst_30 = arith.constant dense<0.000000e+00> : vector<8x8xf32>
    %97 = tpu.matmul %92, %94, %cst_30 {dimension_numbers = #tpu.dot_dimension_numbers<[1], [1], [0], [0], [0, 0, 1, 0], [], []>} : vector<8x8xbf16>, vector<8x8xbf16>, vector<8x8xf32> -> vector<8x8xf32>
    %98 = arith.addf %97, %48 : vector<8x8xf32>
    %cst_31 = arith.constant dense<0xFF800000> : vector<8xf32>
    %99 = vector.multi_reduction <maximumf>, %98, %cst_31 [1] : vector<8x8xf32> to vector<8xf32>
    %100 = vector.shape_cast %99 : vector<8xf32> to vector<8x1xf32>
    %101 = vector.broadcast %100 : vector<8x1xf32> to vector<8x8xf32>
    %102 = arith.subf %98, %101 : vector<8x8xf32>
    %103 = math.exp %102 : vector<8x8xf32>
    %cst_32 = arith.constant dense<0.000000e+00> : vector<8xf32>
    %104 = vector.multi_reduction <add>, %103, %cst_32 [1] : vector<8x8xf32> to vector<8xf32>
    %105 = vector.shape_cast %104 : vector<8xf32> to vector<8x1xf32>
    %106 = tpu.reciprocal %105 {approx = true} : vector<8x1xf32> -> vector<8x1xf32>
    %107 = vector.broadcast %106 : vector<8x1xf32> to vector<8x8xf32>
    %108 = arith.mulf %103, %107 : vector<8x8xf32>
    %109 = arith.truncf %108 : vector<8x8xf32> to vector<8x8xbf16>
    %cst_33 = arith.constant dense<0.000000e+00> : vector<8x8xf32>
    %110 = tpu.matmul %109, %96, %cst_33 {dimension_numbers = #tpu.dot_dimension_numbers<[1], [0], [0], [1], [0, 0, 1, 1], [], []>} : vector<8x8xbf16>, vector<8x8xbf16>, vector<8x8xf32> -> vector<8x8xf32>
    %111 = vector.extract_strided_slice %50 {offsets = [0, 24], sizes = [8, 8], strides = [1, 1]} : vector<8x32xf32> to vector<8x8xf32>
    %112 = arith.truncf %111 : vector<8x8xf32> to vector<8x8xbf16>
    %113 = vector.extract_strided_slice %41 {offsets = [0, 24], sizes = [8, 8], strides = [1, 1]} : vector<8x32xf32> to vector<8x8xf32>
    %114 = arith.truncf %113 : vector<8x8xf32> to vector<8x8xbf16>
    %115 = vector.extract_strided_slice %42 {offsets = [0, 24], sizes = [8, 8], strides = [1, 1]} : vector<8x32xf32> to vector<8x8xf32>
    %116 = arith.truncf %115 : vector<8x8xf32> to vector<8x8xbf16>
    %cst_34 = arith.constant dense<0.000000e+00> : vector<8x8xf32>
    %117 = tpu.matmul %112, %114, %cst_34 {dimension_numbers = #tpu.dot_dimension_numbers<[1], [1], [0], [0], [0, 0, 1, 0], [], []>} : vector<8x8xbf16>, vector<8x8xbf16>, vector<8x8xf32> -> vector<8x8xf32>
    %118 = arith.addf %117, %48 : vector<8x8xf32>
    %cst_35 = arith.constant dense<0xFF800000> : vector<8xf32>
    %119 = vector.multi_reduction <maximumf>, %118, %cst_35 [1] : vector<8x8xf32> to vector<8xf32>
    %120 = vector.shape_cast %119 : vector<8xf32> to vector<8x1xf32>
    %121 = vector.broadcast %120 : vector<8x1xf32> to vector<8x8xf32>
    %122 = arith.subf %118, %121 : vector<8x8xf32>
    %123 = math.exp %122 : vector<8x8xf32>
    %cst_36 = arith.constant dense<0.000000e+00> : vector<8xf32>
    %124 = vector.multi_reduction <add>, %123, %cst_36 [1] : vector<8x8xf32> to vector<8xf32>
    %125 = vector.shape_cast %124 : vector<8xf32> to vector<8x1xf32>
    %126 = tpu.reciprocal %125 {approx = true} : vector<8x1xf32> -> vector<8x1xf32>
    %127 = vector.broadcast %126 : vector<8x1xf32> to vector<8x8xf32>
    %128 = arith.mulf %123, %127 : vector<8x8xf32>
    %129 = arith.truncf %128 : vector<8x8xf32> to vector<8x8xbf16>
    %cst_37 = arith.constant dense<0.000000e+00> : vector<8x8xf32>
    %130 = tpu.matmul %129, %116, %cst_37 {dimension_numbers = #tpu.dot_dimension_numbers<[1], [0], [0], [1], [0, 0, 1, 1], [], []>} : vector<8x8xbf16>, vector<8x8xbf16>, vector<8x8xf32> -> vector<8x8xf32>
    %131 = tpu.concatenate %70, %90, %110, %130 in 1 : vector<8x8xf32>, vector<8x8xf32>, vector<8x8xf32>, vector<8x8xf32> -> vector<8x32xf32>
    %132 = arith.truncf %131 : vector<8x32xf32> to vector<8x32xbf16>
    %c0_38 = arith.constant 0 : index
    %c0_39 = arith.constant 0 : index
    %c0_40 = arith.constant 0 : index
    %133 = vector.load %arg8[%c0_38, %c0_39, %c0_40] : memref<1x32x32xbf16, #tpu.memory_space<vmem>>, vector<1x32x32xbf16>
    %134 = vector.shape_cast %133 : vector<1x32x32xbf16> to vector<32x32xbf16>
    %cst_41 = arith.constant dense<0.000000e+00> : vector<8x32xf32>
    %135 = tpu.matmul %132, %134, %cst_41 {dimension_numbers = #tpu.dot_dimension_numbers<[1], [0], [0], [1], [0, 0, 1, 1], [], []>} : vector<8x32xbf16>, vector<32x32xbf16>, vector<8x32xf32> -> vector<8x32xf32>
    %c0_42 = arith.constant 0 : index
    %c0_43 = arith.constant 0 : index
    %c0_44 = arith.constant 0 : index
    %136 = vector.load %arg9[%c0_42, %c0_43, %c0_44] : memref<1x1x32xf32, #tpu.memory_space<vmem>>, vector<1x1x32xf32>
    %137 = vector.shape_cast %136 : vector<1x1x32xf32> to vector<1x32xf32>
    %138 = vector.broadcast %137 : vector<1x32xf32> to vector<8x32xf32>
    %139 = arith.addf %135, %138 : vector<8x32xf32>
    %140 = arith.addf %3, %139 : vector<8x32xf32>
    %141 = vector.extract_strided_slice %7 {offsets = [2, 0], sizes = [1, 32], strides = [1, 1]} : vector<6x32xf32> to vector<1x32xf32>
    %142 = vector.extract_strided_slice %7 {offsets = [3, 0], sizes = [1, 32], strides = [1, 1]} : vector<6x32xf32> to vector<1x32xf32>
    %cst_45 = arith.constant dense<0.000000e+00> : vector<8xf32>
    %143 = vector.multi_reduction <add>, %140, %cst_45 [1] : vector<8x32xf32> to vector<8xf32>
    %144 = vector.shape_cast %143 : vector<8xf32> to vector<8x1xf32>
    %cst_46 = arith.constant 3.200000e+01 : f32
    %145 = vector.broadcast %cst_46 : f32 to vector<8x1xf32>
    %146 = arith.divf %144, %145 : vector<8x1xf32>
    %147 = vector.broadcast %146 : vector<8x1xf32> to vector<8x32xf32>
    %148 = arith.subf %140, %147 : vector<8x32xf32>
    %149 = arith.mulf %148, %148 : vector<8x32xf32>
    %cst_47 = arith.constant dense<0.000000e+00> : vector<8xf32>
    %150 = vector.multi_reduction <add>, %149, %cst_47 [1] : vector<8x32xf32> to vector<8xf32>
    %151 = vector.shape_cast %150 : vector<8xf32> to vector<8x1xf32>
    %cst_48 = arith.constant 3.200000e+01 : f32
    %152 = vector.broadcast %cst_48 : f32 to vector<8x1xf32>
    %153 = arith.divf %151, %152 : vector<8x1xf32>
    %154 = vector.broadcast %146 : vector<8x1xf32> to vector<8x32xf32>
    %155 = arith.subf %140, %154 : vector<8x32xf32>
    %cst_49 = arith.constant 9.99999974E-6 : f32
    %156 = vector.broadcast %cst_49 : f32 to vector<8x1xf32>
    %157 = arith.addf %153, %156 : vector<8x1xf32>
    %158 = math.rsqrt %157 : vector<8x1xf32>
    %159 = vector.broadcast %158 : vector<8x1xf32> to vector<8x32xf32>
    %160 = arith.mulf %155, %159 : vector<8x32xf32>
    %161 = vector.broadcast %141 : vector<1x32xf32> to vector<8x32xf32>
    %162 = arith.mulf %160, %161 : vector<8x32xf32>
    %163 = vector.broadcast %142 : vector<1x32xf32> to vector<8x32xf32>
    %164 = arith.addf %162, %163 : vector<8x32xf32>
    %165 = arith.truncf %164 : vector<8x32xf32> to vector<8x32xbf16>
    %c0_50 = arith.constant 0 : index
    %c0_51 = arith.constant 0 : index
    %c0_52 = arith.constant 0 : index
    %166 = vector.load %arg10[%c0_50, %c0_51, %c0_52] : memref<1x32x32xbf16, #tpu.memory_space<vmem>>, vector<1x32x32xbf16>
    %167 = vector.shape_cast %166 : vector<1x32x32xbf16> to vector<32x32xbf16>
    %cst_53 = arith.constant dense<0.000000e+00> : vector<8x32xf32>
    %168 = tpu.matmul %165, %167, %cst_53 {dimension_numbers = #tpu.dot_dimension_numbers<[1], [0], [0], [1], [0, 0, 1, 1], [], []>} : vector<8x32xbf16>, vector<32x32xbf16>, vector<8x32xf32> -> vector<8x32xf32>
    %c0_54 = arith.constant 0 : index
    %c0_55 = arith.constant 0 : index
    %c0_56 = arith.constant 0 : index
    %169 = vector.load %arg11[%c0_54, %c0_55, %c0_56] : memref<1x1x32xf32, #tpu.memory_space<vmem>>, vector<1x1x32xf32>
    %170 = vector.shape_cast %169 : vector<1x1x32xf32> to vector<1x32xf32>
    %171 = vector.broadcast %170 : vector<1x32xf32> to vector<8x32xf32>
    %172 = arith.addf %168, %171 : vector<8x32xf32>
    %173 = arith.truncf %5 : vector<10x32xf32> to vector<10x32xbf16>
    %c0_57 = arith.constant 0 : index
    %c0_58 = arith.constant 0 : index
    %c0_59 = arith.constant 0 : index
    %174 = vector.load %arg12[%c0_57, %c0_58, %c0_59] : memref<1x32x64xbf16, #tpu.memory_space<vmem>>, vector<1x32x64xbf16>
    %175 = vector.shape_cast %174 : vector<1x32x64xbf16> to vector<32x64xbf16>
    %cst_60 = arith.constant dense<0.000000e+00> : vector<10x64xf32>
    %176 = tpu.matmul %173, %175, %cst_60 {dimension_numbers = #tpu.dot_dimension_numbers<[1], [0], [0], [1], [0, 0, 1, 1], [], []>} : vector<10x32xbf16>, vector<32x64xbf16>, vector<10x64xf32> -> vector<10x64xf32>
    %c0_61 = arith.constant 0 : index
    %c0_62 = arith.constant 0 : index
    %c0_63 = arith.constant 0 : index
    %177 = vector.load %arg13[%c0_61, %c0_62, %c0_63] : memref<1x1x64xf32, #tpu.memory_space<vmem>>, vector<1x1x64xf32>
    %178 = vector.shape_cast %177 : vector<1x1x64xf32> to vector<1x64xf32>
    %179 = vector.broadcast %178 : vector<1x64xf32> to vector<10x64xf32>
    %180 = arith.addf %176, %179 : vector<10x64xf32>
    %181 = vector.extract_strided_slice %180 {offsets = [0, 0], sizes = [10, 32], strides = [1, 1]} : vector<10x64xf32> to vector<10x32xf32>
    %182 = vector.extract_strided_slice %180 {offsets = [0, 32], sizes = [10, 32], strides = [1, 1]} : vector<10x64xf32> to vector<10x32xf32>
    %cst_64 = arith.constant 0.353553385 : f32
    %183 = vector.broadcast %cst_64 : f32 to vector<8x32xf32>
    %184 = arith.mulf %172, %183 : vector<8x32xf32>
    %185 = vector.extract_strided_slice %184 {offsets = [0, 0], sizes = [8, 8], strides = [1, 1]} : vector<8x32xf32> to vector<8x8xf32>
    %186 = arith.truncf %185 : vector<8x8xf32> to vector<8x8xbf16>
    %187 = vector.extract_strided_slice %181 {offsets = [0, 0], sizes = [10, 8], strides = [1, 1]} : vector<10x32xf32> to vector<10x8xf32>
    %188 = arith.truncf %187 : vector<10x8xf32> to vector<10x8xbf16>
    %189 = vector.extract_strided_slice %182 {offsets = [0, 0], sizes = [10, 8], strides = [1, 1]} : vector<10x32xf32> to vector<10x8xf32>
    %190 = arith.truncf %189 : vector<10x8xf32> to vector<10x8xbf16>
    %cst_65 = arith.constant dense<0.000000e+00> : vector<8x10xf32>
    %191 = tpu.matmul %186, %188, %cst_65 {dimension_numbers = #tpu.dot_dimension_numbers<[1], [1], [0], [0], [0, 0, 1, 0], [], []>} : vector<8x8xbf16>, vector<10x8xbf16>, vector<8x10xf32> -> vector<8x10xf32>
    %cst_66 = arith.constant dense<0xFF800000> : vector<8xf32>
    %192 = vector.multi_reduction <maximumf>, %191, %cst_66 [1] : vector<8x10xf32> to vector<8xf32>
    %193 = vector.shape_cast %192 : vector<8xf32> to vector<8x1xf32>
    %194 = vector.broadcast %193 : vector<8x1xf32> to vector<8x10xf32>
    %195 = arith.subf %191, %194 : vector<8x10xf32>
    %196 = math.exp %195 : vector<8x10xf32>
    %cst_67 = arith.constant dense<0.000000e+00> : vector<8xf32>
    %197 = vector.multi_reduction <add>, %196, %cst_67 [1] : vector<8x10xf32> to vector<8xf32>
    %198 = vector.shape_cast %197 : vector<8xf32> to vector<8x1xf32>
    %199 = tpu.reciprocal %198 {approx = true} : vector<8x1xf32> -> vector<8x1xf32>
    %200 = vector.broadcast %199 : vector<8x1xf32> to vector<8x10xf32>
    %201 = arith.mulf %196, %200 : vector<8x10xf32>
    %202 = arith.truncf %201 : vector<8x10xf32> to vector<8x10xbf16>
    %cst_68 = arith.constant dense<0.000000e+00> : vector<8x8xf32>
    %203 = tpu.matmul %202, %190, %cst_68 {dimension_numbers = #tpu.dot_dimension_numbers<[1], [0], [0], [1], [0, 0, 1, 1], [], []>} : vector<8x10xbf16>, vector<10x8xbf16>, vector<8x8xf32> -> vector<8x8xf32>
    %204 = vector.extract_strided_slice %184 {offsets = [0, 8], sizes = [8, 8], strides = [1, 1]} : vector<8x32xf32> to vector<8x8xf32>
    %205 = arith.truncf %204 : vector<8x8xf32> to vector<8x8xbf16>
    %206 = vector.extract_strided_slice %181 {offsets = [0, 8], sizes = [10, 8], strides = [1, 1]} : vector<10x32xf32> to vector<10x8xf32>
    %207 = arith.truncf %206 : vector<10x8xf32> to vector<10x8xbf16>
    %208 = vector.extract_strided_slice %182 {offsets = [0, 8], sizes = [10, 8], strides = [1, 1]} : vector<10x32xf32> to vector<10x8xf32>
    %209 = arith.truncf %208 : vector<10x8xf32> to vector<10x8xbf16>
    %cst_69 = arith.constant dense<0.000000e+00> : vector<8x10xf32>
    %210 = tpu.matmul %205, %207, %cst_69 {dimension_numbers = #tpu.dot_dimension_numbers<[1], [1], [0], [0], [0, 0, 1, 0], [], []>} : vector<8x8xbf16>, vector<10x8xbf16>, vector<8x10xf32> -> vector<8x10xf32>
    %cst_70 = arith.constant dense<0xFF800000> : vector<8xf32>
    %211 = vector.multi_reduction <maximumf>, %210, %cst_70 [1] : vector<8x10xf32> to vector<8xf32>
    %212 = vector.shape_cast %211 : vector<8xf32> to vector<8x1xf32>
    %213 = vector.broadcast %212 : vector<8x1xf32> to vector<8x10xf32>
    %214 = arith.subf %210, %213 : vector<8x10xf32>
    %215 = math.exp %214 : vector<8x10xf32>
    %cst_71 = arith.constant dense<0.000000e+00> : vector<8xf32>
    %216 = vector.multi_reduction <add>, %215, %cst_71 [1] : vector<8x10xf32> to vector<8xf32>
    %217 = vector.shape_cast %216 : vector<8xf32> to vector<8x1xf32>
    %218 = tpu.reciprocal %217 {approx = true} : vector<8x1xf32> -> vector<8x1xf32>
    %219 = vector.broadcast %218 : vector<8x1xf32> to vector<8x10xf32>
    %220 = arith.mulf %215, %219 : vector<8x10xf32>
    %221 = arith.truncf %220 : vector<8x10xf32> to vector<8x10xbf16>
    %cst_72 = arith.constant dense<0.000000e+00> : vector<8x8xf32>
    %222 = tpu.matmul %221, %209, %cst_72 {dimension_numbers = #tpu.dot_dimension_numbers<[1], [0], [0], [1], [0, 0, 1, 1], [], []>} : vector<8x10xbf16>, vector<10x8xbf16>, vector<8x8xf32> -> vector<8x8xf32>
    %223 = vector.extract_strided_slice %184 {offsets = [0, 16], sizes = [8, 8], strides = [1, 1]} : vector<8x32xf32> to vector<8x8xf32>
    %224 = arith.truncf %223 : vector<8x8xf32> to vector<8x8xbf16>
    %225 = vector.extract_strided_slice %181 {offsets = [0, 16], sizes = [10, 8], strides = [1, 1]} : vector<10x32xf32> to vector<10x8xf32>
    %226 = arith.truncf %225 : vector<10x8xf32> to vector<10x8xbf16>
    %227 = vector.extract_strided_slice %182 {offsets = [0, 16], sizes = [10, 8], strides = [1, 1]} : vector<10x32xf32> to vector<10x8xf32>
    %228 = arith.truncf %227 : vector<10x8xf32> to vector<10x8xbf16>
    %cst_73 = arith.constant dense<0.000000e+00> : vector<8x10xf32>
    %229 = tpu.matmul %224, %226, %cst_73 {dimension_numbers = #tpu.dot_dimension_numbers<[1], [1], [0], [0], [0, 0, 1, 0], [], []>} : vector<8x8xbf16>, vector<10x8xbf16>, vector<8x10xf32> -> vector<8x10xf32>
    %cst_74 = arith.constant dense<0xFF800000> : vector<8xf32>
    %230 = vector.multi_reduction <maximumf>, %229, %cst_74 [1] : vector<8x10xf32> to vector<8xf32>
    %231 = vector.shape_cast %230 : vector<8xf32> to vector<8x1xf32>
    %232 = vector.broadcast %231 : vector<8x1xf32> to vector<8x10xf32>
    %233 = arith.subf %229, %232 : vector<8x10xf32>
    %234 = math.exp %233 : vector<8x10xf32>
    %cst_75 = arith.constant dense<0.000000e+00> : vector<8xf32>
    %235 = vector.multi_reduction <add>, %234, %cst_75 [1] : vector<8x10xf32> to vector<8xf32>
    %236 = vector.shape_cast %235 : vector<8xf32> to vector<8x1xf32>
    %237 = tpu.reciprocal %236 {approx = true} : vector<8x1xf32> -> vector<8x1xf32>
    %238 = vector.broadcast %237 : vector<8x1xf32> to vector<8x10xf32>
    %239 = arith.mulf %234, %238 : vector<8x10xf32>
    %240 = arith.truncf %239 : vector<8x10xf32> to vector<8x10xbf16>
    %cst_76 = arith.constant dense<0.000000e+00> : vector<8x8xf32>
    %241 = tpu.matmul %240, %228, %cst_76 {dimension_numbers = #tpu.dot_dimension_numbers<[1], [0], [0], [1], [0, 0, 1, 1], [], []>} : vector<8x10xbf16>, vector<10x8xbf16>, vector<8x8xf32> -> vector<8x8xf32>
    %242 = vector.extract_strided_slice %184 {offsets = [0, 24], sizes = [8, 8], strides = [1, 1]} : vector<8x32xf32> to vector<8x8xf32>
    %243 = arith.truncf %242 : vector<8x8xf32> to vector<8x8xbf16>
    %244 = vector.extract_strided_slice %181 {offsets = [0, 24], sizes = [10, 8], strides = [1, 1]} : vector<10x32xf32> to vector<10x8xf32>
    %245 = arith.truncf %244 : vector<10x8xf32> to vector<10x8xbf16>
    %246 = vector.extract_strided_slice %182 {offsets = [0, 24], sizes = [10, 8], strides = [1, 1]} : vector<10x32xf32> to vector<10x8xf32>
    %247 = arith.truncf %246 : vector<10x8xf32> to vector<10x8xbf16>
    %cst_77 = arith.constant dense<0.000000e+00> : vector<8x10xf32>
    %248 = tpu.matmul %243, %245, %cst_77 {dimension_numbers = #tpu.dot_dimension_numbers<[1], [1], [0], [0], [0, 0, 1, 0], [], []>} : vector<8x8xbf16>, vector<10x8xbf16>, vector<8x10xf32> -> vector<8x10xf32>
    %cst_78 = arith.constant dense<0xFF800000> : vector<8xf32>
    %249 = vector.multi_reduction <maximumf>, %248, %cst_78 [1] : vector<8x10xf32> to vector<8xf32>
    %250 = vector.shape_cast %249 : vector<8xf32> to vector<8x1xf32>
    %251 = vector.broadcast %250 : vector<8x1xf32> to vector<8x10xf32>
    %252 = arith.subf %248, %251 : vector<8x10xf32>
    %253 = math.exp %252 : vector<8x10xf32>
    %cst_79 = arith.constant dense<0.000000e+00> : vector<8xf32>
    %254 = vector.multi_reduction <add>, %253, %cst_79 [1] : vector<8x10xf32> to vector<8xf32>
    %255 = vector.shape_cast %254 : vector<8xf32> to vector<8x1xf32>
    %256 = tpu.reciprocal %255 {approx = true} : vector<8x1xf32> -> vector<8x1xf32>
    %257 = vector.broadcast %256 : vector<8x1xf32> to vector<8x10xf32>
    %258 = arith.mulf %253, %257 : vector<8x10xf32>
    %259 = arith.truncf %258 : vector<8x10xf32> to vector<8x10xbf16>
    %cst_80 = arith.constant dense<0.000000e+00> : vector<8x8xf32>
    %260 = tpu.matmul %259, %247, %cst_80 {dimension_numbers = #tpu.dot_dimension_numbers<[1], [0], [0], [1], [0, 0, 1, 1], [], []>} : vector<8x10xbf16>, vector<10x8xbf16>, vector<8x8xf32> -> vector<8x8xf32>
    %261 = tpu.concatenate %203, %222, %241, %260 in 1 : vector<8x8xf32>, vector<8x8xf32>, vector<8x8xf32>, vector<8x8xf32> -> vector<8x32xf32>
    %262 = arith.truncf %261 : vector<8x32xf32> to vector<8x32xbf16>
    %c0_81 = arith.constant 0 : index
    %c0_82 = arith.constant 0 : index
    %c0_83 = arith.constant 0 : index
    %263 = vector.load %arg14[%c0_81, %c0_82, %c0_83] : memref<1x32x32xbf16, #tpu.memory_space<vmem>>, vector<1x32x32xbf16>
    %264 = vector.shape_cast %263 : vector<1x32x32xbf16> to vector<32x32xbf16>
    %cst_84 = arith.constant dense<0.000000e+00> : vector<8x32xf32>
    %265 = tpu.matmul %262, %264, %cst_84 {dimension_numbers = #tpu.dot_dimension_numbers<[1], [0], [0], [1], [0, 0, 1, 1], [], []>} : vector<8x32xbf16>, vector<32x32xbf16>, vector<8x32xf32> -> vector<8x32xf32>
    %c0_85 = arith.constant 0 : index
    %c0_86 = arith.constant 0 : index
    %c0_87 = arith.constant 0 : index
    %266 = vector.load %arg15[%c0_85, %c0_86, %c0_87] : memref<1x1x32xf32, #tpu.memory_space<vmem>>, vector<1x1x32xf32>
    %267 = vector.shape_cast %266 : vector<1x1x32xf32> to vector<1x32xf32>
    %268 = vector.broadcast %267 : vector<1x32xf32> to vector<8x32xf32>
    %269 = arith.addf %265, %268 : vector<8x32xf32>
    %270 = arith.addf %140, %269 : vector<8x32xf32>
    %271 = vector.extract_strided_slice %7 {offsets = [4, 0], sizes = [1, 32], strides = [1, 1]} : vector<6x32xf32> to vector<1x32xf32>
    %272 = vector.extract_strided_slice %7 {offsets = [5, 0], sizes = [1, 32], strides = [1, 1]} : vector<6x32xf32> to vector<1x32xf32>
    %cst_88 = arith.constant dense<0.000000e+00> : vector<8xf32>
    %273 = vector.multi_reduction <add>, %270, %cst_88 [1] : vector<8x32xf32> to vector<8xf32>
    %274 = vector.shape_cast %273 : vector<8xf32> to vector<8x1xf32>
    %cst_89 = arith.constant 3.200000e+01 : f32
    %275 = vector.broadcast %cst_89 : f32 to vector<8x1xf32>
    %276 = arith.divf %274, %275 : vector<8x1xf32>
    %277 = vector.broadcast %276 : vector<8x1xf32> to vector<8x32xf32>
    %278 = arith.subf %270, %277 : vector<8x32xf32>
    %279 = arith.mulf %278, %278 : vector<8x32xf32>
    %cst_90 = arith.constant dense<0.000000e+00> : vector<8xf32>
    %280 = vector.multi_reduction <add>, %279, %cst_90 [1] : vector<8x32xf32> to vector<8xf32>
    %281 = vector.shape_cast %280 : vector<8xf32> to vector<8x1xf32>
    %cst_91 = arith.constant 3.200000e+01 : f32
    %282 = vector.broadcast %cst_91 : f32 to vector<8x1xf32>
    %283 = arith.divf %281, %282 : vector<8x1xf32>
    %284 = vector.broadcast %276 : vector<8x1xf32> to vector<8x32xf32>
    %285 = arith.subf %270, %284 : vector<8x32xf32>
    %cst_92 = arith.constant 9.99999974E-6 : f32
    %286 = vector.broadcast %cst_92 : f32 to vector<8x1xf32>
    %287 = arith.addf %283, %286 : vector<8x1xf32>
    %288 = math.rsqrt %287 : vector<8x1xf32>
    %289 = vector.broadcast %288 : vector<8x1xf32> to vector<8x32xf32>
    %290 = arith.mulf %285, %289 : vector<8x32xf32>
    %291 = vector.broadcast %271 : vector<1x32xf32> to vector<8x32xf32>
    %292 = arith.mulf %290, %291 : vector<8x32xf32>
    %293 = vector.broadcast %272 : vector<1x32xf32> to vector<8x32xf32>
    %294 = arith.addf %292, %293 : vector<8x32xf32>
    %295 = arith.truncf %294 : vector<8x32xf32> to vector<8x32xbf16>
    %c0_93 = arith.constant 0 : index
    %c0_94 = arith.constant 0 : index
    %c0_95 = arith.constant 0 : index
    %296 = vector.load %arg16[%c0_93, %c0_94, %c0_95] : memref<1x32x64xbf16, #tpu.memory_space<vmem>>, vector<1x32x64xbf16>
    %297 = vector.shape_cast %296 : vector<1x32x64xbf16> to vector<32x64xbf16>
    %cst_96 = arith.constant dense<0.000000e+00> : vector<8x64xf32>
    %298 = tpu.matmul %295, %297, %cst_96 {dimension_numbers = #tpu.dot_dimension_numbers<[1], [0], [0], [1], [0, 0, 1, 1], [], []>} : vector<8x32xbf16>, vector<32x64xbf16>, vector<8x64xf32> -> vector<8x64xf32>
    %c0_97 = arith.constant 0 : index
    %c0_98 = arith.constant 0 : index
    %c0_99 = arith.constant 0 : index
    %299 = vector.load %arg17[%c0_97, %c0_98, %c0_99] : memref<1x1x64xf32, #tpu.memory_space<vmem>>, vector<1x1x64xf32>
    %300 = vector.shape_cast %299 : vector<1x1x64xf32> to vector<1x64xf32>
    %301 = vector.broadcast %300 : vector<1x64xf32> to vector<8x64xf32>
    %302 = arith.addf %298, %301 : vector<8x64xf32>
    %cst_100 = arith.constant 0.000000e+00 : f32
    %303 = vector.broadcast %cst_100 : f32 to vector<8x64xf32>
    %304 = arith.maximumf %302, %303 : vector<8x64xf32>
    %305 = arith.truncf %304 : vector<8x64xf32> to vector<8x64xbf16>
    %c0_101 = arith.constant 0 : index
    %c0_102 = arith.constant 0 : index
    %c0_103 = arith.constant 0 : index
    %306 = vector.load %arg18[%c0_101, %c0_102, %c0_103] : memref<1x64x32xbf16, #tpu.memory_space<vmem>>, vector<1x64x32xbf16>
    %307 = vector.shape_cast %306 : vector<1x64x32xbf16> to vector<64x32xbf16>
    %cst_104 = arith.constant dense<0.000000e+00> : vector<8x32xf32>
    %308 = tpu.matmul %305, %307, %cst_104 {dimension_numbers = #tpu.dot_dimension_numbers<[1], [0], [0], [1], [0, 0, 1, 1], [], []>} : vector<8x64xbf16>, vector<64x32xbf16>, vector<8x32xf32> -> vector<8x32xf32>
    %c0_105 = arith.constant 0 : index
    %c0_106 = arith.constant 0 : index
    %c0_107 = arith.constant 0 : index
    %309 = vector.load %arg19[%c0_105, %c0_106, %c0_107] : memref<1x1x32xf32, #tpu.memory_space<vmem>>, vector<1x1x32xf32>
    %310 = vector.shape_cast %309 : vector<1x1x32xf32> to vector<1x32xf32>
    %311 = vector.broadcast %310 : vector<1x32xf32> to vector<8x32xf32>
    %312 = arith.addf %308, %311 : vector<8x32xf32>
    %313 = arith.addf %270, %312 : vector<8x32xf32>
    %c0_108 = arith.constant 0 : index
    %c0_109 = arith.constant 0 : index
    %314 = vector.load %arg21[%c0_108, %c0_109] : memref<8x32xf32, #tpu.memory_space<vmem>>, vector<8x32xf32>
    tpu.vector_store %arg21[%c0_108, %c0_109], %313 {strides = array<i32>} : memref<8x32xf32, #tpu.memory_space<vmem>>, vector<8x32xf32>,
    %c1_i32 = arith.constant 1 : i32
    %315 = arith.cmpi eq, %arg1, %c1_i32 : i32
    %316 = arith.extui %315 : i1 to i32
    %c0_i32_110 = arith.constant 0 : i32
    %317 = arith.cmpi ne, %316, %c0_i32_110 : i32
    scf.if %317 {
      %c2 = arith.constant 2 : index
      %c0_111 = arith.constant 0 : index
      %318 = vector.load %arg4[%c2, %c0_111] : memref<4x32xf32, #tpu.memory_space<vmem>>, vector<1x32xf32>
      %c3 = arith.constant 3 : index
      %c0_112 = arith.constant 0 : index
      %319 = vector.load %arg4[%c3, %c0_112] : memref<4x32xf32, #tpu.memory_space<vmem>>, vector<1x32xf32>
      %cst_113 = arith.constant dense<0.000000e+00> : vector<8xf32>
      %320 = vector.multi_reduction <add>, %313, %cst_113 [1] : vector<8x32xf32> to vector<8xf32>
      %321 = vector.shape_cast %320 : vector<8xf32> to vector<8x1xf32>
      %cst_114 = arith.constant 3.200000e+01 : f32
      %322 = vector.broadcast %cst_114 : f32 to vector<8x1xf32>
      %323 = arith.divf %321, %322 : vector<8x1xf32>
      %324 = vector.broadcast %323 : vector<8x1xf32> to vector<8x32xf32>
      %325 = arith.subf %313, %324 : vector<8x32xf32>
      %326 = arith.mulf %325, %325 : vector<8x32xf32>
      %cst_115 = arith.constant dense<0.000000e+00> : vector<8xf32>
      %327 = vector.multi_reduction <add>, %326, %cst_115 [1] : vector<8x32xf32> to vector<8xf32>
      %328 = vector.shape_cast %327 : vector<8xf32> to vector<8x1xf32>
      %cst_116 = arith.constant 3.200000e+01 : f32
      %329 = vector.broadcast %cst_116 : f32 to vector<8x1xf32>
      %330 = arith.divf %328, %329 : vector<8x1xf32>
      %331 = vector.broadcast %323 : vector<8x1xf32> to vector<8x32xf32>
      %332 = arith.subf %313, %331 : vector<8x32xf32>
      %cst_117 = arith.constant 9.99999974E-6 : f32
      %333 = vector.broadcast %cst_117 : f32 to vector<8x1xf32>
      %334 = arith.addf %330, %333 : vector<8x1xf32>
      %335 = math.rsqrt %334 : vector<8x1xf32>
      %336 = vector.broadcast %335 : vector<8x1xf32> to vector<8x32xf32>
      %337 = arith.mulf %332, %336 : vector<8x32xf32>
      %338 = vector.broadcast %318 : vector<1x32xf32> to vector<8x32xf32>
      %339 = arith.mulf %337, %338 : vector<8x32xf32>
      %340 = vector.broadcast %319 : vector<1x32xf32> to vector<8x32xf32>
      %341 = arith.addf %339, %340 : vector<8x32xf32>
      %c0_118 = arith.constant 0 : index
      %c0_119 = arith.constant 0 : index
      %c0_120 = arith.constant 0 : index
      %342 = vector.load %arg20[%c0_118, %c0_119, %c0_120] : memref<1x8x32xf32, #tpu.memory_space<vmem>>, vector<1x8x32xf32>
      %343 = vector.shape_cast %342 : vector<1x8x32xf32> to vector<8x32xf32>
      %344 = vector.shape_cast %341 : vector<8x32xf32> to vector<1x8x32xf32>
      tpu.vector_store %arg20[%c0_118, %c0_119, %c0_120], %344 {strides = array<i32>} : memref<1x8x32xf32, #tpu.memory_space<vmem>>, vector<1x8x32xf32>,
    } else {
    }
    return
  }
  func.func @transform_0(%arg0: i32, %arg1: i32) -> (i32, i32, i32) {
    %c0_i32 = arith.constant 0 : i32
    %c0_i32_0 = arith.constant 0 : i32
    %c0_i32_1 = arith.constant 0 : i32
    return %arg0, %c0_i32, %c0_i32_0 : i32, i32, i32
  }
  func.func @transform_1(%arg0: i32, %arg1: i32) -> (i32, i32, i32) {
    %c0_i32 = arith.constant 0 : i32
    %c0_i32_0 = arith.constant 0 : i32
    %c0_i32_1 = arith.constant 0 : i32
    return %arg0, %c0_i32, %c0_i32_0 : i32, i32, i32
  }
  func.func @transform_2(%arg0: i32, %arg1: i32) -> (i32, i32) {
    %c0_i32 = arith.constant 0 : i32
    %c0_i32_0 = arith.constant 0 : i32
    %c0_i32_1 = arith.constant 0 : i32
    return %c0_i32, %c0_i32_0 : i32, i32
  }
  func.func @transform_3(%arg0: i32, %arg1: i32) -> (i32, i32, i32) {
    %c0_i32 = arith.constant 0 : i32
    %c0_i32_0 = arith.constant 0 : i32
    %c0_i32_1 = arith.constant 0 : i32
    return %arg1, %c0_i32, %c0_i32_0 : i32, i32, i32
  }
  func.func @transform_4(%arg0: i32, %arg1: i32) -> (i32, i32, i32) {
    %c0_i32 = arith.constant 0 : i32
    %c0_i32_0 = arith.constant 0 : i32
    %c0_i32_1 = arith.constant 0 : i32
    return %arg1, %c0_i32, %c0_i32_0 : i32, i32, i32
  }
  func.func @transform_5(%arg0: i32, %arg1: i32) -> (i32, i32, i32) {
    %c0_i32 = arith.constant 0 : i32
    %c0_i32_0 = arith.constant 0 : i32
    %c0_i32_1 = arith.constant 0 : i32
    return %arg1, %c0_i32, %c0_i32_0 : i32, i32, i32
  }
  func.func @transform_6(%arg0: i32, %arg1: i32) -> (i32, i32, i32) {
    %c0_i32 = arith.constant 0 : i32
    %c0_i32_0 = arith.constant 0 : i32
    %c0_i32_1 = arith.constant 0 : i32
    return %arg1, %c0_i32, %c0_i32_0 : i32, i32, i32
  }
  func.func @transform_7(%arg0: i32, %arg1: i32) -> (i32, i32, i32) {
    %c0_i32 = arith.constant 0 : i32
    %c0_i32_0 = arith.constant 0 : i32
    %c0_i32_1 = arith.constant 0 : i32
    return %arg1, %c0_i32, %c0_i32_0 : i32, i32, i32
  }
  func.func @transform_8(%arg0: i32, %arg1: i32) -> (i32, i32, i32) {
    %c0_i32 = arith.constant 0 : i32
    %c0_i32_0 = arith.constant 0 : i32
    %c0_i32_1 = arith.constant 0 : i32
    return %arg1, %c0_i32, %c0_i32_0 : i32, i32, i32
  }
  func.func @transform_9(%arg0: i32, %arg1: i32) -> (i32, i32, i32) {
    %c0_i32 = arith.constant 0 : i32
    %c0_i32_0 = arith.constant 0 : i32
    %c0_i32_1 = arith.constant 0 : i32
    return %arg1, %c0_i32, %c0_i32_0 : i32, i32, i32
  }
  func.func @transform_10(%arg0: i32, %arg1: i32) -> (i32, i32, i32) {
    %c0_i32 = arith.constant 0 : i32
    %c0_i32_0 = arith.constant 0 : i32
    %c0_i32_1 = arith.constant 0 : i32
    return %arg1, %c0_i32, %c0_i32_0 : i32, i32, i32
  }
  func.func @transform_11(%arg0: i32, %arg1: i32) -> (i32, i32, i32) {
    %c0_i32 = arith.constant 0 : i32
    %c0_i32_0 = arith.constant 0 : i32
    %c0_i32_1 = arith.constant 0 : i32
    return %arg1, %c0_i32, %c0_i32_0 : i32, i32, i32
  }
  func.func @transform_12(%arg0: i32, %arg1: i32) -> (i32, i32, i32) {
    %c0_i32 = arith.constant 0 : i32
    %c0_i32_0 = arith.constant 0 : i32
    %c0_i32_1 = arith.constant 0 : i32
    return %arg1, %c0_i32, %c0_i32_0 : i32, i32, i32
  }
  func.func @transform_13(%arg0: i32, %arg1: i32) -> (i32, i32, i32) {
    %c0_i32 = arith.constant 0 : i32
    %c0_i32_0 = arith.constant 0 : i32
    %c0_i32_1 = arith.constant 0 : i32
    return %arg1, %c0_i32, %c0_i32_0 : i32, i32, i32
  }
  func.func @transform_14(%arg0: i32, %arg1: i32) -> (i32, i32, i32) {
    %c0_i32 = arith.constant 0 : i32
    %c0_i32_0 = arith.constant 0 : i32
    %c0_i32_1 = arith.constant 0 : i32
    return %arg1, %c0_i32, %c0_i32_0 : i32, i32, i32
  }
  func.func @transform_15(%arg0: i32, %arg1: i32) -> (i32, i32, i32) {
    %c0_i32 = arith.constant 0 : i32
    %c0_i32_0 = arith.constant 0 : i32
    %c0_i32_1 = arith.constant 0 : i32
    return %arg1, %c0_i32, %c0_i32_0 : i32, i32, i32
  }
  func.func @transform_16(%arg0: i32, %arg1: i32) -> (i32, i32, i32) {
    %c0_i32 = arith.constant 0 : i32
    %c0_i32_0 = arith.constant 0 : i32
    %c0_i32_1 = arith.constant 0 : i32
    return %arg1, %c0_i32, %c0_i32_0 : i32, i32, i32
  }
  func.func @transform_17(%arg0: i32, %arg1: i32) -> (i32, i32, i32) {
    %c0_i32 = arith.constant 0 : i32
    %c0_i32_0 = arith.constant 0 : i32
    %c0_i32_1 = arith.constant 0 : i32
    return %arg1, %c0_i32, %c0_i32_0 : i32, i32, i32
  }
  func.func @transform_18(%arg0: i32, %arg1: i32) -> (i32, i32, i32) {
    %c0_i32 = arith.constant 0 : i32
    %c0_i32_0 = arith.constant 0 : i32
    %c0_i32_1 = arith.constant 0 : i32
    return %arg0, %c0_i32, %c0_i32_0 : i32, i32, i32
  }
}

</mosaic_0001>

<llo_original>
// kernel: transformer_decoder_forward.1
$region0: #{transformer_decoder_forward.1}
  #allocation0 [shape = 'u32[]', space=smem, size = 0x4, offset = 0x4, fixed_abs, tag = 'smem constant byte address 0x4 - core index']
  #allocation1 [shape = 'u32[144,128]{1,0:T(1,128)}', space=vmem, size = 0x12000, scoped, tag = 'internal scratch']
  #allocation2 [shape = 'f32[8,32]{1,0:T(8,128)}', space=vmem, size = 0x1000, scoped, tag = 'scratch operand']
  %s0 = inlined_call_operand.vmem [shape: f32[2,8,32], index: 0, kind: input, shape index: {}]
  %s1 = inlined_call_operand.vmem [shape: f32[2,10,32], index: 1, kind: input, shape index: {}]
  %s2 = inlined_call_operand.vmem [shape: f32[4,32], index: 2, kind: input, shape index: {}]
  %s3 = inlined_call_operand.vmem [shape: f32[2,6,32], index: 3, kind: input, shape index: {}]
  %s4 = inlined_call_operand.vmem [shape: bf16[2,32,96], index: 4, kind: input, shape index: {}]
  %s5 = inlined_call_operand.vmem [shape: f32[2,1,96], index: 5, kind: input, shape index: {}]
  %s6 = inlined_call_operand.vmem [shape: bf16[2,32,32], index: 6, kind: input, shape index: {}]
  %s7 = inlined_call_operand.vmem [shape: f32[2,1,32], index: 7, kind: input, shape index: {}]
  %s8 = inlined_call_operand.vmem [shape: bf16[2,32,32], index: 8, kind: input, shape index: {}]
  %s9 = inlined_call_operand.vmem [shape: f32[2,1,32], index: 9, kind: input, shape index: {}]
  %s10 = inlined_call_operand.vmem [shape: bf16[2,32,64], index: 10, kind: input, shape index: {}]
  %s11 = inlined_call_operand.vmem [shape: f32[2,1,64], index: 11, kind: input, shape index: {}]
  %s12 = inlined_call_operand.vmem [shape: bf16[2,32,32], index: 12, kind: input, shape index: {}]
  %s13 = inlined_call_operand.vmem [shape: f32[2,1,32], index: 13, kind: input, shape index: {}]
  %s14 = inlined_call_operand.vmem [shape: bf16[2,32,64], index: 14, kind: input, shape index: {}]
  %s15 = inlined_call_operand.vmem [shape: f32[2,1,64], index: 15, kind: input, shape index: {}]
  %s16 = inlined_call_operand.vmem [shape: bf16[2,64,32], index: 16, kind: input, shape index: {}]
  %s17 = inlined_call_operand.vmem [shape: f32[2,1,32], index: 17, kind: input, shape index: {}]
  %s18 = inlined_call_operand.vmem [shape: f32[2,8,32], index: 18, kind: output, shape index: {}]
  %s19 = sld [smem:[#allocation0]]
  $region113: #{transformer_decoder_forward.1} parent=0
    _
  %s21 = ssub.s32 1, %s19
  %s22 = scalar_select 0, %s21, %s19
  loop: start=0, step=1, limit=6
  $region2: #{transformer_decoder_forward.1} parent=0 // loop_pre_header
    _
  $region3: #{transformer_decoder_forward.1} parent=0 // loop_header
    %s24 = sphi 0, %s28
    %p25 = scmp.ge.s32.totalorder %s24, 6
    %s31 = sphi 0, %s43
    %s32 = sphi 0, %s39
    %s33 = sphi 0, %s31
    %s34 = sphi 0, %s32
    %s35 = sphi 0, %s33
    %s36 = sphi 0, %s34
    %s46 = sphi 0, %s48
    %s49 = sphi 0, %s46
    %s50 = sphi 0, %s49
    %s66 = sphi 0, %s50
    %s72 = sphi 0, %s74
    %s75 = sphi 0, %s72
    %s76 = sphi 0, %s75
    %s92 = sphi 0, %s76
    %s96 = sphi 0, %s96
    %s98 = sphi 0, %s96
    %s99 = sphi 0, %s98
    %s113 = sphi 0, %s99
    %s119 = sphi 0, %s121
    %s122 = sphi 0, %s119
    %s123 = sphi 0, %s122
    %s139 = sphi 0, %s123
    %s145 = sphi 0, %s147
    %s148 = sphi 0, %s145
    %s149 = sphi 0, %s148
    %s165 = sphi 0, %s149
    %s171 = sphi 0, %s173
    %s174 = sphi 0, %s171
    %s175 = sphi 0, %s174
    %s191 = sphi 0, %s175
    %s197 = sphi 0, %s199
    %s200 = sphi 0, %s197
    %s201 = sphi 0, %s200
    %s217 = sphi 0, %s201
    %s223 = sphi 0, %s225
    %s226 = sphi 0, %s223
    %s227 = sphi 0, %s226
    %s243 = sphi 0, %s227
    %s249 = sphi 0, %s251
    %s252 = sphi 0, %s249
    %s253 = sphi 0, %s252
    %s269 = sphi 0, %s253
    %s275 = sphi 0, %s277
    %s278 = sphi 0, %s275
    %s279 = sphi 0, %s278
    %s295 = sphi 0, %s279
    %s301 = sphi 0, %s303
    %s304 = sphi 0, %s301
    %s305 = sphi 0, %s304
    %s321 = sphi 0, %s305
    %s327 = sphi 0, %s329
    %s330 = sphi 0, %s327
    %s331 = sphi 0, %s330
    %s347 = sphi 0, %s331
    %s353 = sphi 0, %s355
    %s356 = sphi 0, %s353
    %s357 = sphi 0, %s356
    %s373 = sphi 0, %s357
    %s379 = sphi 0, %s381
    %s382 = sphi 0, %s379
    %s383 = sphi 0, %s382
    %s399 = sphi 0, %s383
    %s405 = sphi 0, %s407
    %s408 = sphi 0, %s405
    %s409 = sphi 0, %s408
    %s425 = sphi 0, %s409
    %s431 = sphi 0, %s433
    %s434 = sphi 0, %s431
    %s435 = sphi 0, %s434
    %s451 = sphi 0, %s435
    %s457 = sphi 0, %s459
    %s460 = sphi 0, %s457
    %s461 = sphi 0, %s460
    %s477 = sphi 0, %s461
    %s483 = sphi 0, %s485
    %s486 = sphi 0, %s483
    %s487 = sphi 0, %s486
    %s503 = sphi 0, %s487
    %s509 = sphi 0, %s511
    %s512 = sphi 0, %s509
    %s513 = sphi 0, %s512
    %s529 = sphi 0, %s513
  $region4: #{transformer_decoder_forward.1} parent=0 // loop_header_branch
    %27 = sbr.rel (%p25) target = $region8
  $region5: #{transformer_decoder_forward.1} parent=0 // loop_body
    %s29 = ssub.s32 %s24, 1
    %s30 = ssub.s32 %s24, 2
    %s37 = sadd.s32 1, %s32
    %p38 = scmp.ge.s32.totalorder %s37, 2
    %s39 = scalar_select %p38, 0, %s37
    %s40 = sadd.s32 1, %s31
    %s41 = scalar_select %p38, %s40, %s31
    %p42 = scmp.ge.s32.totalorder %s41, 2
    %s43 = scalar_select %p42, 0, %s41
    %s44 = ssub.s32 %s31, %s43
    %p45 = scmp.eq.s32.totalorder %s44, 0
    %s47 = sadd.s32 %s46, 1
    %s48 = scalar_select %p45, %s46, %s47
    %p51 = pneg %p45
    %p52 = scmp.eq.s32.totalorder %s24, 3
    %p53 = por %p51, %p52
    %p54 = scmp.ne.s32.totalorder %s46, %s49
    %p55 = scmp.eq.s32.totalorder %s24, 0
    %p56 = por %p54, %p55
    %p57 = scmp.ne.s32.totalorder %s46, %s49
    %p58 = scmp.eq.s32.totalorder %s29, 3
    %p59 = por %p57, %p58
    %p60 = scmp.ne.s32.totalorder %s49, %s50
    %p61 = scmp.eq.s32.totalorder %s29, 0
    %p62 = por %p60, %p61
    %p63 = scmp.ne.s32.totalorder %s49, %s50
    %p64 = scmp.eq.s32.totalorder %s30, 3
    %p65 = por %p63, %p64
    %p67 = scmp.ne.s32.totalorder %s50, %s66
    %p68 = scmp.eq.s32.totalorder %s30, 0
    %p69 = por %p67, %p68
    %s70 = ssub.s32 %s31, %s43
    %p71 = scmp.eq.s32.totalorder %s70, 0
    %s73 = sadd.s32 %s72, 1
    %s74 = scalar_select %p71, %s72, %s73
    %p77 = pneg %p71
    %p78 = scmp.eq.s32.totalorder %s24, 3
    %p79 = por %p77, %p78
    %p80 = scmp.ne.s32.totalorder %s72, %s75
    %p81 = scmp.eq.s32.totalorder %s24, 0
    %p82 = por %p80, %p81
    %p83 = scmp.ne.s32.totalorder %s72, %s75
    %p84 = scmp.eq.s32.totalorder %s29, 3
    %p85 = por %p83, %p84
    %p86 = scmp.ne.s32.totalorder %s75, %s76
    %p87 = scmp.eq.s32.totalorder %s29, 0
    %p88 = por %p86, %p87
    %p89 = scmp.ne.s32.totalorder %s75, %s76
    %p90 = scmp.eq.s32.totalorder %s30, 3
    %p91 = por %p89, %p90
    %p93 = scmp.ne.s32.totalorder %s76, %s92
    %p94 = scmp.eq.s32.totalorder %s30, 0
    %p95 = por %p93, %p94
    %s97 = sadd.s32 %s96, 1
    %p100 = scmp.eq.s32.totalorder %s24, 3
    %p101 = scmp.ne.s32.totalorder %s96, %s98
    %p102 = scmp.eq.s32.totalorder %s24, 0
    %p103 = por %p101, %p102
    %p104 = scmp.ne.s32.totalorder %s96, %s98
    %p105 = scmp.eq.s32.totalorder %s29, 3
    %p106 = por %p104, %p105
    %p107 = scmp.ne.s32.totalorder %s98, %s99
    %p108 = scmp.eq.s32.totalorder %s29, 0
    %p109 = por %p107, %p108
    %p110 = scmp.ne.s32.totalorder %s98, %s99
    %p111 = scmp.eq.s32.totalorder %s30, 3
    %p112 = por %p110, %p111
    %p114 = scmp.ne.s32.totalorder %s99, %s113
    %p115 = scmp.eq.s32.totalorder %s30, 0
    %p116 = por %p114, %p115
    %s117 = ssub.s32 %s32, %s39
    %p118 = scmp.eq.s32.totalorder %s117, 0
    %s120 = sadd.s32 %s119, 1
    %s121 = scalar_select %p118, %s119, %s120
    %p124 = pneg %p118
    %p125 = scmp.eq.s32.totalorder %s24, 3
    %p126 = por %p124, %p125
    %p127 = scmp.ne.s32.totalorder %s119, %s122
    %p128 = scmp.eq.s32.totalorder %s24, 0
    %p129 = por %p127, %p128
    %p130 = scmp.ne.s32.totalorder %s119, %s122
    %p131 = scmp.eq.s32.totalorder %s29, 3
    %p132 = por %p130, %p131
    %p133 = scmp.ne.s32.totalorder %s122, %s123
    %p134 = scmp.eq.s32.totalorder %s29, 0
    %p135 = por %p133, %p134
    %p136 = scmp.ne.s32.totalorder %s122, %s123
    %p137 = scmp.eq.s32.totalorder %s30, 3
    %p138 = por %p136, %p137
    %p140 = scmp.ne.s32.totalorder %s123, %s139
    %p141 = scmp.eq.s32.totalorder %s30, 0
    %p142 = por %p140, %p141
    %s143 = ssub.s32 %s32, %s39
    %p144 = scmp.eq.s32.totalorder %s143, 0
    %s146 = sadd.s32 %s145, 1
    %s147 = scalar_select %p144, %s145, %s146
    %p150 = pneg %p144
    %p151 = scmp.eq.s32.totalorder %s24, 3
    %p152 = por %p150, %p151
    %p153 = scmp.ne.s32.totalorder %s145, %s148
    %p154 = scmp.eq.s32.totalorder %s24, 0
    %p155 = por %p153, %p154
    %p156 = scmp.ne.s32.totalorder %s145, %s148
    %p157 = scmp.eq.s32.totalorder %s29, 3
    %p158 = por %p156, %p157
    %p159 = scmp.ne.s32.totalorder %s148, %s149
    %p160 = scmp.eq.s32.totalorder %s29, 0
    %p161 = por %p159, %p160
    %p162 = scmp.ne.s32.totalorder %s148, %s149
    %p163 = scmp.eq.s32.totalorder %s30, 3
    %p164 = por %p162, %p163
    %p166 = scmp.ne.s32.totalorder %s149, %s165
    %p167 = scmp.eq.s32.totalorder %s30, 0
    %p168 = por %p166, %p167
    %s169 = ssub.s32 %s32, %s39
    %p170 = scmp.eq.s32.totalorder %s169, 0
    %s172 = sadd.s32 %s171, 1
    %s173 = scalar_select %p170, %s171, %s172
    %p176 = pneg %p170
    %p177 = scmp.eq.s32.totalorder %s24, 3
    %p178 = por %p176, %p177
    %p179 = scmp.ne.s32.totalorder %s171, %s174
    %p180 = scmp.eq.s32.totalorder %s24, 0
    %p181 = por %p179, %p180
    %p182 = scmp.ne.s32.totalorder %s171, %s174
    %p183 = scmp.eq.s32.totalorder %s29, 3
    %p184 = por %p182, %p183
    %p185 = scmp.ne.s32.totalorder %s174, %s175
    %p186 = scmp.eq.s32.totalorder %s29, 0
    %p187 = por %p185, %p186
    %p188 = scmp.ne.s32.totalorder %s174, %s175
    %p189 = scmp.eq.s32.totalorder %s30, 3
    %p190 = por %p188, %p189
    %p192 = scmp.ne.s32.totalorder %s175, %s191
    %p193 = scmp.eq.s32.totalorder %s30, 0
    %p194 = por %p192, %p193
    %s195 = ssub.s32 %s32, %s39
    %p196 = scmp.eq.s32.totalorder %s195, 0
    %s198 = sadd.s32 %s197, 1
    %s199 = scalar_select %p196, %s197, %s198
    %p202 = pneg %p196
    %p203 = scmp.eq.s32.totalorder %s24, 3
    %p204 = por %p202, %p203
    %p205 = scmp.ne.s32.totalorder %s197, %s200
    %p206 = scmp.eq.s32.totalorder %s24, 0
    %p207 = por %p205, %p206
    %p208 = scmp.ne.s32.totalorder %s197, %s200
    %p209 = scmp.eq.s32.totalorder %s29, 3
    %p210 = por %p208, %p209
    %p211 = scmp.ne.s32.totalorder %s200, %s201
    %p212 = scmp.eq.s32.totalorder %s29, 0
    %p213 = por %p211, %p212
    %p214 = scmp.ne.s32.totalorder %s200, %s201
    %p215 = scmp.eq.s32.totalorder %s30, 3
    %p216 = por %p214, %p215
    %p218 = scmp.ne.s32.totalorder %s201, %s217
    %p219 = scmp.eq.s32.totalorder %s30, 0
    %p220 = por %p218, %p219
    %s221 = ssub.s32 %s32, %s39
    %p222 = scmp.eq.s32.totalorder %s221, 0
    %s224 = sadd.s32 %s223, 1
    %s225 = scalar_select %p222, %s223, %s224
    %p228 = pneg %p222
    %p229 = scmp.eq.s32.totalorder %s24, 3
    %p230 = por %p228, %p229
    %p231 = scmp.ne.s32.totalorder %s223, %s226
    %p232 = scmp.eq.s32.totalorder %s24, 0
    %p233 = por %p231, %p232
    %p234 = scmp.ne.s32.totalorder %s223, %s226
    %p235 = scmp.eq.s32.totalorder %s29, 3
    %p236 = por %p234, %p235
    %p237 = scmp.ne.s32.totalorder %s226, %s227
    %p238 = scmp.eq.s32.totalorder %s29, 0
    %p239 = por %p237, %p238
    %p240 = scmp.ne.s32.totalorder %s226, %s227
    %p241 = scmp.eq.s32.totalorder %s30, 3
    %p242 = por %p240, %p241
    %p244 = scmp.ne.s32.totalorder %s227, %s243
    %p245 = scmp.eq.s32.totalorder %s30, 0
    %p246 = por %p244, %p245
    %s247 = ssub.s32 %s32, %s39
    %p248 = scmp.eq.s32.totalorder %s247, 0
    %s250 = sadd.s32 %s249, 1
    %s251 = scalar_select %p248, %s249, %s250
    %p254 = pneg %p248
    %p255 = scmp.eq.s32.totalorder %s24, 3
    %p256 = por %p254, %p255
    %p257 = scmp.ne.s32.totalorder %s249, %s252
    %p258 = scmp.eq.s32.totalorder %s24, 0
    %p259 = por %p257, %p258
    %p260 = scmp.ne.s32.totalorder %s249, %s252
    %p261 = scmp.eq.s32.totalorder %s29, 3
    %p262 = por %p260, %p261
    %p263 = scmp.ne.s32.totalorder %s252, %s253
    %p264 = scmp.eq.s32.totalorder %s29, 0
    %p265 = por %p263, %p264
    %p266 = scmp.ne.s32.totalorder %s252, %s253
    %p267 = scmp.eq.s32.totalorder %s30, 3
    %p268 = por %p266, %p267
    %p270 = scmp.ne.s32.totalorder %s253, %s269
    %p271 = scmp.eq.s32.totalorder %s30, 0
    %p272 = por %p270, %p271
    %s273 = ssub.s32 %s32, %s39
    %p274 = scmp.eq.s32.totalorder %s273, 0
    %s276 = sadd.s32 %s275, 1
    %s277 = scalar_select %p274, %s275, %s276
    %p280 = pneg %p274
    %p281 = scmp.eq.s32.totalorder %s24, 3
    %p282 = por %p280, %p281
    %p283 = scmp.ne.s32.totalorder %s275, %s278
    %p284 = scmp.eq.s32.totalorder %s24, 0
    %p285 = por %p283, %p284
    %p286 = scmp.ne.s32.totalorder %s275, %s278
    %p287 = scmp.eq.s32.totalorder %s29, 3
    %p288 = por %p286, %p287
    %p289 = scmp.ne.s32.totalorder %s278, %s279
    %p290 = scmp.eq.s32.totalorder %s29, 0
    %p291 = por %p289, %p290
    %p292 = scmp.ne.s32.totalorder %s278, %s279
    %p293 = scmp.eq.s32.totalorder %s30, 3
    %p294 = por %p292, %p293
    %p296 = scmp.ne.s32.totalorder %s279, %s295
    %p297 = scmp.eq.s32.totalorder %s30, 0
    %p298 = por %p296, %p297
    %s299 = ssub.s32 %s32, %s39
    %p300 = scmp.eq.s32.totalorder %s299, 0
    %s302 = sadd.s32 %s301, 1
    %s303 = scalar_select %p300, %s301, %s302
    %p306 = pneg %p300
    %p307 = scmp.eq.s32.totalorder %s24, 3
    %p308 = por %p306, %p307
    %p309 = scmp.ne.s32.totalorder %s301, %s304
    %p310 = scmp.eq.s32.totalorder %s24, 0
    %p311 = por %p309, %p310
    %p312 = scmp.ne.s32.totalorder %s301, %s304
    %p313 = scmp.eq.s32.totalorder %s29, 3
    %p314 = por %p312, %p313
    %p315 = scmp.ne.s32.totalorder %s304, %s305
    %p316 = scmp.eq.s32.totalorder %s29, 0
    %p317 = por %p315, %p316
    %p318 = scmp.ne.s32.totalorder %s304, %s305
    %p319 = scmp.eq.s32.totalorder %s30, 3
    %p320 = por %p318, %p319
    %p322 = scmp.ne.s32.totalorder %s305, %s321
    %p323 = scmp.eq.s32.totalorder %s30, 0
    %p324 = por %p322, %p323
    %s325 = ssub.s32 %s32, %s39
    %p326 = scmp.eq.s32.totalorder %s325, 0
    %s328 = sadd.s32 %s327, 1
    %s329 = scalar_select %p326, %s327, %s328
    %p332 = pneg %p326
    %p333 = scmp.eq.s32.totalorder %s24, 3
    %p334 = por %p332, %p333
    %p335 = scmp.ne.s32.totalorder %s327, %s330
    %p336 = scmp.eq.s32.totalorder %s24, 0
    %p337 = por %p335, %p336
    %p338 = scmp.ne.s32.totalorder %s327, %s330
    %p339 = scmp.eq.s32.totalorder %s29, 3
    %p340 = por %p338, %p339
    %p341 = scmp.ne.s32.totalorder %s330, %s331
    %p342 = scmp.eq.s32.totalorder %s29, 0
    %p343 = por %p341, %p342
    %p344 = scmp.ne.s32.totalorder %s330, %s331
    %p345 = scmp.eq.s32.totalorder %s30, 3
    %p346 = por %p344, %p345
    %p348 = scmp.ne.s32.totalorder %s331, %s347
    %p349 = scmp.eq.s32.totalorder %s30, 0
    %p350 = por %p348, %p349
    %s351 = ssub.s32 %s32, %s39
    %p352 = scmp.eq.s32.totalorder %s351, 0
    %s354 = sadd.s32 %s353, 1
    %s355 = scalar_select %p352, %s353, %s354
    %p358 = pneg %p352
    %p359 = scmp.eq.s32.totalorder %s24, 3
    %p360 = por %p358, %p359
    %p361 = scmp.ne.s32.totalorder %s353, %s356
    %p362 = scmp.eq.s32.totalorder %s24, 0
    %p363 = por %p361, %p362
    %p364 = scmp.ne.s32.totalorder %s353, %s356
    %p365 = scmp.eq.s32.totalorder %s29, 3
    %p366 = por %p364, %p365
    %p367 = scmp.ne.s32.totalorder %s356, %s357
    %p368 = scmp.eq.s32.totalorder %s29, 0
    %p369 = por %p367, %p368
    %p370 = scmp.ne.s32.totalorder %s356, %s357
    %p371 = scmp.eq.s32.totalorder %s30, 3
    %p372 = por %p370, %p371
    %p374 = scmp.ne.s32.totalorder %s357, %s373
    %p375 = scmp.eq.s32.totalorder %s30, 0
    %p376 = por %p374, %p375
    %s377 = ssub.s32 %s32, %s39
    %p378 = scmp.eq.s32.totalorder %s377, 0
    %s380 = sadd.s32 %s379, 1
    %s381 = scalar_select %p378, %s379, %s380
    %p384 = pneg %p378
    %p385 = scmp.eq.s32.totalorder %s24, 3
    %p386 = por %p384, %p385
    %p387 = scmp.ne.s32.totalorder %s379, %s382
    %p388 = scmp.eq.s32.totalorder %s24, 0
    %p389 = por %p387, %p388
    %p390 = scmp.ne.s32.totalorder %s379, %s382
    %p391 = scmp.eq.s32.totalorder %s29, 3
    %p392 = por %p390, %p391
    %p393 = scmp.ne.s32.totalorder %s382, %s383
    %p394 = scmp.eq.s32.totalorder %s29, 0
    %p395 = por %p393, %p394
    %p396 = scmp.ne.s32.totalorder %s382, %s383
    %p397 = scmp.eq.s32.totalorder %s30, 3
    %p398 = por %p396, %p397
    %p400 = scmp.ne.s32.totalorder %s383, %s399
    %p401 = scmp.eq.s32.totalorder %s30, 0
    %p402 = por %p400, %p401
    %s403 = ssub.s32 %s32, %s39
    %p404 = scmp.eq.s32.totalorder %s403, 0
    %s406 = sadd.s32 %s405, 1
    %s407 = scalar_select %p404, %s405, %s406
    %p410 = pneg %p404
    %p411 = scmp.eq.s32.totalorder %s24, 3
    %p412 = por %p410, %p411
    %p413 = scmp.ne.s32.totalorder %s405, %s408
    %p414 = scmp.eq.s32.totalorder %s24, 0
    %p415 = por %p413, %p414
    %p416 = scmp.ne.s32.totalorder %s405, %s408
    %p417 = scmp.eq.s32.totalorder %s29, 3
    %p418 = por %p416, %p417
    %p419 = scmp.ne.s32.totalorder %s408, %s409
    %p420 = scmp.eq.s32.totalorder %s29, 0
    %p421 = por %p419, %p420
    %p422 = scmp.ne.s32.totalorder %s408, %s409
    %p423 = scmp.eq.s32.totalorder %s30, 3
    %p424 = por %p422, %p423
    %p426 = scmp.ne.s32.totalorder %s409, %s425
    %p427 = scmp.eq.s32.totalorder %s30, 0
    %p428 = por %p426, %p427
    %s429 = ssub.s32 %s32, %s39
    %p430 = scmp.eq.s32.totalorder %s429, 0
    %s432 = sadd.s32 %s431, 1
    %s433 = scalar_select %p430, %s431, %s432
    %p436 = pneg %p430
    %p437 = scmp.eq.s32.totalorder %s24, 3
    %p438 = por %p436, %p437
    %p439 = scmp.ne.s32.totalorder %s431, %s434
    %p440 = scmp.eq.s32.totalorder %s24, 0
    %p441 = por %p439, %p440
    %p442 = scmp.ne.s32.totalorder %s431, %s434
    %p443 = scmp.eq.s32.totalorder %s29, 3
    %p444 = por %p442, %p443
    %p445 = scmp.ne.s32.totalorder %s434, %s435
    %p446 = scmp.eq.s32.totalorder %s29, 0
    %p447 = por %p445, %p446
    %p448 = scmp.ne.s32.totalorder %s434, %s435
    %p449 = scmp.eq.s32.totalorder %s30, 3
    %p450 = por %p448, %p449
    %p452 = scmp.ne.s32.totalorder %s435, %s451
    %p453 = scmp.eq.s32.totalorder %s30, 0
    %p454 = por %p452, %p453
    %s455 = ssub.s32 %s32, %s39
    %p456 = scmp.eq.s32.totalorder %s455, 0
    %s458 = sadd.s32 %s457, 1
    %s459 = scalar_select %p456, %s457, %s458
    %p462 = pneg %p456
    %p463 = scmp.eq.s32.totalorder %s24, 3
    %p464 = por %p462, %p463
    %p465 = scmp.ne.s32.totalorder %s457, %s460
    %p466 = scmp.eq.s32.totalorder %s24, 0
    %p467 = por %p465, %p466
    %p468 = scmp.ne.s32.totalorder %s457, %s460
    %p469 = scmp.eq.s32.totalorder %s29, 3
    %p470 = por %p468, %p469
    %p471 = scmp.ne.s32.totalorder %s460, %s461
    %p472 = scmp.eq.s32.totalorder %s29, 0
    %p473 = por %p471, %p472
    %p474 = scmp.ne.s32.totalorder %s460, %s461
    %p475 = scmp.eq.s32.totalorder %s30, 3
    %p476 = por %p474, %p475
    %p478 = scmp.ne.s32.totalorder %s461, %s477
    %p479 = scmp.eq.s32.totalorder %s30, 0
    %p480 = por %p478, %p479
    %s481 = ssub.s32 %s32, %s39
    %p482 = scmp.eq.s32.totalorder %s481, 0
    %s484 = sadd.s32 %s483, 1
    %s485 = scalar_select %p482, %s483, %s484
    %p488 = pneg %p482
    %p489 = scmp.eq.s32.totalorder %s24, 3
    %p490 = por %p488, %p489
    %p491 = scmp.ne.s32.totalorder %s483, %s486
    %p492 = scmp.eq.s32.totalorder %s24, 0
    %p493 = por %p491, %p492
    %p494 = scmp.ne.s32.totalorder %s483, %s486
    %p495 = scmp.eq.s32.totalorder %s29, 3
    %p496 = por %p494, %p495
    %p497 = scmp.ne.s32.totalorder %s486, %s487
    %p498 = scmp.eq.s32.totalorder %s29, 0
    %p499 = por %p497, %p498
    %p500 = scmp.ne.s32.totalorder %s486, %s487
    %p501 = scmp.eq.s32.totalorder %s30, 3
    %p502 = por %p500, %p501
    %p504 = scmp.ne.s32.totalorder %s487, %s503
    %p505 = scmp.eq.s32.totalorder %s30, 0
    %p506 = por %p504, %p505
    %s507 = ssub.s32 %s31, %s43
    %p508 = scmp.eq.s32.totalorder %s507, 0
    %s510 = sadd.s32 %s509, 1
    %s511 = scalar_select %p508, %s509, %s510
    %p514 = pneg %p508
    %p515 = scmp.eq.s32.totalorder %s24, 3
    %p516 = por %p514, %p515
    %p517 = scmp.ne.s32.totalorder %s509, %s512
    %p518 = scmp.eq.s32.totalorder %s24, 0
    %p519 = por %p517, %p518
    %p520 = scmp.ne.s32.totalorder %s509, %s512
    %p521 = scmp.eq.s32.totalorder %s29, 3
    %p522 = por %p520, %p521
    %p523 = scmp.ne.s32.totalorder %s512, %s513
    %p524 = scmp.eq.s32.totalorder %s29, 0
    %p525 = por %p523, %p524
    %p526 = scmp.ne.s32.totalorder %s512, %s513
    %p527 = scmp.eq.s32.totalorder %s30, 3
    %p528 = por %p526, %p527
    %p530 = scmp.ne.s32.totalorder %s513, %s529
    %p531 = scmp.eq.s32.totalorder %s30, 0
    %p532 = por %p530, %p531
    %p533 = scmp.le.s32.totalorder 1, %s24
    %p534 = scmp.lt.s32.totalorder %s24, 5
    %p535 = pnand %p533, %p534
    %p536 = pneg %p535
    // Predicated region
    $region9: #{transformer_decoder_forward.1} parent=5 // pred_check
      _
    $region10: #{transformer_decoder_forward.1} parent=5 // pred_check_branch
      %538 = sbr.rel (%p535) target = $region12
    $region11: #{transformer_decoder_forward.1} parent=5 // pred_region
      %s539 = ssub.s32 %s24, 1
      // Predicated region
      $region13: #{transformer_decoder_forward.1} parent=11 // pred_check
        %p540 = pneg %p109
      $region14: #{transformer_decoder_forward.1} parent=11 // pred_check_branch
        %542 = sbr.rel (%p540) target = $region16
      $region15: #{transformer_decoder_forward.1} parent=11 // pred_region
        _
      $region16: #{transformer_decoder_forward.1} parent=11 // pred_fallthru
        _
    $region12: #{transformer_decoder_forward.1} parent=5 // pred_fallthru
      _
    %p543 = scmp.lt.s32.totalorder %s24, 4
    // Predicated region
    $region17: #{transformer_decoder_forward.1} parent=5 // pred_check
      %p544 = pneg %p543
    $region18: #{transformer_decoder_forward.1} parent=5 // pred_check_branch
      %546 = sbr.rel (%p544) target = $region20
    $region19: #{transformer_decoder_forward.1} parent=5 // pred_region
      // Predicated region
      $region21: #{transformer_decoder_forward.1} parent=19 // pred_check
        %p547 = pneg %p56
      $region22: #{transformer_decoder_forward.1} parent=19 // pred_check_branch
        %549 = sbr.rel (%p547) target = $region24
      $region23: #{transformer_decoder_forward.1} parent=19 // pred_region
        %p550 = scmp.lt.s32.totalorder %s31, 1
        %s551 = scalar_select %p550, %s31, 1
        %s552 = smul.addr %s551, 8
        %s553 = scalar_lea.vmem %s0, %s552
      $region24: #{transformer_decoder_forward.1} parent=19 // pred_fallthru
        _
      // Predicated region
      $region25: #{transformer_decoder_forward.1} parent=19 // pred_check
        %p554 = pneg %p82
      $region26: #{transformer_decoder_forward.1} parent=19 // pred_check_branch
        %556 = sbr.rel (%p554) target = $region28
      $region27: #{transformer_decoder_forward.1} parent=19 // pred_region
        %p557 = scmp.lt.s32.totalorder %s31, 1
        %s558 = scalar_select %p557, %s31, 1
        %s559 = smul.addr %s558, 2
        %s560 = smul.addr %s559, 8
        %s561 = scalar_lea.vmem %s1, %s560
      $region28: #{transformer_decoder_forward.1} parent=19 // pred_fallthru
        _
      // Predicated region
      $region29: #{transformer_decoder_forward.1} parent=19 // pred_check
        %p562 = pneg %p129
      $region30: #{transformer_decoder_forward.1} parent=19 // pred_check_branch
        %564 = sbr.rel (%p562) target = $region32
      $region31: #{transformer_decoder_forward.1} parent=19 // pred_region
        %p565 = scmp.lt.s32.totalorder %s32, 1
        %s566 = scalar_select %p565, %s32, 1
        %s567 = smul.addr %s566, 8
        %s568 = scalar_lea.vmem %s3, %s567
      $region32: #{transformer_decoder_forward.1} parent=19 // pred_fallthru
        _
      // Predicated region
      $region33: #{transformer_decoder_forward.1} parent=19 // pred_check
        %p569 = pneg %p155
      $region34: #{transformer_decoder_forward.1} parent=19 // pred_check_branch
        %571 = sbr.rel (%p569) target = $region36
      $region35: #{transformer_decoder_forward.1} parent=19 // pred_region
        %p572 = scmp.lt.s32.totalorder %s32, 1
        %s573 = scalar_select %p572, %s32, 1
        %s574 = smul.addr %s573, 4
        %s575 = smul.addr %s574, 4
        %s576 = scalar_lea.vmem %s4, %s575
      $region36: #{transformer_decoder_forward.1} parent=19 // pred_fallthru
        _
      // Predicated region
      $region37: #{transformer_decoder_forward.1} parent=19 // pred_check
        %p577 = pneg %p181
      $region38: #{transformer_decoder_forward.1} parent=19 // pred_check_branch
        %579 = sbr.rel (%p577) target = $region40
      $region39: #{transformer_decoder_forward.1} parent=19 // pred_region
        %p580 = scmp.lt.s32.totalorder %s32, 1
        %s581 = scalar_select %p580, %s32, 1
        %s582 = scalar_lea.vmem %s5, %s581
      $region40: #{transformer_decoder_forward.1} parent=19 // pred_fallthru
        _
      // Predicated region
      $region41: #{transformer_decoder_forward.1} parent=19 // pred_check
        %p583 = pneg %p207
      $region42: #{transformer_decoder_forward.1} parent=19 // pred_check_branch
        %585 = sbr.rel (%p583) target = $region44
      $region43: #{transformer_decoder_forward.1} parent=19 // pred_region
        %p586 = scmp.lt.s32.totalorder %s32, 1
        %s587 = scalar_select %p586, %s32, 1
        %s588 = smul.addr %s587, 4
        %s589 = smul.addr %s588, 4
        %s590 = scalar_lea.vmem %s6, %s589
      $region44: #{transformer_decoder_forward.1} parent=19 // pred_fallthru
        _
      // Predicated region
      $region45: #{transformer_decoder_forward.1} parent=19 // pred_check
        %p591 = pneg %p233
      $region46: #{transformer_decoder_forward.1} parent=19 // pred_check_branch
        %593 = sbr.rel (%p591) target = $region48
      $region47: #{transformer_decoder_forward.1} parent=19 // pred_region
        %p594 = scmp.lt.s32.totalorder %s32, 1
        %s595 = scalar_select %p594, %s32, 1
        %s596 = scalar_lea.vmem %s7, %s595
      $region48: #{transformer_decoder_forward.1} parent=19 // pred_fallthru
        _
      // Predicated region
      $region49: #{transformer_decoder_forward.1} parent=19 // pred_check
        %p597 = pneg %p259
      $region50: #{transformer_decoder_forward.1} parent=19 // pred_check_branch
        %599 = sbr.rel (%p597) target = $region52
      $region51: #{transformer_decoder_forward.1} parent=19 // pred_region
        %p600 = scmp.lt.s32.totalorder %s32, 1
        %s601 = scalar_select %p600, %s32, 1
        %s602 = smul.addr %s601, 4
        %s603 = smul.addr %s602, 4
        %s604 = scalar_lea.vmem %s8, %s603
      $region52: #{transformer_decoder_forward.1} parent=19 // pred_fallthru
        _
      // Predicated region
      $region53: #{transformer_decoder_forward.1} parent=19 // pred_check
        %p605 = pneg %p285
      $region54: #{transformer_decoder_forward.1} parent=19 // pred_check_branch
        %607 = sbr.rel (%p605) target = $region56
      $region55: #{transformer_decoder_forward.1} parent=19 // pred_region
        %p608 = scmp.lt.s32.totalorder %s32, 1
        %s609 = scalar_select %p608, %s32, 1
        %s610 = scalar_lea.vmem %s9, %s609
      $region56: #{transformer_decoder_forward.1} parent=19 // pred_fallthru
        _
      // Predicated region
      $region57: #{transformer_decoder_forward.1} parent=19 // pred_check
        %p611 = pneg %p311
      $region58: #{transformer_decoder_forward.1} parent=19 // pred_check_branch
        %613 = sbr.rel (%p611) target = $region60
      $region59: #{transformer_decoder_forward.1} parent=19 // pred_region
        %p614 = scmp.lt.s32.totalorder %s32, 1
        %s615 = scalar_select %p614, %s32, 1
        %s616 = smul.addr %s615, 4
        %s617 = smul.addr %s616, 4
        %s618 = scalar_lea.vmem %s10, %s617
      $region60: #{transformer_decoder_forward.1} parent=19 // pred_fallthru
        _
      // Predicated region
      $region61: #{transformer_decoder_forward.1} parent=19 // pred_check
        %p619 = pneg %p337
      $region62: #{transformer_decoder_forward.1} parent=19 // pred_check_branch
        %621 = sbr.rel (%p619) target = $region64
      $region63: #{transformer_decoder_forward.1} parent=19 // pred_region
        %p622 = scmp.lt.s32.totalorder %s32, 1
        %s623 = scalar_select %p622, %s32, 1
        %s624 = scalar_lea.vmem %s11, %s623
      $region64: #{transformer_decoder_forward.1} parent=19 // pred_fallthru
        _
      // Predicated region
      $region65: #{transformer_decoder_forward.1} parent=19 // pred_check
        %p625 = pneg %p363
      $region66: #{transformer_decoder_forward.1} parent=19 // pred_check_branch
        %627 = sbr.rel (%p625) target = $region68
      $region67: #{transformer_decoder_forward.1} parent=19 // pred_region
        %p628 = scmp.lt.s32.totalorder %s32, 1
        %s629 = scalar_select %p628, %s32, 1
        %s630 = smul.addr %s629, 4
        %s631 = smul.addr %s630, 4
        %s632 = scalar_lea.vmem %s12, %s631
      $region68: #{transformer_decoder_forward.1} parent=19 // pred_fallthru
        _
      // Predicated region
      $region69: #{transformer_decoder_forward.1} parent=19 // pred_check
        %p633 = pneg %p389
      $region70: #{transformer_decoder_forward.1} parent=19 // pred_check_branch
        %635 = sbr.rel (%p633) target = $region72
      $region71: #{transformer_decoder_forward.1} parent=19 // pred_region
        %p636 = scmp.lt.s32.totalorder %s32, 1
        %s637 = scalar_select %p636, %s32, 1
        %s638 = scalar_lea.vmem %s13, %s637
      $region72: #{transformer_decoder_forward.1} parent=19 // pred_fallthru
        _
      // Predicated region
      $region73: #{transformer_decoder_forward.1} parent=19 // pred_check
        %p639 = pneg %p415
      $region74: #{transformer_decoder_forward.1} parent=19 // pred_check_branch
        %641 = sbr.rel (%p639) target = $region76
      $region75: #{transformer_decoder_forward.1} parent=19 // pred_region
        %p642 = scmp.lt.s32.totalorder %s32, 1
        %s643 = scalar_select %p642, %s32, 1
        %s644 = smul.addr %s643, 4
        %s645 = smul.addr %s644, 4
        %s646 = scalar_lea.vmem %s14, %s645
      $region76: #{transformer_decoder_forward.1} parent=19 // pred_fallthru
        _
      // Predicated region
      $region77: #{transformer_decoder_forward.1} parent=19 // pred_check
        %p647 = pneg %p441
      $region78: #{transformer_decoder_forward.1} parent=19 // pred_check_branch
        %649 = sbr.rel (%p647) target = $region80
      $region79: #{transformer_decoder_forward.1} parent=19 // pred_region
        %p650 = scmp.lt.s32.totalorder %s32, 1
        %s651 = scalar_select %p650, %s32, 1
        %s652 = scalar_lea.vmem %s15, %s651
      $region80: #{transformer_decoder_forward.1} parent=19 // pred_fallthru
        _
      // Predicated region
      $region81: #{transformer_decoder_forward.1} parent=19 // pred_check
        %p653 = pneg %p467
      $region82: #{transformer_decoder_forward.1} parent=19 // pred_check_branch
        %655 = sbr.rel (%p653) target = $region84
      $region83: #{transformer_decoder_forward.1} parent=19 // pred_region
        %p656 = scmp.lt.s32.totalorder %s32, 1
        %s657 = scalar_select %p656, %s32, 1
        %s658 = smul.addr %s657, 8
        %s659 = smul.addr %s658, 4
        %s660 = scalar_lea.vmem %s16, %s659
      $region84: #{transformer_decoder_forward.1} parent=19 // pred_fallthru
        _
      // Predicated region
      $region85: #{transformer_decoder_forward.1} parent=19 // pred_check
        %p661 = pneg %p493
      $region86: #{transformer_decoder_forward.1} parent=19 // pred_check_branch
        %663 = sbr.rel (%p661) target = $region88
      $region87: #{transformer_decoder_forward.1} parent=19 // pred_region
        %p664 = scmp.lt.s32.totalorder %s32, 1
        %s665 = scalar_select %p664, %s32, 1
        %s666 = scalar_lea.vmem %s17, %s665
      $region88: #{transformer_decoder_forward.1} parent=19 // pred_fallthru
        _
    $region20: #{transformer_decoder_forward.1} parent=5 // pred_fallthru
      _
    %p667 = scmp.le.s32.totalorder 1, %s24
    %p668 = scmp.lt.s32.totalorder %s24, 5
    %p669 = pnand %p667, %p668
    %p670 = pneg %p669
    // Predicated region
    $region89: #{transformer_decoder_forward.1} parent=5 // pred_check
      _
    $region90: #{transformer_decoder_forward.1} parent=5 // pred_check_branch
      %672 = sbr.rel (%p669) target = $region92
    $region91: #{transformer_decoder_forward.1} parent=5 // pred_region
      %s673 = ssub.s32 %s24, 1
      %p674 = scmp.lt.s32.totalorder %s33, 1
      %s675 = scalar_select %p674, %s33, 1
      %s676 = smul.addr %s675, 8
      %s677 = scalar_lea.vmem %s0, %s676
      %p678 = pneg %p62
      %p679 = pneg %p59
      %p680 = scmp.lt.s32.totalorder %s33, 1
      %s681 = scalar_select %p680, %s33, 1
      %s682 = smul.addr %s681, 2
      %s683 = smul.addr %s682, 8
      %s684 = scalar_lea.vmem %s1, %s683
      %p685 = pneg %p88
      %p686 = pneg %p85
      %p687 = pneg %p109
      %p688 = pneg %p106
      %p689 = scmp.lt.s32.totalorder %s34, 1
      %s690 = scalar_select %p689, %s34, 1
      %s691 = smul.addr %s690, 8
      %s692 = scalar_lea.vmem %s3, %s691
      %p693 = pneg %p135
      %p694 = pneg %p132
      %p695 = scmp.lt.s32.totalorder %s34, 1
      %s696 = scalar_select %p695, %s34, 1
      %s697 = smul.addr %s696, 4
      %s698 = smul.addr %s697, 4
      %s699 = scalar_lea.vmem %s4, %s698
      %p700 = pneg %p161
      %p701 = pneg %p158
      %p702 = scmp.lt.s32.totalorder %s34, 1
      %s703 = scalar_select %p702, %s34, 1
      %s704 = scalar_lea.vmem %s5, %s703
      %p705 = pneg %p187
      %p706 = pneg %p184
      %p707 = scmp.lt.s32.totalorder %s34, 1
      %s708 = scalar_select %p707, %s34, 1
      %s709 = smul.addr %s708, 4
      %s710 = smul.addr %s709, 4
      %s711 = scalar_lea.vmem %s6, %s710
      %p712 = pneg %p213
      %p713 = pneg %p210
      %p714 = scmp.lt.s32.totalorder %s34, 1
      %s715 = scalar_select %p714, %s34, 1
      %s716 = scalar_lea.vmem %s7, %s715
      %p717 = pneg %p239
      %p718 = pneg %p236
      %p719 = scmp.lt.s32.totalorder %s34, 1
      %s720 = scalar_select %p719, %s34, 1
      %s721 = smul.addr %s720, 4
      %s722 = smul.addr %s721, 4
      %s723 = scalar_lea.vmem %s8, %s722
      %p724 = pneg %p265
      %p725 = pneg %p262
      %p726 = scmp.lt.s32.totalorder %s34, 1
      %s727 = scalar_select %p726, %s34, 1
      %s728 = scalar_lea.vmem %s9, %s727
      %p729 = pneg %p291
      %p730 = pneg %p288
      %p731 = scmp.lt.s32.totalorder %s34, 1
      %s732 = scalar_select %p731, %s34, 1
      %s733 = smul.addr %s732, 4
      %s734 = smul.addr %s733, 4
      %s735 = scalar_lea.vmem %s10, %s734
      %p736 = pneg %p317
      %p737 = pneg %p314
      %p738 = scmp.lt.s32.totalorder %s34, 1
      %s739 = scalar_select %p738, %s34, 1
      %s740 = scalar_lea.vmem %s11, %s739
      %p741 = pneg %p343
      %p742 = pneg %p340
      %p743 = scmp.lt.s32.totalorder %s34, 1
      %s744 = scalar_select %p743, %s34, 1
      %s745 = smul.addr %s744, 4
      %s746 = smul.addr %s745, 4
      %s747 = scalar_lea.vmem %s12, %s746
      %p748 = pneg %p369
      %p749 = pneg %p366
      %p750 = scmp.lt.s32.totalorder %s34, 1
      %s751 = scalar_select %p750, %s34, 1
      %s752 = scalar_lea.vmem %s13, %s751
      %p753 = pneg %p395
      %p754 = pneg %p392
      %p755 = scmp.lt.s32.totalorder %s34, 1
      %s756 = scalar_select %p755, %s34, 1
      %s757 = smul.addr %s756, 4
      %s758 = smul.addr %s757, 4
      %s759 = scalar_lea.vmem %s14, %s758
      %p760 = pneg %p421
      %p761 = pneg %p418
      %p762 = scmp.lt.s32.totalorder %s34, 1
      %s763 = scalar_select %p762, %s34, 1
      %s764 = scalar_lea.vmem %s15, %s763
      %p765 = pneg %p447
      %p766 = pneg %p444
      %p767 = scmp.lt.s32.totalorder %s34, 1
      %s768 = scalar_select %p767, %s34, 1
      %s769 = smul.addr %s768, 8
      %s770 = smul.addr %s769, 4
      %s771 = scalar_lea.vmem %s16, %s770
      %p772 = pneg %p473
      %p773 = pneg %p470
      %p774 = scmp.lt.s32.totalorder %s34, 1
      %s775 = scalar_select %p774, %s34, 1
      %s776 = scalar_lea.vmem %s17, %s775
      %p777 = pneg %p499
      %p778 = pneg %p496
      %p779 = pneg %p525
      %p780 = pneg %p522
      %p781 = scmp.lt.s32.totalorder %s33, 1
      %s782 = scalar_select %p781, %s33, 1
      %s783 = smul.addr %s782, 8
      %s784 = scalar_lea.vmem %s18, %s783
      %p785 = scmp.lt.s32.totalorder %s33, 1
      %s786 = scalar_select %p785, %s33, 1
      %s787 = smul.addr %s786, 8
      %s788 = scalar_lea.vmem %s0, %s787
      %p789 = scmp.lt.s32.totalorder %s33, 1
      %s790 = scalar_select %p789, %s33, 1
      %s791 = smul.addr %s790, 2
      %s792 = smul.addr %s791, 8
      %s793 = scalar_lea.vmem %s1, %s792
      %p794 = scmp.lt.s32.totalorder %s34, 1
      %s795 = scalar_select %p794, %s34, 1
      %s796 = smul.addr %s795, 8
      %s797 = scalar_lea.vmem %s3, %s796
      %p798 = scmp.lt.s32.totalorder %s34, 1
      %s799 = scalar_select %p798, %s34, 1
      %s800 = smul.addr %s799, 4
      %s801 = smul.addr %s800, 4
      %s802 = scalar_lea.vmem %s4, %s801
      %p803 = scmp.lt.s32.totalorder %s34, 1
      %s804 = scalar_select %p803, %s34, 1
      %s805 = scalar_lea.vmem %s5, %s804
      %p806 = scmp.lt.s32.totalorder %s34, 1
      %s807 = scalar_select %p806, %s34, 1
      %s808 = smul.addr %s807, 4
      %s809 = smul.addr %s808, 4
      %s810 = scalar_lea.vmem %s6, %s809
      %p811 = scmp.lt.s32.totalorder %s34, 1
      %s812 = scalar_select %p811, %s34, 1
      %s813 = scalar_lea.vmem %s7, %s812
      %p814 = scmp.lt.s32.totalorder %s34, 1
      %s815 = scalar_select %p814, %s34, 1
      %s816 = smul.addr %s815, 4
      %s817 = smul.addr %s816, 4
      %s818 = scalar_lea.vmem %s8, %s817
      %p819 = scmp.lt.s32.totalorder %s34, 1
      %s820 = scalar_select %p819, %s34, 1
      %s821 = scalar_lea.vmem %s9, %s820
      %p822 = scmp.lt.s32.totalorder %s34, 1
      %s823 = scalar_select %p822, %s34, 1
      %s824 = smul.addr %s823, 4
      %s825 = smul.addr %s824, 4
      %s826 = scalar_lea.vmem %s10, %s825
      %p827 = scmp.lt.s32.totalorder %s34, 1
      %s828 = scalar_select %p827, %s34, 1
      %s829 = scalar_lea.vmem %s11, %s828
      %p830 = scmp.lt.s32.totalorder %s34, 1
      %s831 = scalar_select %p830, %s34, 1
      %s832 = smul.addr %s831, 4
      %s833 = smul.addr %s832, 4
      %s834 = scalar_lea.vmem %s12, %s833
      %p835 = scmp.lt.s32.totalorder %s34, 1
      %s836 = scalar_select %p835, %s34, 1
      %s837 = scalar_lea.vmem %s13, %s836
      %p838 = scmp.lt.s32.totalorder %s34, 1
      %s839 = scalar_select %p838, %s34, 1
      %s840 = smul.addr %s839, 4
      %s841 = smul.addr %s840, 4
      %s842 = scalar_lea.vmem %s14, %s841
      %p843 = scmp.lt.s32.totalorder %s34, 1
      %s844 = scalar_select %p843, %s34, 1
      %s845 = scalar_lea.vmem %s15, %s844
      %p846 = scmp.lt.s32.totalorder %s34, 1
      %s847 = scalar_select %p846, %s34, 1
      %s848 = smul.addr %s847, 8
      %s849 = smul.addr %s848, 4
      %s850 = scalar_lea.vmem %s16, %s849
      %p851 = scmp.lt.s32.totalorder %s34, 1
      %s852 = scalar_select %p851, %s34, 1
      %s853 = scalar_lea.vmem %s17, %s852
      %p854 = scmp.lt.s32.totalorder %s33, 1
      %s855 = scalar_select %p854, %s33, 1
      %s856 = smul.addr %s855, 8
      %s857 = scalar_lea.vmem %s18, %s856
      %p859 = scmp.eq.s32.totalorder %s34, 0
      // Predicated region
      $region93: #{transformer_decoder_forward.1} parent=91 // pred_check
        %p860 = pneg %p859
      $region94: #{transformer_decoder_forward.1} parent=91 // pred_check_branch
        %862 = sbr.rel (%p860) target = $region96
      $region95: #{transformer_decoder_forward.1} parent=91 // pred_region
        %v863 = vld [vmem:[%s788] sm:$0xff]
        %v864 = vld [vmem:[%s2] sm:$0x1]
        %v865 = vld [vmem:[%s2 + $0x1] sm:$0x1]
        %vm866 = vcmask 261120
        %v867 = vsel %vm866, %v863, 0.0
        %868 = vadd.xlane.f32.xlu0 %v867
        %v869 = vpop.xlane.xlu0 %868
        %v870 = vrcp.pop 32.0
        %v871 = vmul.f32 %v869, %v870
        %v872 = vsub.f32 %v863, %v871
        %v873 = vmul.f32 %v872, %v872
        %v874 = vsel %vm866, %v873, 0.0
        %875 = vadd.xlane.f32.xlu0 %v874
        %v876 = vpop.xlane.xlu0 %875
        %v877 = vmul.f32 %v876, %v870
        %v878 = vadd.f32 %v877, 1e-05
        %v879 = vrsqrt.pop %v878
        %v880 = vmul.f32 %v872, %v879
        %v881 = vlaneseq
        %v882 = vshrl.u32 %v881, 7
        %v883 = vsub.s32 0, %v882
        %v884 = vrot.slane %v864, %v883
        %v885 = vmul.f32 %v880, %v884
        %v886 = vlaneseq
        %v887 = vshrl.u32 %v886, 7
        %v888 = vsub.s32 0, %v887
        %v889 = vrot.slane %v865, %v888
        %v890 = vadd.f32 %v885, %v889
        %891 = vst.msk [vmem:[#allocation2] sm:$0xff] %vm866, %v890
      $region96: #{transformer_decoder_forward.1} parent=91 // pred_fallthru
        _
      %v892 = vld [vmem:[#allocation2] sm:$0xff]
      %v893 = vld [vmem:[%s793] sm:$0xff]
      %v894 = vld [vmem:[%s793 + $0x8] sm:$0x3]
      %v895 = vld [vmem:[%s797] sm:$0x3f]
      %vm896 = vcmask 261120
      %v897 = vsel %vm896, %v892, 0.0
      %898 = vadd.xlane.f32.xlu0 %v897
      %v899 = vpop.xlane.xlu0 %898
      %v900 = vrcp.pop 32.0
      %v901 = vmul.f32 %v899, %v900
      %v902 = vsub.f32 %v892, %v901
      %v903 = vmul.f32 %v902, %v902
      %v904 = vsel %vm896, %v903, 0.0
      %905 = vadd.xlane.f32.xlu0 %v904
      %v906 = vpop.xlane.xlu0 %905
      %v907 = vmul.f32 %v906, %v900
      %v908 = vadd.f32 %v907, 1e-05
      %v909 = vrsqrt.pop %v908
      %v910 = vmul.f32 %v902, %v909
      %v911 = vlaneseq
      %v912 = vshrl.u32 %v911, 7
      %v913 = vsub.s32 0, %v912
      %v914 = vrot.slane %v895, %v913
      %v915 = vmul.f32 %v910, %v914
      %v916 = vlaneseq
      %v917 = vshrl.u32 %v916, 7
      %v918 = vsub.s32 1, %v917
      %v919 = vrot.slane %v895, %v918
      %v920 = vadd.f32 %v915, %v919
      %v921 = vpack.c.bf16 %v920, %v920
      %v922 = vld [vmem:[%s802] sm:$0xf]
      %v923 = vld [vmem:[%s802 + $0x4] sm:$0xf]
      %v924 = vld [vmem:[%s802 + $0x8] sm:$0xf]
      %v925 = vld [vmem:[%s802 + $0xc] sm:$0xf]
      %v926 = vld [vmem:[%s805] sm:$0x1]
      %v928 = vlaneseq
      %v929 = vshrl.u32 %v928, 7
      %v930 = vsub.s32 0, %v929
      %v931 = vrot.slane %v926, %v930
      %v937 = vunpack.c.l.b16 %v922
      %v938 = vunpack.c.l.b16 %v923
      %v939 = vunpack.c.l.b16 %v924
      %v940 = vunpack.c.l.b16 %v925
      %v941 = vpack.c.b16 %v938, %v937
      %v942 = vpack.c.b16 %v940, %v939
      %v946 = vsel %vm896, %v921, 0
      %948 = vmatprep.subr.bf16.mxu0 0
      %949 = vmatpush1.bf16.msra.mxu0 %v941
      %950 = vmatprep.subr.bf16.mxu0 0
      %951 = vmatpush1.bf16.msra.mxu0 %v942
      %952 = vmatprep.subr.bf16.mxu0 0
      %953 = vmatpush1.bf16.msra.mxu0 0
      %954 = vmatprep.subr.bf16.mxu0 0
      %955 = vmatpush1.bf16.msra.mxu0 0
      %956 = vmatprep.subr.bf16.mxu0 0
      %957 = vmatpush1.bf16.msra.mxu0 0
      %958 = vmatprep.subr.bf16.mxu0 0
      %959 = vmatpush1.bf16.msra.mxu0 0
      %960 = vmatprep.subr.bf16.mxu0 0
      %961 = vmatpush1.bf16.msra.mxu0 0
      %962 = vmatprep.subr.bf16.mxu0 0
      %963 = vmatpush1.bf16.msra.mxu0 0
      %964 = vmatprep.subr.bf16.mxu0 0
      %965 = vmatpush1.bf16.msra.mxu0 0
      %966 = vmatprep.subr.bf16.mxu0 0
      %967 = vmatpush1.bf16.msra.mxu0 0
      %968 = vmatprep.subr.bf16.mxu0 0
      %969 = vmatpush1.bf16.msra.mxu0 0
      %970 = vmatprep.subr.bf16.mxu0 0
      %971 = vmatpush1.bf16.msra.mxu0 0
      %972 = vmatprep.subr.bf16.mxu0 0
      %973 = vmatpush1.bf16.msra.mxu0 0
      %974 = vmatprep.subr.bf16.mxu0 0
      %975 = vmatpush1.bf16.msra.mxu0 0
      %976 = vmatprep.subr.bf16.mxu0 0
      %977 = vmatpush1.bf16.msra.mxu0 0
      %978 = vmatprep.subr.bf16.mxu0 0
      %979 = vmatpush1.bf16.msra.mxu0 0
      %980 = vmatprep.mubr.bf16.mxu0 0
      %981 = vmatmul.mubr.bf16.gmra.mrb[0].mxu0 %v946
      %v982 = vpop.f32.mrb[0].mxu0
      %v983 = vadd.f32 %v931, %v982
      %v984 = vpop.f32.mrb[0].mxu0
      %v985 = vpop.f32.mrb[0].mxu0
      %v986 = vpop.f32.mrb[0].mxu0
      %987 = vdwg.mxu0
      %v988 = vlaneseq
      %v989 = vshrl.u32 %v988, 7
      %v990 = vlaneseq
      %v991 = vand.u32 %v990, 127
      %vm992 = vcmp.gt.s32.totalorder %v991, %v989
      %v993 = vsel %vm992, -1e+09, 0.0
      %v994 = vmul.f32 %v983, 0.35355338
      %v995 = vpack.c.bf16 %v994, %v994
      %v996 = vpack.c.bf16 %v983, %v983
      %998 = vrot.lane.b32.xlu0 %v996, 96
      %v999 = vpop.permute.xlu0 %998
      %vm1000 = vcmask 64512
      %v1002 = vsel %vm1000, %v995, 0
      %v1005 = vsel %vm1000, %v999, 0
      %1007 = vmatprep.subr.bf16.mxu0 0
      %1008 = vmatpush1.bf16.xpose.msra.mxu0 %v1005
      %1009 = vmatprep.subr.bf16.mxu0 0
      %1010 = vmatpush1.bf16.xpose.msra.mxu0 0
      %1011 = vmatprep.subr.bf16.mxu0 0
      %1012 = vmatpush1.bf16.xpose.msra.mxu0 0
      %1013 = vmatprep.subr.bf16.mxu0 0
      %1014 = vmatpush1.bf16.xpose.msra.mxu0 0
      %1015 = vmatprep.subr.bf16.mxu0 0
      %1016 = vmatpush1.bf16.xpose.msra.mxu0 0
      %1017 = vmatprep.subr.bf16.mxu0 0
      %1018 = vmatpush1.bf16.xpose.msra.mxu0 0
      %1019 = vmatprep.subr.bf16.mxu0 0
      %1020 = vmatpush1.bf16.xpose.msra.mxu0 0
      %1021 = vmatprep.subr.bf16.mxu0 0
      %1022 = vmatpush1.bf16.xpose.msra.mxu0 0
      %1023 = vmatprep.subr.bf16.mxu0 0
      %1024 = vmatpush1.bf16.xpose.msra.mxu0 0
      %1025 = vmatprep.subr.bf16.mxu0 0
      %1026 = vmatpush1.bf16.xpose.msra.mxu0 0
      %1027 = vmatprep.subr.bf16.mxu0 0
      %1028 = vmatpush1.bf16.xpose.msra.mxu0 0
      %1029 = vmatprep.subr.bf16.mxu0 0
      %1030 = vmatpush1.bf16.xpose.msra.mxu0 0
      %1031 = vmatprep.subr.bf16.mxu0 0
      %1032 = vmatpush1.bf16.xpose.msra.mxu0 0
      %1033 = vmatprep.subr.bf16.mxu0 0
      %1034 = vmatpush1.bf16.xpose.msra.mxu0 0
      %1035 = vmatprep.subr.bf16.mxu0 0
      %1036 = vmatpush1.bf16.xpose.msra.mxu0 0
      %1037 = vmatprep.subr.bf16.mxu0 0
      %1038 = vmatpush1.bf16.xpose.msra.mxu0 0
      %1039 = vmatprep.mubr.bf16.mxu0 0
      %1040 = vmatmul.mubr.bf16.gmra.mrb[0].mxu0 %v1002
      %v1041 = vpop.f32.mrb[0].mxu0
      %v1042 = vadd.f32 %v993, %v1041
      %v1043 = vpop.f32.mrb[0].mxu0
      %v1044 = vpop.f32.mrb[0].mxu0
      %v1045 = vpop.f32.mrb[0].mxu0
      %1046 = vdwg.mxu0
      %v1047 = vsel %vm1000, %v1042, -inf
      %1048 = vmax.xlane.f32.xlu0 %v1047
      %v1049 = vpop.xlane.xlu0 %1048
      %v1050 = vsub.f32 %v1042, %v1049
      %v1051 = vmul.f32 %v1050, 1.442695
      %v1052 = vpow.pop %v1051
      %v1053 = vsel %vm1000, %v1052, 0.0
      %1054 = vadd.xlane.f32.xlu0 %v1053
      %v1055 = vpop.xlane.xlu0 %1054
      %v1056 = vrcp.pop %v1055
      %v1057 = vmul.f32 %v1052, %v1056
      %v1058 = vpack.c.bf16 %v1057, %v1057
      %1059 = vrot.lane.b32.xlu0 %v996, 64
      %v1060 = vpop.permute.xlu0 %1059
      %v1062 = vsel %vm1000, %v1058, 0
      %vm1064 = vcmask 1043456
      %v1066 = vsel %vm1064, %v1060, 0
      %1068 = vmatprep.subr.bf16.mxu0 0
      %1069 = vmatpush1.bf16.msra.mxu0 %v1066
      %1070 = vmatprep.subr.bf16.mxu0 0
      %1071 = vmatpush1.bf16.msra.mxu0 0
      %1072 = vmatprep.subr.bf16.mxu0 0
      %1073 = vmatpush1.bf16.msra.mxu0 0
      %1074 = vmatprep.subr.bf16.mxu0 0
      %1075 = vmatpush1.bf16.msra.mxu0 0
      %1076 = vmatprep.subr.bf16.mxu0 0
      %1077 = vmatpush1.bf16.msra.mxu0 0
      %1078 = vmatprep.subr.bf16.mxu0 0
      %1079 = vmatpush1.bf16.msra.mxu0 0
      %1080 = vmatprep.subr.bf16.mxu0 0
      %1081 = vmatpush1.bf16.msra.mxu0 0
      %1082 = vmatprep.subr.bf16.mxu0 0
      %1083 = vmatpush1.bf16.msra.mxu0 0
      %1084 = vmatprep.subr.bf16.mxu0 0
      %1085 = vmatpush1.bf16.msra.mxu0 0
      %1086 = vmatprep.subr.bf16.mxu0 0
      %1087 = vmatpush1.bf16.msra.mxu0 0
      %1088 = vmatprep.subr.bf16.mxu0 0
      %1089 = vmatpush1.bf16.msra.mxu0 0
      %1090 = vmatprep.subr.bf16.mxu0 0
      %1091 = vmatpush1.bf16.msra.mxu0 0
      %1092 = vmatprep.subr.bf16.mxu0 0
      %1093 = vmatpush1.bf16.msra.mxu0 0
      %1094 = vmatprep.subr.bf16.mxu0 0
      %1095 = vmatpush1.bf16.msra.mxu0 0
      %1096 = vmatprep.subr.bf16.mxu0 0
      %1097 = vmatpush1.bf16.msra.mxu0 0
      %1098 = vmatprep.subr.bf16.mxu0 0
      %1099 = vmatpush1.bf16.msra.mxu0 0
      %1100 = vmatprep.mubr.bf16.mxu0 0
      %1101 = vmatmul.mubr.bf16.gmra.mrb[0].mxu0 %v1062
      %v1102 = vpop.f32.mrb[0].mxu0
      %v1103 = vadd.f32 0.0, %v1102
      %v1104 = vpop.f32.mrb[0].mxu0
      %v1105 = vpop.f32.mrb[0].mxu0
      %v1106 = vpop.f32.mrb[0].mxu0
      %1107 = vdwg.mxu0
      %1109 = vrot.lane.b32.xlu0 %v995, 120
      %v1110 = vpop.permute.xlu0 %1109
      %1111 = vrot.lane.b32.xlu0 %v996, 88
      %v1112 = vpop.permute.xlu0 %1111
      %v1114 = vsel %vm1000, %v1110, 0
      %v1117 = vsel %vm1000, %v1112, 0
      %1119 = vmatprep.subr.bf16.mxu0 0
      %1120 = vmatpush1.bf16.xpose.msra.mxu0 %v1117
      %1121 = vmatprep.subr.bf16.mxu0 0
      %1122 = vmatpush1.bf16.xpose.msra.mxu0 0
      %1123 = vmatprep.subr.bf16.mxu0 0
      %1124 = vmatpush1.bf16.xpose.msra.mxu0 0
      %1125 = vmatprep.subr.bf16.mxu0 0
      %1126 = vmatpush1.bf16.xpose.msra.mxu0 0
      %1127 = vmatprep.subr.bf16.mxu0 0
      %1128 = vmatpush1.bf16.xpose.msra.mxu0 0
      %1129 = vmatprep.subr.bf16.mxu0 0
      %1130 = vmatpush1.bf16.xpose.msra.mxu0 0
      %1131 = vmatprep.subr.bf16.mxu0 0
      %1132 = vmatpush1.bf16.xpose.msra.mxu0 0
      %1133 = vmatprep.subr.bf16.mxu0 0
      %1134 = vmatpush1.bf16.xpose.msra.mxu0 0
      %1135 = vmatprep.subr.bf16.mxu0 0
      %1136 = vmatpush1.bf16.xpose.msra.mxu0 0
      %1137 = vmatprep.subr.bf16.mxu0 0
      %1138 = vmatpush1.bf16.xpose.msra.mxu0 0
      %1139 = vmatprep.subr.bf16.mxu0 0
      %1140 = vmatpush1.bf16.xpose.msra.mxu0 0
      %1141 = vmatprep.subr.bf16.mxu0 0
      %1142 = vmatpush1.bf16.xpose.msra.mxu0 0
      %1143 = vmatprep.subr.bf16.mxu0 0
      %1144 = vmatpush1.bf16.xpose.msra.mxu0 0
      %1145 = vmatprep.subr.bf16.mxu0 0
      %1146 = vmatpush1.bf16.xpose.msra.mxu0 0
      %1147 = vmatprep.subr.bf16.mxu0 0
      %1148 = vmatpush1.bf16.xpose.msra.mxu0 0
      %1149 = vmatprep.subr.bf16.mxu0 0
      %1150 = vmatpush1.bf16.xpose.msra.mxu0 0
      %1151 = vmatprep.mubr.bf16.mxu0 0
      %1152 = vmatmul.mubr.bf16.gmra.mrb[0].mxu0 %v1114
      %v1153 = vpop.f32.mrb[0].mxu0
      %v1154 = vadd.f32 %v993, %v1153
      %v1155 = vpop.f32.mrb[0].mxu0
      %v1156 = vpop.f32.mrb[0].mxu0
      %v1157 = vpop.f32.mrb[0].mxu0
      %1158 = vdwg.mxu0
      %v1159 = vsel %vm1000, %v1154, -inf
      %1160 = vmax.xlane.f32.xlu0 %v1159
      %v1161 = vpop.xlane.xlu0 %1160
      %v1162 = vsub.f32 %v1154, %v1161
      %v1163 = vmul.f32 %v1162, 1.442695
      %v1164 = vpow.pop %v1163
      %v1165 = vsel %vm1000, %v1164, 0.0
      %1166 = vadd.xlane.f32.xlu0 %v1165
      %v1167 = vpop.xlane.xlu0 %1166
      %v1168 = vrcp.pop %v1167
      %v1169 = vmul.f32 %v1164, %v1168
      %v1170 = vpack.c.bf16 %v1169, %v1169
      %1171 = vrot.lane.b32.xlu0 %v996, 56
      %v1172 = vpop.permute.xlu0 %1171
      %v1174 = vsel %vm1000, %v1170, 0
      %v1177 = vsel %vm1064, %v1172, 0
      %1179 = vmatprep.subr.bf16.mxu0 0
      %1180 = vmatpush1.bf16.msra.mxu0 %v1177
      %1181 = vmatprep.subr.bf16.mxu0 0
      %1182 = vmatpush1.bf16.msra.mxu0 0
      %1183 = vmatprep.subr.bf16.mxu0 0
      %1184 = vmatpush1.bf16.msra.mxu0 0
      %1185 = vmatprep.subr.bf16.mxu0 0
      %1186 = vmatpush1.bf16.msra.mxu0 0
      %1187 = vmatprep.subr.bf16.mxu0 0
      %1188 = vmatpush1.bf16.msra.mxu0 0
      %1189 = vmatprep.subr.bf16.mxu0 0
      %1190 = vmatpush1.bf16.msra.mxu0 0
      %1191 = vmatprep.subr.bf16.mxu0 0
      %1192 = vmatpush1.bf16.msra.mxu0 0
      %1193 = vmatprep.subr.bf16.mxu0 0
      %1194 = vmatpush1.bf16.msra.mxu0 0
      %1195 = vmatprep.subr.bf16.mxu0 0
      %1196 = vmatpush1.bf16.msra.mxu0 0
      %1197 = vmatprep.subr.bf16.mxu0 0
      %1198 = vmatpush1.bf16.msra.mxu0 0
      %1199 = vmatprep.subr.bf16.mxu0 0
      %1200 = vmatpush1.bf16.msra.mxu0 0
      %1201 = vmatprep.subr.bf16.mxu0 0
      %1202 = vmatpush1.bf16.msra.mxu0 0
      %1203 = vmatprep.subr.bf16.mxu0 0
      %1204 = vmatpush1.bf16.msra.mxu0 0
      %1205 = vmatprep.subr.bf16.mxu0 0
      %1206 = vmatpush1.bf16.msra.mxu0 0
      %1207 = vmatprep.subr.bf16.mxu0 0
      %1208 = vmatpush1.bf16.msra.mxu0 0
      %1209 = vmatprep.subr.bf16.mxu0 0
      %1210 = vmatpush1.bf16.msra.mxu0 0
      %1211 = vmatprep.mubr.bf16.mxu0 0
      %1212 = vmatmul.mubr.bf16.gmra.mrb[0].mxu0 %v1174
      %v1213 = vpop.f32.mrb[0].mxu0
      %v1214 = vadd.f32 0.0, %v1213
      %v1215 = vpop.f32.mrb[0].mxu0
      %v1216 = vpop.f32.mrb[0].mxu0
      %v1217 = vpop.f32.mrb[0].mxu0
      %1218 = vdwg.mxu0
      %1219 = vrot.lane.b32.xlu0 %v995, 112
      %v1220 = vpop.permute.xlu0 %1219
      %1221 = vrot.lane.b32.xlu0 %v996, 80
      %v1222 = vpop.permute.xlu0 %1221
      %v1224 = vsel %vm1000, %v1220, 0
      %v1227 = vsel %vm1000, %v1222, 0
      %1229 = vmatprep.subr.bf16.mxu0 0
      %1230 = vmatpush1.bf16.xpose.msra.mxu0 %v1227
      %1231 = vmatprep.subr.bf16.mxu0 0
      %1232 = vmatpush1.bf16.xpose.msra.mxu0 0
      %1233 = vmatprep.subr.bf16.mxu0 0
      %1234 = vmatpush1.bf16.xpose.msra.mxu0 0
      %1235 = vmatprep.subr.bf16.mxu0 0
      %1236 = vmatpush1.bf16.xpose.msra.mxu0 0
      %1237 = vmatprep.subr.bf16.mxu0 0
      %1238 = vmatpush1.bf16.xpose.msra.mxu0 0
      %1239 = vmatprep.subr.bf16.mxu0 0
      %1240 = vmatpush1.bf16.xpose.msra.mxu0 0
      %1241 = vmatprep.subr.bf16.mxu0 0
      %1242 = vmatpush1.bf16.xpose.msra.mxu0 0
      %1243 = vmatprep.subr.bf16.mxu0 0
      %1244 = vmatpush1.bf16.xpose.msra.mxu0 0
      %1245 = vmatprep.subr.bf16.mxu0 0
      %1246 = vmatpush1.bf16.xpose.msra.mxu0 0
      %1247 = vmatprep.subr.bf16.mxu0 0
      %1248 = vmatpush1.bf16.xpose.msra.mxu0 0
      %1249 = vmatprep.subr.bf16.mxu0 0
      %1250 = vmatpush1.bf16.xpose.msra.mxu0 0
      %1251 = vmatprep.subr.bf16.mxu0 0
      %1252 = vmatpush1.bf16.xpose.msra.mxu0 0
      %1253 = vmatprep.subr.bf16.mxu0 0
      %1254 = vmatpush1.bf16.xpose.msra.mxu0 0
      %1255 = vmatprep.subr.bf16.mxu0 0
      %1256 = vmatpush1.bf16.xpose.msra.mxu0 0
      %1257 = vmatprep.subr.bf16.mxu0 0
      %1258 = vmatpush1.bf16.xpose.msra.mxu0 0
      %1259 = vmatprep.subr.bf16.mxu0 0
      %1260 = vmatpush1.bf16.xpose.msra.mxu0 0
      %1261 = vmatprep.mubr.bf16.mxu0 0
      %1262 = vmatmul.mubr.bf16.gmra.mrb[0].mxu0 %v1224
      %v1263 = vpop.f32.mrb[0].mxu0
      %v1264 = vadd.f32 %v993, %v1263
      %v1265 = vpop.f32.mrb[0].mxu0
      %v1266 = vpop.f32.mrb[0].mxu0
      %v1267 = vpop.f32.mrb[0].mxu0
      %1268 = vdwg.mxu0
      %v1269 = vsel %vm1000, %v1264, -inf
      %1270 = vmax.xlane.f32.xlu0 %v1269
      %v1271 = vpop.xlane.xlu0 %1270
      %v1272 = vsub.f32 %v1264, %v1271
      %v1273 = vmul.f32 %v1272, 1.442695
      %v1274 = vpow.pop %v1273
      %v1275 = vsel %vm1000, %v1274, 0.0
      %1276 = vadd.xlane.f32.xlu0 %v1275
      %v1277 = vpop.xlane.xlu0 %1276
      %v1278 = vrcp.pop %v1277
      %v1279 = vmul.f32 %v1274, %v1278
      %v1280 = vpack.c.bf16 %v1279, %v1279
      %1281 = vrot.lane.b32.xlu0 %v996, 48
      %v1282 = vpop.permute.xlu0 %1281
      %v1284 = vsel %vm1000, %v1280, 0
      %v1287 = vsel %vm1064, %v1282, 0
      %1289 = vmatprep.subr.bf16.mxu0 0
      %1290 = vmatpush1.bf16.msra.mxu0 %v1287
      %1291 = vmatprep.subr.bf16.mxu0 0
      %1292 = vmatpush1.bf16.msra.mxu0 0
      %1293 = vmatprep.subr.bf16.mxu0 0
      %1294 = vmatpush1.bf16.msra.mxu0 0
      %1295 = vmatprep.subr.bf16.mxu0 0
      %1296 = vmatpush1.bf16.msra.mxu0 0
      %1297 = vmatprep.subr.bf16.mxu0 0
      %1298 = vmatpush1.bf16.msra.mxu0 0
      %1299 = vmatprep.subr.bf16.mxu0 0
      %1300 = vmatpush1.bf16.msra.mxu0 0
      %1301 = vmatprep.subr.bf16.mxu0 0
      %1302 = vmatpush1.bf16.msra.mxu0 0
      %1303 = vmatprep.subr.bf16.mxu0 0
      %1304 = vmatpush1.bf16.msra.mxu0 0
      %1305 = vmatprep.subr.bf16.mxu0 0
      %1306 = vmatpush1.bf16.msra.mxu0 0
      %1307 = vmatprep.subr.bf16.mxu0 0
      %1308 = vmatpush1.bf16.msra.mxu0 0
      %1309 = vmatprep.subr.bf16.mxu0 0
      %1310 = vmatpush1.bf16.msra.mxu0 0
      %1311 = vmatprep.subr.bf16.mxu0 0
      %1312 = vmatpush1.bf16.msra.mxu0 0
      %1313 = vmatprep.subr.bf16.mxu0 0
      %1314 = vmatpush1.bf16.msra.mxu0 0
      %1315 = vmatprep.subr.bf16.mxu0 0
      %1316 = vmatpush1.bf16.msra.mxu0 0
      %1317 = vmatprep.subr.bf16.mxu0 0
      %1318 = vmatpush1.bf16.msra.mxu0 0
      %1319 = vmatprep.subr.bf16.mxu0 0
      %1320 = vmatpush1.bf16.msra.mxu0 0
      %1321 = vmatprep.mubr.bf16.mxu0 0
      %1322 = vmatmul.mubr.bf16.gmra.mrb[0].mxu0 %v1284
      %v1323 = vpop.f32.mrb[0].mxu0
      %v1324 = vadd.f32 0.0, %v1323
      %v1325 = vpop.f32.mrb[0].mxu0
      %v1326 = vpop.f32.mrb[0].mxu0
      %v1327 = vpop.f32.mrb[0].mxu0
      %1328 = vdwg.mxu0
      %1329 = vrot.lane.b32.xlu0 %v995, 104
      %v1330 = vpop.permute.xlu0 %1329
      %1331 = vrot.lane.b32.xlu0 %v996, 72
      %v1332 = vpop.permute.xlu0 %1331
      %v1334 = vsel %vm1000, %v1330, 0
      %v1337 = vsel %vm1000, %v1332, 0
      %1339 = vmatprep.subr.bf16.mxu0 0
      %1340 = vmatpush1.bf16.xpose.msra.mxu0 %v1337
      %1341 = vmatprep.subr.bf16.mxu0 0
      %1342 = vmatpush1.bf16.xpose.msra.mxu0 0
      %1343 = vmatprep.subr.bf16.mxu0 0
      %1344 = vmatpush1.bf16.xpose.msra.mxu0 0
      %1345 = vmatprep.subr.bf16.mxu0 0
      %1346 = vmatpush1.bf16.xpose.msra.mxu0 0
      %1347 = vmatprep.subr.bf16.mxu0 0
      %1348 = vmatpush1.bf16.xpose.msra.mxu0 0
      %1349 = vmatprep.subr.bf16.mxu0 0
      %1350 = vmatpush1.bf16.xpose.msra.mxu0 0
      %1351 = vmatprep.subr.bf16.mxu0 0
      %1352 = vmatpush1.bf16.xpose.msra.mxu0 0
      %1353 = vmatprep.subr.bf16.mxu0 0
      %1354 = vmatpush1.bf16.xpose.msra.mxu0 0
      %1355 = vmatprep.subr.bf16.mxu0 0
      %1356 = vmatpush1.bf16.xpose.msra.mxu0 0
      %1357 = vmatprep.subr.bf16.mxu0 0
      %1358 = vmatpush1.bf16.xpose.msra.mxu0 0
      %1359 = vmatprep.subr.bf16.mxu0 0
      %1360 = vmatpush1.bf16.xpose.msra.mxu0 0
      %1361 = vmatprep.subr.bf16.mxu0 0
      %1362 = vmatpush1.bf16.xpose.msra.mxu0 0
      %1363 = vmatprep.subr.bf16.mxu0 0
      %1364 = vmatpush1.bf16.xpose.msra.mxu0 0
      %1365 = vmatprep.subr.bf16.mxu0 0
      %1366 = vmatpush1.bf16.xpose.msra.mxu0 0
      %1367 = vmatprep.subr.bf16.mxu0 0
      %1368 = vmatpush1.bf16.xpose.msra.mxu0 0
      %1369 = vmatprep.subr.bf16.mxu0 0
      %1370 = vmatpush1.bf16.xpose.msra.mxu0 0
      %1371 = vmatprep.mubr.bf16.mxu0 0
      %1372 = vmatmul.mubr.bf16.gmra.mrb[0].mxu0 %v1334
      %v1373 = vpop.f32.mrb[0].mxu0
      %v1374 = vadd.f32 %v993, %v1373
      %v1375 = vpop.f32.mrb[0].mxu0
      %v1376 = vpop.f32.mrb[0].mxu0
      %v1377 = vpop.f32.mrb[0].mxu0
      %1378 = vdwg.mxu0
      %v1379 = vsel %vm1000, %v1374, -inf
      %1380 = vmax.xlane.f32.xlu0 %v1379
      %v1381 = vpop.xlane.xlu0 %1380
      %v1382 = vsub.f32 %v1374, %v1381
      %v1383 = vmul.f32 %v1382, 1.442695
      %v1384 = vpow.pop %v1383
      %v1385 = vsel %vm1000, %v1384, 0.0
      %1386 = vadd.xlane.f32.xlu0 %v1385
      %v1387 = vpop.xlane.xlu0 %1386
      %v1388 = vrcp.pop %v1387
      %v1389 = vmul.f32 %v1384, %v1388
      %v1390 = vpack.c.bf16 %v1389, %v1389
      %1391 = vrot.lane.b32.xlu0 %v996, 40
      %v1392 = vpop.permute.xlu0 %1391
      %v1394 = vsel %vm1000, %v1390, 0
      %v1397 = vsel %vm1064, %v1392, 0
      %1399 = vmatprep.subr.bf16.mxu0 0
      %1400 = vmatpush1.bf16.msra.mxu0 %v1397
      %1401 = vmatprep.subr.bf16.mxu0 0
      %1402 = vmatpush1.bf16.msra.mxu0 0
      %1403 = vmatprep.subr.bf16.mxu0 0
      %1404 = vmatpush1.bf16.msra.mxu0 0
      %1405 = vmatprep.subr.bf16.mxu0 0
      %1406 = vmatpush1.bf16.msra.mxu0 0
      %1407 = vmatprep.subr.bf16.mxu0 0
      %1408 = vmatpush1.bf16.msra.mxu0 0
      %1409 = vmatprep.subr.bf16.mxu0 0
      %1410 = vmatpush1.bf16.msra.mxu0 0
      %1411 = vmatprep.subr.bf16.mxu0 0
      %1412 = vmatpush1.bf16.msra.mxu0 0
      %1413 = vmatprep.subr.bf16.mxu0 0
      %1414 = vmatpush1.bf16.msra.mxu0 0
      %1415 = vmatprep.subr.bf16.mxu0 0
      %1416 = vmatpush1.bf16.msra.mxu0 0
      %1417 = vmatprep.subr.bf16.mxu0 0
      %1418 = vmatpush1.bf16.msra.mxu0 0
      %1419 = vmatprep.subr.bf16.mxu0 0
      %1420 = vmatpush1.bf16.msra.mxu0 0
      %1421 = vmatprep.subr.bf16.mxu0 0
      %1422 = vmatpush1.bf16.msra.mxu0 0
      %1423 = vmatprep.subr.bf16.mxu0 0
      %1424 = vmatpush1.bf16.msra.mxu0 0
      %1425 = vmatprep.subr.bf16.mxu0 0
      %1426 = vmatpush1.bf16.msra.mxu0 0
      %1427 = vmatprep.subr.bf16.mxu0 0
      %1428 = vmatpush1.bf16.msra.mxu0 0
      %1429 = vmatprep.subr.bf16.mxu0 0
      %1430 = vmatpush1.bf16.msra.mxu0 0
      %1431 = vmatprep.mubr.bf16.mxu0 0
      %1432 = vmatmul.mubr.bf16.gmra.mrb[0].mxu0 %v1394
      %v1433 = vpop.f32.mrb[0].mxu0
      %v1434 = vadd.f32 0.0, %v1433
      %v1435 = vpop.f32.mrb[0].mxu0
      %v1436 = vpop.f32.mrb[0].mxu0
      %v1437 = vpop.f32.mrb[0].mxu0
      %1438 = vdwg.mxu0
      %1440 = vrot.lane.b32.xlu0 %v1214, 8
      %v1441 = vpop.permute.xlu0 %1440
      %1444 = vrot.lane.b32.xlu0 %v1324, 16
      %v1445 = vpop.permute.xlu0 %1444
      %1448 = vrot.lane.b32.xlu0 %v1434, 24
      %v1449 = vpop.permute.xlu0 %1448
      %v1451 = vsel %vm1000, %v1103, %v1441
      %vm1452 = vcmask 130048
      %v1453 = vsel %vm1452, %v1451, %v1445
      %vm1454 = vcmask 195584
      %v1455 = vsel %vm1454, %v1453, %v1449
      %v1456 = vpack.c.bf16 %v1455, %v1455
      %v1457 = vld [vmem:[%s810] sm:$0xf]
      %v1458 = vld [vmem:[%s810 + $0x4] sm:$0xf]
      %v1459 = vld [vmem:[%s810 + $0x8] sm:$0xf]
      %v1460 = vld [vmem:[%s810 + $0xc] sm:$0xf]
      %v1461 = vld [vmem:[%s813] sm:$0x1]
      %v1463 = vlaneseq
      %v1464 = vshrl.u32 %v1463, 7
      %v1465 = vsub.s32 0, %v1464
      %v1466 = vrot.slane %v1461, %v1465
      %v1472 = vunpack.c.l.b16 %v1457
      %v1473 = vunpack.c.l.b16 %v1458
      %v1474 = vunpack.c.l.b16 %v1459
      %v1475 = vunpack.c.l.b16 %v1460
      %v1476 = vpack.c.b16 %v1473, %v1472
      %v1477 = vpack.c.b16 %v1475, %v1474
      %v1481 = vsel %vm896, %v1456, 0
      %1483 = vmatprep.subr.bf16.mxu0 0
      %1484 = vmatpush1.bf16.msra.mxu0 %v1476
      %1485 = vmatprep.subr.bf16.mxu0 0
      %1486 = vmatpush1.bf16.msra.mxu0 %v1477
      %1487 = vmatprep.subr.bf16.mxu0 0
      %1488 = vmatpush1.bf16.msra.mxu0 0
      %1489 = vmatprep.subr.bf16.mxu0 0
      %1490 = vmatpush1.bf16.msra.mxu0 0
      %1491 = vmatprep.subr.bf16.mxu0 0
      %1492 = vmatpush1.bf16.msra.mxu0 0
      %1493 = vmatprep.subr.bf16.mxu0 0
      %1494 = vmatpush1.bf16.msra.mxu0 0
      %1495 = vmatprep.subr.bf16.mxu0 0
      %1496 = vmatpush1.bf16.msra.mxu0 0
      %1497 = vmatprep.subr.bf16.mxu0 0
      %1498 = vmatpush1.bf16.msra.mxu0 0
      %1499 = vmatprep.subr.bf16.mxu0 0
      %1500 = vmatpush1.bf16.msra.mxu0 0
      %1501 = vmatprep.subr.bf16.mxu0 0
      %1502 = vmatpush1.bf16.msra.mxu0 0
      %1503 = vmatprep.subr.bf16.mxu0 0
      %1504 = vmatpush1.bf16.msra.mxu0 0
      %1505 = vmatprep.subr.bf16.mxu0 0
      %1506 = vmatpush1.bf16.msra.mxu0 0
      %1507 = vmatprep.subr.bf16.mxu0 0
      %1508 = vmatpush1.bf16.msra.mxu0 0
      %1509 = vmatprep.subr.bf16.mxu0 0
      %1510 = vmatpush1.bf16.msra.mxu0 0
      %1511 = vmatprep.subr.bf16.mxu0 0
      %1512 = vmatpush1.bf16.msra.mxu0 0
      %1513 = vmatprep.subr.bf16.mxu0 0
      %1514 = vmatpush1.bf16.msra.mxu0 0
      %1515 = vmatprep.mubr.bf16.mxu0 0
      %1516 = vmatmul.mubr.bf16.gmra.mrb[0].mxu0 %v1481
      %v1517 = vpop.f32.mrb[0].mxu0
      %v1518 = vadd.f32 %v1466, %v1517
      %v1519 = vpop.f32.mrb[0].mxu0
      %v1520 = vpop.f32.mrb[0].mxu0
      %v1521 = vpop.f32.mrb[0].mxu0
      %1522 = vdwg.mxu0
      %v1523 = vadd.f32 %v892, %v1518
      %v1524 = vsel %vm896, %v1523, 0.0
      %1525 = vadd.xlane.f32.xlu0 %v1524
      %v1526 = vpop.xlane.xlu0 %1525
      %v1527 = vmul.f32 %v1526, %v900
      %v1528 = vsub.f32 %v1523, %v1527
      %v1529 = vmul.f32 %v1528, %v1528
      %v1530 = vsel %vm896, %v1529, 0.0
      %1531 = vadd.xlane.f32.xlu0 %v1530
      %v1532 = vpop.xlane.xlu0 %1531
      %v1533 = vmul.f32 %v1532, %v900
      %v1534 = vadd.f32 %v1533, 1e-05
      %v1535 = vrsqrt.pop %v1534
      %v1536 = vmul.f32 %v1528, %v1535
      %v1537 = vlaneseq
      %v1538 = vshrl.u32 %v1537, 7
      %v1539 = vsub.s32 2, %v1538
      %v1540 = vrot.slane %v895, %v1539
      %v1541 = vmul.f32 %v1536, %v1540
      %v1542 = vlaneseq
      %v1543 = vshrl.u32 %v1542, 7
      %v1544 = vsub.s32 3, %v1543
      %v1545 = vrot.slane %v895, %v1544
      %v1546 = vadd.f32 %v1541, %v1545
      %v1547 = vpack.c.bf16 %v1546, %v1546
      %v1548 = vld [vmem:[%s818] sm:$0xf]
      %v1549 = vld [vmem:[%s818 + $0x4] sm:$0xf]
      %v1550 = vld [vmem:[%s818 + $0x8] sm:$0xf]
      %v1551 = vld [vmem:[%s818 + $0xc] sm:$0xf]
      %v1552 = vld [vmem:[%s821] sm:$0x1]
      %v1554 = vlaneseq
      %v1555 = vshrl.u32 %v1554, 7
      %v1556 = vsub.s32 0, %v1555
      %v1557 = vrot.slane %v1552, %v1556
      %v1563 = vunpack.c.l.b16 %v1548
      %v1564 = vunpack.c.l.b16 %v1549
      %v1565 = vunpack.c.l.b16 %v1550
      %v1566 = vunpack.c.l.b16 %v1551
      %v1567 = vpack.c.b16 %v1564, %v1563
      %v1568 = vpack.c.b16 %v1566, %v1565
      %v1572 = vsel %vm896, %v1547, 0
      %1574 = vmatprep.subr.bf16.mxu0 0
      %1575 = vmatpush1.bf16.msra.mxu0 %v1567
      %1576 = vmatprep.subr.bf16.mxu0 0
      %1577 = vmatpush1.bf16.msra.mxu0 %v1568
      %1578 = vmatprep.subr.bf16.mxu0 0
      %1579 = vmatpush1.bf16.msra.mxu0 0
      %1580 = vmatprep.subr.bf16.mxu0 0
      %1581 = vmatpush1.bf16.msra.mxu0 0
      %1582 = vmatprep.subr.bf16.mxu0 0
      %1583 = vmatpush1.bf16.msra.mxu0 0
      %1584 = vmatprep.subr.bf16.mxu0 0
      %1585 = vmatpush1.bf16.msra.mxu0 0
      %1586 = vmatprep.subr.bf16.mxu0 0
      %1587 = vmatpush1.bf16.msra.mxu0 0
      %1588 = vmatprep.subr.bf16.mxu0 0
      %1589 = vmatpush1.bf16.msra.mxu0 0
      %1590 = vmatprep.subr.bf16.mxu0 0
      %1591 = vmatpush1.bf16.msra.mxu0 0
      %1592 = vmatprep.subr.bf16.mxu0 0
      %1593 = vmatpush1.bf16.msra.mxu0 0
      %1594 = vmatprep.subr.bf16.mxu0 0
      %1595 = vmatpush1.bf16.msra.mxu0 0
      %1596 = vmatprep.subr.bf16.mxu0 0
      %1597 = vmatpush1.bf16.msra.mxu0 0
      %1598 = vmatprep.subr.bf16.mxu0 0
      %1599 = vmatpush1.bf16.msra.mxu0 0
      %1600 = vmatprep.subr.bf16.mxu0 0
      %1601 = vmatpush1.bf16.msra.mxu0 0
      %1602 = vmatprep.subr.bf16.mxu0 0
      %1603 = vmatpush1.bf16.msra.mxu0 0
      %1604 = vmatprep.subr.bf16.mxu0 0
      %1605 = vmatpush1.bf16.msra.mxu0 0
      %1606 = vmatprep.mubr.bf16.mxu0 0
      %1607 = vmatmul.mubr.bf16.gmra.mrb[0].mxu0 %v1572
      %v1608 = vpop.f32.mrb[0].mxu0
      %v1609 = vadd.f32 %v1557, %v1608
      %v1610 = vpop.f32.mrb[0].mxu0
      %v1611 = vpop.f32.mrb[0].mxu0
      %v1612 = vpop.f32.mrb[0].mxu0
      %1613 = vdwg.mxu0
      %v1614 = vpack.c.bf16 %v894, %v893
      %v1615 = vld [vmem:[%s826] sm:$0xf]
      %v1616 = vld [vmem:[%s826 + $0x4] sm:$0xf]
      %v1617 = vld [vmem:[%s826 + $0x8] sm:$0xf]
      %v1618 = vld [vmem:[%s826 + $0xc] sm:$0xf]
      %v1619 = vld [vmem:[%s829] sm:$0x1]
      %v1621 = vlaneseq
      %v1622 = vshrl.u32 %v1621, 7
      %v1623 = vsub.s32 0, %v1622
      %v1624 = vrot.slane %v1619, %v1623
      %v1630 = vunpack.c.l.b16 %v1615
      %v1631 = vunpack.c.l.b16 %v1616
      %v1632 = vunpack.c.l.b16 %v1617
      %v1633 = vunpack.c.l.b16 %v1618
      %v1634 = vpack.c.b16 %v1631, %v1630
      %v1635 = vpack.c.b16 %v1633, %v1632
      %v1639 = vsel %vm896, %v1614, 0
      %1641 = vmatprep.subr.bf16.mxu0 0
      %1642 = vmatpush1.bf16.msra.mxu0 %v1634
      %1643 = vmatprep.subr.bf16.mxu0 0
      %1644 = vmatpush1.bf16.msra.mxu0 %v1635
      %1645 = vmatprep.subr.bf16.mxu0 0
      %1646 = vmatpush1.bf16.msra.mxu0 0
      %1647 = vmatprep.subr.bf16.mxu0 0
      %1648 = vmatpush1.bf16.msra.mxu0 0
      %1649 = vmatprep.subr.bf16.mxu0 0
      %1650 = vmatpush1.bf16.msra.mxu0 0
      %1651 = vmatprep.subr.bf16.mxu0 0
      %1652 = vmatpush1.bf16.msra.mxu0 0
      %1653 = vmatprep.subr.bf16.mxu0 0
      %1654 = vmatpush1.bf16.msra.mxu0 0
      %1655 = vmatprep.subr.bf16.mxu0 0
      %1656 = vmatpush1.bf16.msra.mxu0 0
      %1657 = vmatprep.subr.bf16.mxu0 0
      %1658 = vmatpush1.bf16.msra.mxu0 0
      %1659 = vmatprep.subr.bf16.mxu0 0
      %1660 = vmatpush1.bf16.msra.mxu0 0
      %1661 = vmatprep.subr.bf16.mxu0 0
      %1662 = vmatpush1.bf16.msra.mxu0 0
      %1663 = vmatprep.subr.bf16.mxu0 0
      %1664 = vmatpush1.bf16.msra.mxu0 0
      %1665 = vmatprep.subr.bf16.mxu0 0
      %1666 = vmatpush1.bf16.msra.mxu0 0
      %1667 = vmatprep.subr.bf16.mxu0 0
      %1668 = vmatpush1.bf16.msra.mxu0 0
      %1669 = vmatprep.subr.bf16.mxu0 0
      %1670 = vmatpush1.bf16.msra.mxu0 0
      %1671 = vmatprep.subr.bf16.mxu0 0
      %1672 = vmatpush1.bf16.msra.mxu0 0
      %1673 = vmatprep.mubr.bf16.mxu0 0
      %1674 = vmatmul.mubr.bf16.gmra.mrb[0].mxu0 %v1639
      %v1675 = vpop.f32.mrb[0].mxu0
      %v1676 = vadd.f32 %v1624, %v1675
      %v1677 = vpop.f32.mrb[0].mxu0
      %v1678 = vpop.f32.mrb[0].mxu0
      %v1679 = vadd.f32 %v1624, %v1678
      %v1680 = vpop.f32.mrb[0].mxu0
      %1681 = vdwg.mxu0
      %v1682 = vmul.f32 %v1609, 0.35355338
      %v1683 = vpack.c.bf16 %v1682, %v1682
      %v1684 = vpack.c.bf16 %v1679, %v1676
      %v1686 = vsel %vm1000, %v1683, 0
      %v1689 = vsel %vm1000, %v1684, 0
      %1691 = vmatprep.subr.bf16.mxu0 0
      %1692 = vmatpush1.bf16.xpose.msra.mxu0 %v1689
      %1693 = vmatprep.subr.bf16.mxu0 0
      %1694 = vmatpush1.bf16.xpose.msra.mxu0 0
      %1695 = vmatprep.subr.bf16.mxu0 0
      %1696 = vmatpush1.bf16.xpose.msra.mxu0 0
      %1697 = vmatprep.subr.bf16.mxu0 0
      %1698 = vmatpush1.bf16.xpose.msra.mxu0 0
      %1699 = vmatprep.subr.bf16.mxu0 0
      %1700 = vmatpush1.bf16.xpose.msra.mxu0 0
      %1701 = vmatprep.subr.bf16.mxu0 0
      %1702 = vmatpush1.bf16.xpose.msra.mxu0 0
      %1703 = vmatprep.subr.bf16.mxu0 0
      %1704 = vmatpush1.bf16.xpose.msra.mxu0 0
      %1705 = vmatprep.subr.bf16.mxu0 0
      %1706 = vmatpush1.bf16.xpose.msra.mxu0 0
      %1707 = vmatprep.subr.bf16.mxu0 0
      %1708 = vmatpush1.bf16.xpose.msra.mxu0 0
      %1709 = vmatprep.subr.bf16.mxu0 0
      %1710 = vmatpush1.bf16.xpose.msra.mxu0 0
      %1711 = vmatprep.subr.bf16.mxu0 0
      %1712 = vmatpush1.bf16.xpose.msra.mxu0 0
      %1713 = vmatprep.subr.bf16.mxu0 0
      %1714 = vmatpush1.bf16.xpose.msra.mxu0 0
      %1715 = vmatprep.subr.bf16.mxu0 0
      %1716 = vmatpush1.bf16.xpose.msra.mxu0 0
      %1717 = vmatprep.subr.bf16.mxu0 0
      %1718 = vmatpush1.bf16.xpose.msra.mxu0 0
      %1719 = vmatprep.subr.bf16.mxu0 0
      %1720 = vmatpush1.bf16.xpose.msra.mxu0 0
      %1721 = vmatprep.subr.bf16.mxu0 0
      %1722 = vmatpush1.bf16.xpose.msra.mxu0 0
      %1723 = vmatprep.mubr.bf16.mxu0 0
      %1724 = vmatmul.mubr.bf16.gmra.mrb[0].mxu0 %v1686
      %v1725 = vpop.f32.mrb[0].mxu0
      %v1726 = vadd.f32 0.0, %v1725
      %v1727 = vpop.f32.mrb[0].mxu0
      %v1728 = vpop.f32.mrb[0].mxu0
      %v1729 = vpop.f32.mrb[0].mxu0
      %1730 = vdwg.mxu0
      %vm1731 = vcmask 80896
      %v1732 = vsel %vm1731, %v1726, -inf
      %1733 = vmax.xlane.f32.xlu0 %v1732
      %v1734 = vpop.xlane.xlu0 %1733
      %v1735 = vsub.f32 %v1726, %v1734
      %v1736 = vmul.f32 %v1735, 1.442695
      %v1737 = vpow.pop %v1736
      %v1738 = vsel %vm1731, %v1737, 0.0
      %1739 = vadd.xlane.f32.xlu0 %v1738
      %v1740 = vpop.xlane.xlu0 %1739
      %v1741 = vrcp.pop %v1740
      %v1742 = vmul.f32 %v1737, %v1741
      %v1743 = vpack.c.bf16 %v1742, %v1742
      %1745 = vrot.lane.b32.xlu0 %v1684, 96
      %v1746 = vpop.permute.xlu0 %1745
      %v1748 = vsel %vm1731, %v1743, 0
      %vm1750 = vcmask 1044480
      %v1752 = vsel %vm1750, %v1746, 0
      %1754 = vmatprep.subr.bf16.mxu0 0
      %1755 = vmatpush1.bf16.msra.mxu0 %v1752
      %1756 = vmatprep.subr.bf16.mxu0 0
      %1757 = vmatpush1.bf16.msra.mxu0 0
      %1758 = vmatprep.subr.bf16.mxu0 0
      %1759 = vmatpush1.bf16.msra.mxu0 0
      %1760 = vmatprep.subr.bf16.mxu0 0
      %1761 = vmatpush1.bf16.msra.mxu0 0
      %1762 = vmatprep.subr.bf16.mxu0 0
      %1763 = vmatpush1.bf16.msra.mxu0 0
      %1764 = vmatprep.subr.bf16.mxu0 0
      %1765 = vmatpush1.bf16.msra.mxu0 0
      %1766 = vmatprep.subr.bf16.mxu0 0
      %1767 = vmatpush1.bf16.msra.mxu0 0
      %1768 = vmatprep.subr.bf16.mxu0 0
      %1769 = vmatpush1.bf16.msra.mxu0 0
      %1770 = vmatprep.subr.bf16.mxu0 0
      %1771 = vmatpush1.bf16.msra.mxu0 0
      %1772 = vmatprep.subr.bf16.mxu0 0
      %1773 = vmatpush1.bf16.msra.mxu0 0
      %1774 = vmatprep.subr.bf16.mxu0 0
      %1775 = vmatpush1.bf16.msra.mxu0 0
      %1776 = vmatprep.subr.bf16.mxu0 0
      %1777 = vmatpush1.bf16.msra.mxu0 0
      %1778 = vmatprep.subr.bf16.mxu0 0
      %1779 = vmatpush1.bf16.msra.mxu0 0
      %1780 = vmatprep.subr.bf16.mxu0 0
      %1781 = vmatpush1.bf16.msra.mxu0 0
      %1782 = vmatprep.subr.bf16.mxu0 0
      %1783 = vmatpush1.bf16.msra.mxu0 0
      %1784 = vmatprep.subr.bf16.mxu0 0
      %1785 = vmatpush1.bf16.msra.mxu0 0
      %1786 = vmatprep.mubr.bf16.mxu0 0
      %1787 = vmatmul.mubr.bf16.gmra.mrb[0].mxu0 %v1748
      %v1788 = vpop.f32.mrb[0].mxu0
      %v1789 = vadd.f32 0.0, %v1788
      %v1790 = vpop.f32.mrb[0].mxu0
      %v1791 = vpop.f32.mrb[0].mxu0
      %v1792 = vpop.f32.mrb[0].mxu0
      %1793 = vdwg.mxu0
      %1795 = vrot.lane.b32.xlu0 %v1683, 120
      %v1796 = vpop.permute.xlu0 %1795
      %1797 = vrot.lane.b32.xlu0 %v1684, 120
      %v1798 = vpop.permute.xlu0 %1797
      %v1800 = vsel %vm1000, %v1796, 0
      %v1803 = vsel %vm1000, %v1798, 0
      %1805 = vmatprep.subr.bf16.mxu0 0
      %1806 = vmatpush1.bf16.xpose.msra.mxu0 %v1803
      %1807 = vmatprep.subr.bf16.mxu0 0
      %1808 = vmatpush1.bf16.xpose.msra.mxu0 0
      %1809 = vmatprep.subr.bf16.mxu0 0
      %1810 = vmatpush1.bf16.xpose.msra.mxu0 0
      %1811 = vmatprep.subr.bf16.mxu0 0
      %1812 = vmatpush1.bf16.xpose.msra.mxu0 0
      %1813 = vmatprep.subr.bf16.mxu0 0
      %1814 = vmatpush1.bf16.xpose.msra.mxu0 0
      %1815 = vmatprep.subr.bf16.mxu0 0
      %1816 = vmatpush1.bf16.xpose.msra.mxu0 0
      %1817 = vmatprep.subr.bf16.mxu0 0
      %1818 = vmatpush1.bf16.xpose.msra.mxu0 0
      %1819 = vmatprep.subr.bf16.mxu0 0
      %1820 = vmatpush1.bf16.xpose.msra.mxu0 0
      %1821 = vmatprep.subr.bf16.mxu0 0
      %1822 = vmatpush1.bf16.xpose.msra.mxu0 0
      %1823 = vmatprep.subr.bf16.mxu0 0
      %1824 = vmatpush1.bf16.xpose.msra.mxu0 0
      %1825 = vmatprep.subr.bf16.mxu0 0
      %1826 = vmatpush1.bf16.xpose.msra.mxu0 0
      %1827 = vmatprep.subr.bf16.mxu0 0
      %1828 = vmatpush1.bf16.xpose.msra.mxu0 0
      %1829 = vmatprep.subr.bf16.mxu0 0
      %1830 = vmatpush1.bf16.xpose.msra.mxu0 0
      %1831 = vmatprep.subr.bf16.mxu0 0
      %1832 = vmatpush1.bf16.xpose.msra.mxu0 0
      %1833 = vmatprep.subr.bf16.mxu0 0
      %1834 = vmatpush1.bf16.xpose.msra.mxu0 0
      %1835 = vmatprep.subr.bf16.mxu0 0
      %1836 = vmatpush1.bf16.xpose.msra.mxu0 0
      %1837 = vmatprep.mubr.bf16.mxu0 0
      %1838 = vmatmul.mubr.bf16.gmra.mrb[0].mxu0 %v1800
      %v1839 = vpop.f32.mrb[0].mxu0
      %v1840 = vadd.f32 0.0, %v1839
      %v1841 = vpop.f32.mrb[0].mxu0
      %v1842 = vpop.f32.mrb[0].mxu0
      %v1843 = vpop.f32.mrb[0].mxu0
      %1844 = vdwg.mxu0
      %v1845 = vsel %vm1731, %v1840, -inf
      %1846 = vmax.xlane.f32.xlu0 %v1845
      %v1847 = vpop.xlane.xlu0 %1846
      %v1848 = vsub.f32 %v1840, %v1847
      %v1849 = vmul.f32 %v1848, 1.442695
      %v1850 = vpow.pop %v1849
      %v1851 = vsel %vm1731, %v1850, 0.0
      %1852 = vadd.xlane.f32.xlu0 %v1851
      %v1853 = vpop.xlane.xlu0 %1852
      %v1854 = vrcp.pop %v1853
      %v1855 = vmul.f32 %v1850, %v1854
      %v1856 = vpack.c.bf16 %v1855, %v1855
      %1857 = vrot.lane.b32.xlu0 %v1684, 88
      %v1858 = vpop.permute.xlu0 %1857
      %v1860 = vsel %vm1731, %v1856, 0
      %v1863 = vsel %vm1750, %v1858, 0
      %1865 = vmatprep.subr.bf16.mxu0 0
      %1866 = vmatpush1.bf16.msra.mxu0 %v1863
      %1867 = vmatprep.subr.bf16.mxu0 0
      %1868 = vmatpush1.bf16.msra.mxu0 0
      %1869 = vmatprep.subr.bf16.mxu0 0
      %1870 = vmatpush1.bf16.msra.mxu0 0
      %1871 = vmatprep.subr.bf16.mxu0 0
      %1872 = vmatpush1.bf16.msra.mxu0 0
      %1873 = vmatprep.subr.bf16.mxu0 0
      %1874 = vmatpush1.bf16.msra.mxu0 0
      %1875 = vmatprep.subr.bf16.mxu0 0
      %1876 = vmatpush1.bf16.msra.mxu0 0
      %1877 = vmatprep.subr.bf16.mxu0 0
      %1878 = vmatpush1.bf16.msra.mxu0 0
      %1879 = vmatprep.subr.bf16.mxu0 0
      %1880 = vmatpush1.bf16.msra.mxu0 0
      %1881 = vmatprep.subr.bf16.mxu0 0
      %1882 = vmatpush1.bf16.msra.mxu0 0
      %1883 = vmatprep.subr.bf16.mxu0 0
      %1884 = vmatpush1.bf16.msra.mxu0 0
      %1885 = vmatprep.subr.bf16.mxu0 0
      %1886 = vmatpush1.bf16.msra.mxu0 0
      %1887 = vmatprep.subr.bf16.mxu0 0
      %1888 = vmatpush1.bf16.msra.mxu0 0
      %1889 = vmatprep.subr.bf16.mxu0 0
      %1890 = vmatpush1.bf16.msra.mxu0 0
      %1891 = vmatprep.subr.bf16.mxu0 0
      %1892 = vmatpush1.bf16.msra.mxu0 0
      %1893 = vmatprep.subr.bf16.mxu0 0
      %1894 = vmatpush1.bf16.msra.mxu0 0
      %1895 = vmatprep.subr.bf16.mxu0 0
      %1896 = vmatpush1.bf16.msra.mxu0 0
      %1897 = vmatprep.mubr.bf16.mxu0 0
      %1898 = vmatmul.mubr.bf16.gmra.mrb[0].mxu0 %v1860
      %v1899 = vpop.f32.mrb[0].mxu0
      %v1900 = vadd.f32 0.0, %v1899
      %v1901 = vpop.f32.mrb[0].mxu0
      %v1902 = vpop.f32.mrb[0].mxu0
      %v1903 = vpop.f32.mrb[0].mxu0
      %1904 = vdwg.mxu0
      %1905 = vrot.lane.b32.xlu0 %v1683, 112
      %v1906 = vpop.permute.xlu0 %1905
      %1907 = vrot.lane.b32.xlu0 %v1684, 112
      %v1908 = vpop.permute.xlu0 %1907
      %v1910 = vsel %vm1000, %v1906, 0
      %v1913 = vsel %vm1000, %v1908, 0
      %1915 = vmatprep.subr.bf16.mxu0 0
      %1916 = vmatpush1.bf16.xpose.msra.mxu0 %v1913
      %1917 = vmatprep.subr.bf16.mxu0 0
      %1918 = vmatpush1.bf16.xpose.msra.mxu0 0
      %1919 = vmatprep.subr.bf16.mxu0 0
      %1920 = vmatpush1.bf16.xpose.msra.mxu0 0
      %1921 = vmatprep.subr.bf16.mxu0 0
      %1922 = vmatpush1.bf16.xpose.msra.mxu0 0
      %1923 = vmatprep.subr.bf16.mxu0 0
      %1924 = vmatpush1.bf16.xpose.msra.mxu0 0
      %1925 = vmatprep.subr.bf16.mxu0 0
      %1926 = vmatpush1.bf16.xpose.msra.mxu0 0
      %1927 = vmatprep.subr.bf16.mxu0 0
      %1928 = vmatpush1.bf16.xpose.msra.mxu0 0
      %1929 = vmatprep.subr.bf16.mxu0 0
      %1930 = vmatpush1.bf16.xpose.msra.mxu0 0
      %1931 = vmatprep.subr.bf16.mxu0 0
      %1932 = vmatpush1.bf16.xpose.msra.mxu0 0
      %1933 = vmatprep.subr.bf16.mxu0 0
      %1934 = vmatpush1.bf16.xpose.msra.mxu0 0
      %1935 = vmatprep.subr.bf16.mxu0 0
      %1936 = vmatpush1.bf16.xpose.msra.mxu0 0
      %1937 = vmatprep.subr.bf16.mxu0 0
      %1938 = vmatpush1.bf16.xpose.msra.mxu0 0
      %1939 = vmatprep.subr.bf16.mxu0 0
      %1940 = vmatpush1.bf16.xpose.msra.mxu0 0
      %1941 = vmatprep.subr.bf16.mxu0 0
      %1942 = vmatpush1.bf16.xpose.msra.mxu0 0
      %1943 = vmatprep.subr.bf16.mxu0 0
      %1944 = vmatpush1.bf16.xpose.msra.mxu0 0
      %1945 = vmatprep.subr.bf16.mxu0 0
      %1946 = vmatpush1.bf16.xpose.msra.mxu0 0
      %1947 = vmatprep.mubr.bf16.mxu0 0
      %1948 = vmatmul.mubr.bf16.gmra.mrb[0].mxu0 %v1910
      %v1949 = vpop.f32.mrb[0].mxu0
      %v1950 = vadd.f32 0.0, %v1949
      %v1951 = vpop.f32.mrb[0].mxu0
      %v1952 = vpop.f32.mrb[0].mxu0
      %v1953 = vpop.f32.mrb[0].mxu0
      %1954 = vdwg.mxu0
      %v1955 = vsel %vm1731, %v1950, -inf
      %1956 = vmax.xlane.f32.xlu0 %v1955
      %v1957 = vpop.xlane.xlu0 %1956
      %v1958 = vsub.f32 %v1950, %v1957
      %v1959 = vmul.f32 %v1958, 1.442695
      %v1960 = vpow.pop %v1959
      %v1961 = vsel %vm1731, %v1960, 0.0
      %1962 = vadd.xlane.f32.xlu0 %v1961
      %v1963 = vpop.xlane.xlu0 %1962
      %v1964 = vrcp.pop %v1963
      %v1965 = vmul.f32 %v1960, %v1964
      %v1966 = vpack.c.bf16 %v1965, %v1965
      %1967 = vrot.lane.b32.xlu0 %v1684, 80
      %v1968 = vpop.permute.xlu0 %1967
      %v1970 = vsel %vm1731, %v1966, 0
      %v1973 = vsel %vm1750, %v1968, 0
      %1975 = vmatprep.subr.bf16.mxu0 0
      %1976 = vmatpush1.bf16.msra.mxu0 %v1973
      %1977 = vmatprep.subr.bf16.mxu0 0
      %1978 = vmatpush1.bf16.msra.mxu0 0
      %1979 = vmatprep.subr.bf16.mxu0 0
      %1980 = vmatpush1.bf16.msra.mxu0 0
      %1981 = vmatprep.subr.bf16.mxu0 0
      %1982 = vmatpush1.bf16.msra.mxu0 0
      %1983 = vmatprep.subr.bf16.mxu0 0
      %1984 = vmatpush1.bf16.msra.mxu0 0
      %1985 = vmatprep.subr.bf16.mxu0 0
      %1986 = vmatpush1.bf16.msra.mxu0 0
      %1987 = vmatprep.subr.bf16.mxu0 0
      %1988 = vmatpush1.bf16.msra.mxu0 0
      %1989 = vmatprep.subr.bf16.mxu0 0
      %1990 = vmatpush1.bf16.msra.mxu0 0
      %1991 = vmatprep.subr.bf16.mxu0 0
      %1992 = vmatpush1.bf16.msra.mxu0 0
      %1993 = vmatprep.subr.bf16.mxu0 0
      %1994 = vmatpush1.bf16.msra.mxu0 0
      %1995 = vmatprep.subr.bf16.mxu0 0
      %1996 = vmatpush1.bf16.msra.mxu0 0
      %1997 = vmatprep.subr.bf16.mxu0 0
      %1998 = vmatpush1.bf16.msra.mxu0 0
      %1999 = vmatprep.subr.bf16.mxu0 0
      %2000 = vmatpush1.bf16.msra.mxu0 0
      %2001 = vmatprep.subr.bf16.mxu0 0
      %2002 = vmatpush1.bf16.msra.mxu0 0
      %2003 = vmatprep.subr.bf16.mxu0 0
      %2004 = vmatpush1.bf16.msra.mxu0 0
      %2005 = vmatprep.subr.bf16.mxu0 0
      %2006 = vmatpush1.bf16.msra.mxu0 0
      %2007 = vmatprep.mubr.bf16.mxu0 0
      %2008 = vmatmul.mubr.bf16.gmra.mrb[0].mxu0 %v1970
      %v2009 = vpop.f32.mrb[0].mxu0
      %v2010 = vadd.f32 0.0, %v2009
      %v2011 = vpop.f32.mrb[0].mxu0
      %v2012 = vpop.f32.mrb[0].mxu0
      %v2013 = vpop.f32.mrb[0].mxu0
      %2014 = vdwg.mxu0
      %2015 = vrot.lane.b32.xlu0 %v1683, 104
      %v2016 = vpop.permute.xlu0 %2015
      %2017 = vrot.lane.b32.xlu0 %v1684, 104
      %v2018 = vpop.permute.xlu0 %2017
      %v2020 = vsel %vm1000, %v2016, 0
      %v2023 = vsel %vm1000, %v2018, 0
      %2025 = vmatprep.subr.bf16.mxu0 0
      %2026 = vmatpush1.bf16.xpose.msra.mxu0 %v2023
      %2027 = vmatprep.subr.bf16.mxu0 0
      %2028 = vmatpush1.bf16.xpose.msra.mxu0 0
      %2029 = vmatprep.subr.bf16.mxu0 0
      %2030 = vmatpush1.bf16.xpose.msra.mxu0 0
      %2031 = vmatprep.subr.bf16.mxu0 0
      %2032 = vmatpush1.bf16.xpose.msra.mxu0 0
      %2033 = vmatprep.subr.bf16.mxu0 0
      %2034 = vmatpush1.bf16.xpose.msra.mxu0 0
      %2035 = vmatprep.subr.bf16.mxu0 0
      %2036 = vmatpush1.bf16.xpose.msra.mxu0 0
      %2037 = vmatprep.subr.bf16.mxu0 0
      %2038 = vmatpush1.bf16.xpose.msra.mxu0 0
      %2039 = vmatprep.subr.bf16.mxu0 0
      %2040 = vmatpush1.bf16.xpose.msra.mxu0 0
      %2041 = vmatprep.subr.bf16.mxu0 0
      %2042 = vmatpush1.bf16.xpose.msra.mxu0 0
      %2043 = vmatprep.subr.bf16.mxu0 0
      %2044 = vmatpush1.bf16.xpose.msra.mxu0 0
      %2045 = vmatprep.subr.bf16.mxu0 0
      %2046 = vmatpush1.bf16.xpose.msra.mxu0 0
      %2047 = vmatprep.subr.bf16.mxu0 0
      %2048 = vmatpush1.bf16.xpose.msra.mxu0 0
      %2049 = vmatprep.subr.bf16.mxu0 0
      %2050 = vmatpush1.bf16.xpose.msra.mxu0 0
      %2051 = vmatprep.subr.bf16.mxu0 0
      %2052 = vmatpush1.bf16.xpose.msra.mxu0 0
      %2053 = vmatprep.subr.bf16.mxu0 0
      %2054 = vmatpush1.bf16.xpose.msra.mxu0 0
      %2055 = vmatprep.subr.bf16.mxu0 0
      %2056 = vmatpush1.bf16.xpose.msra.mxu0 0
      %2057 = vmatprep.mubr.bf16.mxu0 0
      %2058 = vmatmul.mubr.bf16.gmra.mrb[0].mxu0 %v2020
      %v2059 = vpop.f32.mrb[0].mxu0
      %v2060 = vadd.f32 0.0, %v2059
      %v2061 = vpop.f32.mrb[0].mxu0
      %v2062 = vpop.f32.mrb[0].mxu0
      %v2063 = vpop.f32.mrb[0].mxu0
      %2064 = vdwg.mxu0
      %v2065 = vsel %vm1731, %v2060, -inf
      %2066 = vmax.xlane.f32.xlu0 %v2065
      %v2067 = vpop.xlane.xlu0 %2066
      %v2068 = vsub.f32 %v2060, %v2067
      %v2069 = vmul.f32 %v2068, 1.442695
      %v2070 = vpow.pop %v2069
      %v2071 = vsel %vm1731, %v2070, 0.0
      %2072 = vadd.xlane.f32.xlu0 %v2071
      %v2073 = vpop.xlane.xlu0 %2072
      %v2074 = vrcp.pop %v2073
      %v2075 = vmul.f32 %v2070, %v2074
      %v2076 = vpack.c.bf16 %v2075, %v2075
      %2077 = vrot.lane.b32.xlu0 %v1684, 72
      %v2078 = vpop.permute.xlu0 %2077
      %v2080 = vsel %vm1731, %v2076, 0
      %v2083 = vsel %vm1750, %v2078, 0
      %2085 = vmatprep.subr.bf16.mxu0 0
      %2086 = vmatpush1.bf16.msra.mxu0 %v2083
      %2087 = vmatprep.subr.bf16.mxu0 0
      %2088 = vmatpush1.bf16.msra.mxu0 0
      %2089 = vmatprep.subr.bf16.mxu0 0
      %2090 = vmatpush1.bf16.msra.mxu0 0
      %2091 = vmatprep.subr.bf16.mxu0 0
      %2092 = vmatpush1.bf16.msra.mxu0 0
      %2093 = vmatprep.subr.bf16.mxu0 0
      %2094 = vmatpush1.bf16.msra.mxu0 0
      %2095 = vmatprep.subr.bf16.mxu0 0
      %2096 = vmatpush1.bf16.msra.mxu0 0
      %2097 = vmatprep.subr.bf16.mxu0 0
      %2098 = vmatpush1.bf16.msra.mxu0 0
      %2099 = vmatprep.subr.bf16.mxu0 0
      %2100 = vmatpush1.bf16.msra.mxu0 0
      %2101 = vmatprep.subr.bf16.mxu0 0
      %2102 = vmatpush1.bf16.msra.mxu0 0
      %2103 = vmatprep.subr.bf16.mxu0 0
      %2104 = vmatpush1.bf16.msra.mxu0 0
      %2105 = vmatprep.subr.bf16.mxu0 0
      %2106 = vmatpush1.bf16.msra.mxu0 0
      %2107 = vmatprep.subr.bf16.mxu0 0
      %2108 = vmatpush1.bf16.msra.mxu0 0
      %2109 = vmatprep.subr.bf16.mxu0 0
      %2110 = vmatpush1.bf16.msra.mxu0 0
      %2111 = vmatprep.subr.bf16.mxu0 0
      %2112 = vmatpush1.bf16.msra.mxu0 0
      %2113 = vmatprep.subr.bf16.mxu0 0
      %2114 = vmatpush1.bf16.msra.mxu0 0
      %2115 = vmatprep.subr.bf16.mxu0 0
      %2116 = vmatpush1.bf16.msra.mxu0 0
      %2117 = vmatprep.mubr.bf16.mxu0 0
      %2118 = vmatmul.mubr.bf16.gmra.mrb[0].mxu0 %v2080
      %v2119 = vpop.f32.mrb[0].mxu0
      %v2120 = vadd.f32 0.0, %v2119
      %v2121 = vpop.f32.mrb[0].mxu0
      %v2122 = vpop.f32.mrb[0].mxu0
      %v2123 = vpop.f32.mrb[0].mxu0
      %2124 = vdwg.mxu0
      %2126 = vrot.lane.b32.xlu0 %v1900, 8
      %v2127 = vpop.permute.xlu0 %2126
      %2130 = vrot.lane.b32.xlu0 %v2010, 16
      %v2131 = vpop.permute.xlu0 %2130
      %2134 = vrot.lane.b32.xlu0 %v2120, 24
      %v2135 = vpop.permute.xlu0 %2134
      %v2137 = vsel %vm1000, %v1789, %v2127
      %v2138 = vsel %vm1452, %v2137, %v2131
      %v2139 = vsel %vm1454, %v2138, %v2135
      %v2140 = vpack.c.bf16 %v2139, %v2139
      %v2141 = vld [vmem:[%s834] sm:$0xf]
      %v2142 = vld [vmem:[%s834 + $0x4] sm:$0xf]
      %v2143 = vld [vmem:[%s834 + $0x8] sm:$0xf]
      %v2144 = vld [vmem:[%s834 + $0xc] sm:$0xf]
      %v2145 = vld [vmem:[%s837] sm:$0x1]
      %v2147 = vlaneseq
      %v2148 = vshrl.u32 %v2147, 7
      %v2149 = vsub.s32 0, %v2148
      %v2150 = vrot.slane %v2145, %v2149
      %v2156 = vunpack.c.l.b16 %v2141
      %v2157 = vunpack.c.l.b16 %v2142
      %v2158 = vunpack.c.l.b16 %v2143
      %v2159 = vunpack.c.l.b16 %v2144
      %v2160 = vpack.c.b16 %v2157, %v2156
      %v2161 = vpack.c.b16 %v2159, %v2158
      %v2165 = vsel %vm896, %v2140, 0
      %2167 = vmatprep.subr.bf16.mxu0 0
      %2168 = vmatpush1.bf16.msra.mxu0 %v2160
      %2169 = vmatprep.subr.bf16.mxu0 0
      %2170 = vmatpush1.bf16.msra.mxu0 %v2161
      %2171 = vmatprep.subr.bf16.mxu0 0
      %2172 = vmatpush1.bf16.msra.mxu0 0
      %2173 = vmatprep.subr.bf16.mxu0 0
      %2174 = vmatpush1.bf16.msra.mxu0 0
      %2175 = vmatprep.subr.bf16.mxu0 0
      %2176 = vmatpush1.bf16.msra.mxu0 0
      %2177 = vmatprep.subr.bf16.mxu0 0
      %2178 = vmatpush1.bf16.msra.mxu0 0
      %2179 = vmatprep.subr.bf16.mxu0 0
      %2180 = vmatpush1.bf16.msra.mxu0 0
      %2181 = vmatprep.subr.bf16.mxu0 0
      %2182 = vmatpush1.bf16.msra.mxu0 0
      %2183 = vmatprep.subr.bf16.mxu0 0
      %2184 = vmatpush1.bf16.msra.mxu0 0
      %2185 = vmatprep.subr.bf16.mxu0 0
      %2186 = vmatpush1.bf16.msra.mxu0 0
      %2187 = vmatprep.subr.bf16.mxu0 0
      %2188 = vmatpush1.bf16.msra.mxu0 0
      %2189 = vmatprep.subr.bf16.mxu0 0
      %2190 = vmatpush1.bf16.msra.mxu0 0
      %2191 = vmatprep.subr.bf16.mxu0 0
      %2192 = vmatpush1.bf16.msra.mxu0 0
      %2193 = vmatprep.subr.bf16.mxu0 0
      %2194 = vmatpush1.bf16.msra.mxu0 0
      %2195 = vmatprep.subr.bf16.mxu0 0
      %2196 = vmatpush1.bf16.msra.mxu0 0
      %2197 = vmatprep.subr.bf16.mxu0 0
      %2198 = vmatpush1.bf16.msra.mxu0 0
      %2199 = vmatprep.mubr.bf16.mxu0 0
      %2200 = vmatmul.mubr.bf16.gmra.mrb[0].mxu0 %v2165
      %v2201 = vpop.f32.mrb[0].mxu0
      %v2202 = vadd.f32 %v2150, %v2201
      %v2203 = vpop.f32.mrb[0].mxu0
      %v2204 = vpop.f32.mrb[0].mxu0
      %v2205 = vpop.f32.mrb[0].mxu0
      %2206 = vdwg.mxu0
      %v2207 = vadd.f32 %v1523, %v2202
      %v2208 = vsel %vm896, %v2207, 0.0
      %2209 = vadd.xlane.f32.xlu0 %v2208
      %v2210 = vpop.xlane.xlu0 %2209
      %v2211 = vmul.f32 %v2210, %v900
      %v2212 = vsub.f32 %v2207, %v2211
      %v2213 = vmul.f32 %v2212, %v2212
      %v2214 = vsel %vm896, %v2213, 0.0
      %2215 = vadd.xlane.f32.xlu0 %v2214
      %v2216 = vpop.xlane.xlu0 %2215
      %v2217 = vmul.f32 %v2216, %v900
      %v2218 = vadd.f32 %v2217, 1e-05
      %v2219 = vrsqrt.pop %v2218
      %v2220 = vmul.f32 %v2212, %v2219
      %v2221 = vlaneseq
      %v2222 = vshrl.u32 %v2221, 7
      %v2223 = vsub.s32 4, %v2222
      %v2224 = vrot.slane %v895, %v2223
      %v2225 = vmul.f32 %v2220, %v2224
      %v2226 = vlaneseq
      %v2227 = vshrl.u32 %v2226, 7
      %v2228 = vsub.s32 5, %v2227
      %v2229 = vrot.slane %v895, %v2228
      %v2230 = vadd.f32 %v2225, %v2229
      %v2231 = vpack.c.bf16 %v2230, %v2230
      %v2232 = vld [vmem:[%s842] sm:$0xf]
      %v2233 = vld [vmem:[%s842 + $0x4] sm:$0xf]
      %v2234 = vld [vmem:[%s842 + $0x8] sm:$0xf]
      %v2235 = vld [vmem:[%s842 + $0xc] sm:$0xf]
      %v2236 = vld [vmem:[%s845] sm:$0x1]
      %v2238 = vlaneseq
      %v2239 = vshrl.u32 %v2238, 7
      %v2240 = vsub.s32 0, %v2239
      %v2241 = vrot.slane %v2236, %v2240
      %v2247 = vunpack.c.l.b16 %v2232
      %v2248 = vunpack.c.l.b16 %v2233
      %v2249 = vunpack.c.l.b16 %v2234
      %v2250 = vunpack.c.l.b16 %v2235
      %v2251 = vpack.c.b16 %v2248, %v2247
      %v2252 = vpack.c.b16 %v2250, %v2249
      %v2256 = vsel %vm896, %v2231, 0
      %2258 = vmatprep.subr.bf16.mxu0 0
      %2259 = vmatpush1.bf16.msra.mxu0 %v2251
      %2260 = vmatprep.subr.bf16.mxu0 0
      %2261 = vmatpush1.bf16.msra.mxu0 %v2252
      %2262 = vmatprep.subr.bf16.mxu0 0
      %2263 = vmatpush1.bf16.msra.mxu0 0
      %2264 = vmatprep.subr.bf16.mxu0 0
      %2265 = vmatpush1.bf16.msra.mxu0 0
      %2266 = vmatprep.subr.bf16.mxu0 0
      %2267 = vmatpush1.bf16.msra.mxu0 0
      %2268 = vmatprep.subr.bf16.mxu0 0
      %2269 = vmatpush1.bf16.msra.mxu0 0
      %2270 = vmatprep.subr.bf16.mxu0 0
      %2271 = vmatpush1.bf16.msra.mxu0 0
      %2272 = vmatprep.subr.bf16.mxu0 0
      %2273 = vmatpush1.bf16.msra.mxu0 0
      %2274 = vmatprep.subr.bf16.mxu0 0
      %2275 = vmatpush1.bf16.msra.mxu0 0
      %2276 = vmatprep.subr.bf16.mxu0 0
      %2277 = vmatpush1.bf16.msra.mxu0 0
      %2278 = vmatprep.subr.bf16.mxu0 0
      %2279 = vmatpush1.bf16.msra.mxu0 0
      %2280 = vmatprep.subr.bf16.mxu0 0
      %2281 = vmatpush1.bf16.msra.mxu0 0
      %2282 = vmatprep.subr.bf16.mxu0 0
      %2283 = vmatpush1.bf16.msra.mxu0 0
      %2284 = vmatprep.subr.bf16.mxu0 0
      %2285 = vmatpush1.bf16.msra.mxu0 0
      %2286 = vmatprep.subr.bf16.mxu0 0
      %2287 = vmatpush1.bf16.msra.mxu0 0
      %2288 = vmatprep.subr.bf16.mxu0 0
      %2289 = vmatpush1.bf16.msra.mxu0 0
      %2290 = vmatprep.mubr.bf16.mxu0 0
      %2291 = vmatmul.mubr.bf16.gmra.mrb[0].mxu0 %v2256
      %v2292 = vpop.f32.mrb[0].mxu0
      %v2293 = vadd.f32 %v2241, %v2292
      %v2294 = vpop.f32.mrb[0].mxu0
      %v2295 = vpop.f32.mrb[0].mxu0
      %v2296 = vpop.f32.mrb[0].mxu0
      %2297 = vdwg.mxu0
      %v2298 = vmax.f32 %v2293, 0.0
      %v2299 = vpack.c.bf16 %v2298, %v2298
      %v2300 = vld [vmem:[%s850] sm:$0xf]
      %v2301 = vld [vmem:[%s850 + $0x4] sm:$0xf]
      %v2302 = vld [vmem:[%s850 + $0x8] sm:$0xf]
      %v2303 = vld [vmem:[%s850 + $0xc] sm:$0xf]
      %v2304 = vld [vmem:[%s850 + $0x10] sm:$0xf]
      %v2305 = vld [vmem:[%s850 + $0x14] sm:$0xf]
      %v2306 = vld [vmem:[%s850 + $0x18] sm:$0xf]
      %v2307 = vld [vmem:[%s850 + $0x1c] sm:$0xf]
      %v2308 = vld [vmem:[%s853] sm:$0x1]
      %v2310 = vlaneseq
      %v2311 = vshrl.u32 %v2310, 7
      %v2312 = vsub.s32 0, %v2311
      %v2313 = vrot.slane %v2308, %v2312
      %v2323 = vunpack.c.l.b16 %v2300
      %v2324 = vunpack.c.l.b16 %v2301
      %v2325 = vunpack.c.l.b16 %v2302
      %v2326 = vunpack.c.l.b16 %v2303
      %v2327 = vunpack.c.l.b16 %v2304
      %v2328 = vunpack.c.l.b16 %v2305
      %v2329 = vunpack.c.l.b16 %v2306
      %v2330 = vunpack.c.l.b16 %v2307
      %v2331 = vpack.c.b16 %v2324, %v2323
      %v2332 = vpack.c.b16 %v2326, %v2325
      %v2333 = vpack.c.b16 %v2328, %v2327
      %v2334 = vpack.c.b16 %v2330, %v2329
      %vm2339 = vcmask 523264
      %v2341 = vsel %vm2339, %v2299, 0
      %2343 = vmatprep.subr.bf16.mxu0 0
      %2344 = vmatpush1.bf16.msra.mxu0 %v2331
      %2345 = vmatprep.subr.bf16.mxu0 0
      %2346 = vmatpush1.bf16.msra.mxu0 %v2332
      %2347 = vmatprep.subr.bf16.mxu0 0
      %2348 = vmatpush1.bf16.msra.mxu0 %v2333
      %2349 = vmatprep.subr.bf16.mxu0 0
      %2350 = vmatpush1.bf16.msra.mxu0 %v2334
      %2351 = vmatprep.subr.bf16.mxu0 0
      %2352 = vmatpush1.bf16.msra.mxu0 0
      %2353 = vmatprep.subr.bf16.mxu0 0
      %2354 = vmatpush1.bf16.msra.mxu0 0
      %2355 = vmatprep.subr.bf16.mxu0 0
      %2356 = vmatpush1.bf16.msra.mxu0 0
      %2357 = vmatprep.subr.bf16.mxu0 0
      %2358 = vmatpush1.bf16.msra.mxu0 0
      %2359 = vmatprep.subr.bf16.mxu0 0
      %2360 = vmatpush1.bf16.msra.mxu0 0
      %2361 = vmatprep.subr.bf16.mxu0 0
      %2362 = vmatpush1.bf16.msra.mxu0 0
      %2363 = vmatprep.subr.bf16.mxu0 0
      %2364 = vmatpush1.bf16.msra.mxu0 0
      %2365 = vmatprep.subr.bf16.mxu0 0
      %2366 = vmatpush1.bf16.msra.mxu0 0
      %2367 = vmatprep.subr.bf16.mxu0 0
      %2368 = vmatpush1.bf16.msra.mxu0 0
      %2369 = vmatprep.subr.bf16.mxu0 0
      %2370 = vmatpush1.bf16.msra.mxu0 0
      %2371 = vmatprep.subr.bf16.mxu0 0
      %2372 = vmatpush1.bf16.msra.mxu0 0
      %2373 = vmatprep.subr.bf16.mxu0 0
      %2374 = vmatpush1.bf16.msra.mxu0 0
      %2375 = vmatprep.mubr.bf16.mxu0 0
      %2376 = vmatmul.mubr.bf16.gmra.mrb[0].mxu0 %v2341
      %v2377 = vpop.f32.mrb[0].mxu0
      %v2378 = vadd.f32 %v2313, %v2377
      %v2379 = vpop.f32.mrb[0].mxu0
      %v2380 = vpop.f32.mrb[0].mxu0
      %v2381 = vpop.f32.mrb[0].mxu0
      %2382 = vdwg.mxu0
      %v2383 = vadd.f32 %v2207, %v2378
      %2384 = vst.msk [vmem:[#allocation2] sm:$0xff] %vm896, %v2383
      %p2385 = scmp.eq.s32.totalorder %s34, 1
      // Predicated region
      $region97: #{transformer_decoder_forward.1} parent=91 // pred_check
        %p2386 = pneg %p2385
      $region98: #{transformer_decoder_forward.1} parent=91 // pred_check_branch
        %2388 = sbr.rel (%p2386) target = $region100
      $region99: #{transformer_decoder_forward.1} parent=91 // pred_region
        %v2389 = vld [vmem:[%s2 + $0x2] sm:$0x1]
        %v2390 = vld [vmem:[%s2 + $0x3] sm:$0x1]
        %v2391 = vsel %vm896, %v2383, 0.0
        %2392 = vadd.xlane.f32.xlu0 %v2391
        %v2393 = vpop.xlane.xlu0 %2392
        %v2394 = vmul.f32 %v2393, %v900
        %v2395 = vsub.f32 %v2383, %v2394
        %v2396 = vmul.f32 %v2395, %v2395
        %v2397 = vsel %vm896, %v2396, 0.0
        %2398 = vadd.xlane.f32.xlu0 %v2397
        %v2399 = vpop.xlane.xlu0 %2398
        %v2400 = vmul.f32 %v2399, %v900
        %v2401 = vadd.f32 %v2400, 1e-05
        %v2402 = vrsqrt.pop %v2401
        %v2403 = vmul.f32 %v2395, %v2402
        %v2404 = vlaneseq
        %v2405 = vshrl.u32 %v2404, 7
        %v2406 = vsub.s32 0, %v2405
        %v2407 = vrot.slane %v2389, %v2406
        %v2408 = vmul.f32 %v2403, %v2407
        %v2409 = vlaneseq
        %v2410 = vshrl.u32 %v2409, 7
        %v2411 = vsub.s32 0, %v2410
        %v2412 = vrot.slane %v2390, %v2411
        %v2413 = vadd.f32 %v2408, %v2412
        %2414 = vst.msk [vmem:[%s857] sm:$0xff] %vm896, %v2413
      $region100: #{transformer_decoder_forward.1} parent=91 // pred_fallthru
        _
      %p2415 = scmp.lt.s32.totalorder %s33, 1
      %s2416 = scalar_select %p2415, %s33, 1
      %s2417 = smul.addr %s2416, 8
      %s2418 = scalar_lea.vmem %s18, %s2417
      // Predicated region
      $region101: #{transformer_decoder_forward.1} parent=91 // pred_check
        %p2419 = pneg %p522
      $region102: #{transformer_decoder_forward.1} parent=91 // pred_check_branch
        %2421 = sbr.rel (%p2419) target = $region104
      $region103: #{transformer_decoder_forward.1} parent=91 // pred_region
        _
      $region104: #{transformer_decoder_forward.1} parent=91 // pred_fallthru
        _
    $region92: #{transformer_decoder_forward.1} parent=5 // pred_fallthru
      _
    %p2422 = scmp.le.s32.totalorder 2, %s24
    // Predicated region
    $region105: #{transformer_decoder_forward.1} parent=5 // pred_check
      %p2423 = pneg %p2422
    $region106: #{transformer_decoder_forward.1} parent=5 // pred_check_branch
      %2425 = sbr.rel (%p2423) target = $region108
    $region107: #{transformer_decoder_forward.1} parent=5 // pred_region
      %s2426 = ssub.s32 %s24, 2
      // Predicated region
      $region109: #{transformer_decoder_forward.1} parent=107 // pred_check
        %p2427 = pneg %p528
      $region110: #{transformer_decoder_forward.1} parent=107 // pred_check_branch
        %2429 = sbr.rel (%p2427) target = $region112
      $region111: #{transformer_decoder_forward.1} parent=107 // pred_region
        %p2430 = scmp.lt.s32.totalorder %s35, 1
        %s2431 = scalar_select %p2430, %s35, 1
        %s2432 = smul.addr %s2431, 8
        %s2433 = scalar_lea.vmem %s18, %s2432
      $region112: #{transformer_decoder_forward.1} parent=107 // pred_fallthru
        _
    $region108: #{transformer_decoder_forward.1} parent=5 // pred_fallthru
      _
  $region6: #{transformer_decoder_forward.1} parent=0 // loop_footer
    %s28 = sadd.s32 1, %s24
  $region7: #{transformer_decoder_forward.1} parent=0 // loop_footer_branch
    %23 = sbr.rel target = $region3
  $region8: #{transformer_decoder_forward.1} parent=0 // loop_exit
    _

</llo_original>
